<compile_context>
chip_gen: v6e
topology: v6e:2x2x1
jax: 0.10.0
libtpu: 0.0.40
codegen_flags: <defaults>
</compile_context>

<pallas_src>
import functools

import jax
import jax.numpy as jnp
from jax.experimental import pallas as pl
from jax.experimental.pallas import tpu as pltpu

BN_EPS = 1e-5  # nn.BatchNorm2d default eps

# ---- generation-aware VMEM budgeting (v5e/v6e: 128 MiB physical, v7x: 64 MiB) ----
try:
    _VMEM_CAP = int(getattr(pltpu.get_tpu_info(), "vmem_capacity_bytes", 0)) or (64 << 20)
except Exception:  # no TPU visible at import time -> conservative default
    _VMEM_CAP = 64 << 20
_VMEM_LIMIT = min((_VMEM_CAP * 3) // 4, 112 << 20)   # ~96 MiB on v5e/v6e, ~48 MiB on v7x
_TILE_BUDGET = max(_VMEM_LIMIT // 8, 4 << 20)        # target per-step working set


def _pick_tile_h(h_total, bytes_per_row, budget):
    """Largest row-tile that fits the budget, divides h_total and keeps the
    second-minor dim of lane-folded output blocks sublane-aligned (multiple of
    8) unless the tile is the whole extent."""
    t_max = max(1, min(h_total, budget // max(bytes_per_row, 1)))
    if t_max >= h_total:
        return h_total
    for cand in range(t_max, 7, -1):
        if cand % 8 == 0 and h_total % cand == 0:
            return cand
    # No aligned divisor fits the budget: take a single tile (correct, may be big).
    return h_total


# ---------------- fused [pool?] + [BN+ReLU of previous layer?] + Conv3x3 kernel ----------------
def _conv_kernel(body_ref, top_ref, bot_ref, scale_ref, shift_ref, w_ref,
                 y_ref, st_ref, *, tile_h, wp, pool, act, fold):
    h = pl.program_id(1)
    n_htiles = pl.num_programs(1)
    cout = w_ref.shape[1]
    cin = w_ref.shape[0] // 9

    body = body_ref[0]      # pool: (2*tile_h, 2*wp, cin)  else: (tile_h, wp, cin)
    top = top_ref[0]        # pool: (2, 2*wp, cin)          else: (1, wp, cin)
    bot = bot_ref[0]

    if pool:                # fused MaxPool2d(2) on the freshly loaded rows
        def pool2x2(t):
            r2, w2, c = t.shape
            t = t.reshape(r2 // 2, 2, w2, c)
            t = jnp.maximum(t[:, 0], t[:, 1])                    # row-pair max
            t = t.reshape(r2 // 2, w2 // 2, 2, c)
            return jnp.maximum(t[:, :, 0, :], t[:, :, 1, :])     # col-pair max
        body, top, bot = pool2x2(body), pool2x2(top), pool2x2(bot)

    if act:                 # previous layer's BatchNorm(scale/shift) + ReLU, fused
        sc = scale_ref[...].reshape(1, 1, cin)
        sh = shift_ref[...].reshape(1, 1, cin)
        body = jnp.maximum(body * sc + sh, 0.0)
        top = jnp.maximum(top * sc + sh, 0.0)
        bot = jnp.maximum(bot * sc + sh, 0.0)

    # Conv zero padding: halo rows outside the image become zero (applied after
    # the activation so pad values are true zeros), plus one zero column per side.
    top = top * (h > 0).astype(top.dtype)
    bot = bot * (h < n_htiles - 1).astype(bot.dtype)
    xt = jnp.concatenate([top, body, bot], axis=0)               # (tile_h+2, wp, cin)
    zcol = jnp.zeros((tile_h + 2, 1, cin), xt.dtype)
    xt = jnp.concatenate([zcol, xt, zcol], axis=1)               # (tile_h+2, wp+2, cin)

    # im2col -> single (tile_h*wp, 9*cin) x (9*cin, cout) MXU matmul.
    wide = jnp.concatenate([xt[:, dx:dx + wp, :] for dx in range(3)], axis=-1)
    patches = jnp.concatenate([wide[dy:dy + tile_h] for dy in range(3)], axis=-1)
    patches = patches.reshape(tile_h * wp, 9 * cin)
    acc = jnp.dot(patches, w_ref[...], preferred_element_type=jnp.float32)
    # conv bias intentionally omitted: exactly cancelled by training-mode BN.

    if fold:
        # lane-dense store: (tile_h, wp*cout), w-major / c-minor ordering.
        y3 = acc.reshape(tile_h, wp, cout)
        folded = jnp.concatenate([y3[:, i, :] for i in range(wp)], axis=-1)
        y_ref[...] = folded[None]
    else:
        y_ref[...] = acc[None]                                   # (1, tile_h*wp, cout)

    # Per-tile BN partials: tile mean + centered M2 (avoids E[x^2]-E[x]^2 cancellation).
    cnt = tile_h * wp
    mean_t = jnp.sum(acc, axis=0, keepdims=True) * (1.0 / cnt)   # (1, cout)
    diff = acc - mean_t
    m2_t = jnp.sum(diff * diff, axis=0, keepdims=True)           # (1, cout)
    st_ref[...] = jnp.concatenate([mean_t, m2_t], axis=0).reshape(1, 1, 2, cout)


def _conv_layer(x, w, scale, shift, *, pool, act):
    """One ConvBatchNorm step (pre-BN output).

    x: NHWC input (full resolution if pool=True, else already at pooled size).
    If act=True, ReLU(x*scale+shift) is applied to the loaded tiles (this is the
    previous layer's BatchNorm+ReLU, fused into this layer's load).
    Returns (y (N, Hp, Wp, Cout) pre-BN conv output, mean (Cout,), var (Cout,)).
    """
    n, h_in, w_in, cin = x.shape
    hp, wp = (h_in // 2, w_in // 2) if pool else (h_in, w_in)
    cout = w.shape[-1]
    w2d = w.reshape(9 * cin, cout)
    if scale is None:
        scale = jnp.ones((cin,), jnp.float32)
        shift = jnp.zeros((cin,), jnp.float32)

    rows_factor = 2 if pool else 1
    # Per-row working set: double-buffered input rows, padded tile, 'wide' (3*cin),
    # im2col patches (9*cin), accumulator + fold temp + double-buffered output.
    bytes_per_row = 4 * (rows_factor * w_in * cin * 2
                         + (wp + 2) * cin
                         + wp * 3 * cin
                         + wp * 9 * cin
                         + wp * cout * 4)
    fixed = 4 * (2 * 9 * cin * cout + 4 * rows_factor * w_in * cin)  # weights + halo rows
    tile_h = _pick_tile_h(hp, bytes_per_row, max(_TILE_BUDGET - fixed, bytes_per_row))
    n_htiles = hp // tile_h

    # Lane-fold the store only when it helps (Cout not already a lane multiple)
    # and the unrolled fold stays small.
    fold = (cout % 128 != 0) and (wp <= 64)

    body_rows = rows_factor * tile_h
    halo_rows = rows_factor
    body_spec = pl.BlockSpec((1, body_rows, w_in, cin), lambda i, j: (i, j, 0, 0))
    top_spec = pl.BlockSpec(
        (1, halo_rows, w_in, cin),
        lambda i, j: (i, jnp.maximum(j * tile_h - 1, 0), 0, 0))
    bot_spec = pl.BlockSpec(
        (1, halo_rows, w_in, cin),
        lambda i, j: (i, jnp.minimum(j * tile_h + tile_h, hp - 1), 0, 0))
    vec_spec = pl.BlockSpec((1, cin), lambda i, j: (0, 0))
    w_spec = pl.BlockSpec((9 * cin, cout), lambda i, j: (0, 0))  # resident weights

    if fold:
        y_shape = jax.ShapeDtypeStruct((n, hp, wp * cout), jnp.float32)
        y_spec = pl.BlockSpec((1, tile_h, wp * cout), lambda i, j: (i, j, 0))
    else:
        y_shape = jax.ShapeDtypeStruct((n, hp * wp, cout), jnp.float32)
        y_spec = pl.BlockSpec((1, tile_h * wp, cout), lambda i, j: (i, j, 0))

    kernel = functools.partial(_conv_kernel, tile_h=tile_h, wp=wp,
                               pool=pool, act=act, fold=fold)
    y, stats = pl.pallas_call(
        kernel,
        out_shape=(y_shape,
                   jax.ShapeDtypeStruct((n, n_htiles, 2, cout), jnp.float32)),
        grid=(n, n_htiles),
        in_specs=[body_spec, top_spec, bot_spec, vec_spec, vec_spec, w_spec],
        out_specs=(y_spec,
                   pl.BlockSpec((1, 1, 2, cout), lambda i, j: (i, j, 0, 0))),
        compiler_params=pltpu.CompilerParams(
            dimension_semantics=("parallel", "parallel"),
            vmem_limit_bytes=_VMEM_LIMIT),
    )(x, x, x, scale.reshape(1, cin), shift.reshape(1, cin), w2d)

    # Exact (Chan-style) combine of per-tile (mean, M2) partials -> global BN stats.
    means = stats[:, :, 0, :]                       # (N, n_htiles, cout)
    m2s = stats[:, :, 1, :]
    cnt = tile_h * wp
    total = n * n_htiles * cnt
    mean = jnp.mean(means, axis=(0, 1))
    m2 = jnp.sum(m2s, axis=(0, 1)) + cnt * jnp.sum(jnp.square(means - mean), axis=(0, 1))
    var = m2 / total                                # biased variance (BN training mode)

    y4 = y.reshape(n, hp, wp, cout)                 # free contiguous unfold
    return y4, mean, var


# -------------------- final BN apply (scale/shift) + ReLU epilogue --------------------
def _bn_relu_kernel(y_ref, sc_ref, sh_ref, o_ref):
    wc = y_ref.shape[-1]
    sc = sc_ref[...].reshape(1, 1, wc)
    sh = sh_ref[...].reshape(1, 1, wc)
    o_ref[...] = jnp.maximum(y_ref[...] * sc + sh, 0.0)


def _bn_relu_epilogue(y_folded, scale, shift, wp):
    n, hp, wc = y_folded.shape
    sc = jnp.tile(scale, wp).reshape(1, wc)         # folded layout is (w-major, c-minor)
    sh = jnp.tile(shift, wp).reshape(1, wc)
    tile_h = _pick_tile_h(hp, 4 * wc * 5, _TILE_BUDGET)
    n_htiles = hp // tile_h
    return pl.pallas_call(
        _bn_relu_kernel,
        out_shape=jax.ShapeDtypeStruct((n, hp, wc), jnp.float32),
        grid=(n, n_htiles),
        in_specs=[pl.BlockSpec((1, tile_h, wc), lambda i, j: (i, j, 0)),
                  pl.BlockSpec((1, wc), lambda i, j: (0, 0)),
                  pl.BlockSpec((1, wc), lambda i, j: (0, 0))],
        out_specs=pl.BlockSpec((1, tile_h, wc), lambda i, j: (i, j, 0)),
        compiler_params=pltpu.CompilerParams(
            dimension_semantics=("parallel", "parallel"),
            vmem_limit_bytes=_VMEM_LIMIT),
    )(y_folded, sc, sh)


# ------------------------------- DownBlock -------------------------------
def down_block(x_nchw, params):
    x = jnp.transpose(x_nchw, (0, 2, 3, 1)).astype(jnp.float32)   # NCHW -> NHWC
    n, h, w, _ = x.shape
    assert h % 2 == 0 and w % 2 == 0, "MaxPool2d(2) requires even spatial dims"
    hp, wp = h // 2, w // 2

    cur = x                      # first conv reads the unpooled input (pool fused)
    scale = shift = None
    y = None
    cout = None
    for li, (wk, _b, g, be) in enumerate(params):
        # conv bias `_b` is unused on purpose: cancelled by training-mode BN.
        y, mean, var = _conv_layer(cur, wk, scale, shift,
                                   pool=(li == 0), act=(li > 0))
        scale = g * jax.lax.rsqrt(var + BN_EPS)
        shift = be - mean * scale
        cout = wk.shape[-1]
        cur = y                  # pre-BN activation; next layer fuses BN+ReLU at load

    out = _bn_relu_epilogue(y.reshape(n, hp, wp * cout), scale, shift, wp)
    out = out.reshape(n, hp, wp, cout)
    return jnp.transpose(out, (0, 3, 1, 2))          # NHWC -> NCHW


def init_params(key, in_channels, out_channels, nb_conv):
    params = []
    cin = in_channels
    for _ in range(nb_conv):
        key, k1, k2 = jax.random.split(key, 3)
        w = jax.random.normal(k1, (3, 3, cin, out_channels), jnp.float32) * 0.1
        b = jax.random.normal(k2, (out_channels,), jnp.float32) * 0.1
        g = jnp.ones((out_channels,), jnp.float32)    # BN weight
        be = jnp.zeros((out_channels,), jnp.float32)  # BN bias
        params.append((w, b, g, be))
        cin = out_channels
    return params


# ------------------------------ pure-JAX reference ------------------------------
def ref_down_block(x_nchw, params):
    x = jnp.transpose(x_nchw, (0, 2, 3, 1))
    n, h, w, c = x.shape
    x = jnp.max(x.reshape(n, h // 2, 2, w // 2, 2, c), axis=(2, 4))
    for (wk, b, g, be) in params:
        y = jax.lax.conv_general_dilated(
            x, wk, window_strides=(1, 1), padding=((1, 1), (1, 1)),
            dimension_numbers=("NHWC", "HWIO", "NHWC"))
        y = y + b
        mean = jnp.mean(y, axis=(0, 1, 2), keepdims=True)
        var = jnp.mean(jnp.square(y - mean), axis=(0, 1, 2), keepdims=True)
        y = (y - mean) * jax.lax.rsqrt(var + BN_EPS) * g + be
        x = jnp.maximum(y, 0.0)
    return jnp.transpose(x, (0, 3, 1, 2))


if __name__ == "__main__":
    in_channels, out_channels, nb_conv = 4, 8, 2
    N, H, W = 2, 16, 16

    key = jax.random.PRNGKey(0)
    key_x, key_p = jax.random.split(key)
    x = jax.random.normal(key_x, (N, in_channels, H, W), jnp.float32)  # NCHW input
    params = init_params(key_p, in_channels, out_channels, nb_conv)

    out = jax.block_until_ready(jax.jit(down_block)(x, params))
    ref = jax.block_until_ready(ref_down_block(x, params))

    assert out.shape == (N, out_channels, H // 2, W // 2), out.shape
    max_err = float(jnp.max(jnp.abs(out - ref)))
    assert jnp.allclose(out, ref, atol=1e-4, rtol=1e-4), max_err

    print("KERNEL_OK")
</pallas_src>

<mosaic_0001>
module attributes {stable_mosaic.version = 11 : i64} {
  func.func @_conv_kernel(%arg0: i32, %arg1: i32, %arg2: memref<1x16x16x4xf32, #tpu.memory_space<vmem>>, %arg3: memref<1x2x16x4xf32, #tpu.memory_space<vmem>>, %arg4: memref<1x2x16x4xf32, #tpu.memory_space<vmem>>, %arg5: memref<1x4xf32, #tpu.memory_space<vmem>>, %arg6: memref<1x4xf32, #tpu.memory_space<vmem>>, %arg7: memref<36x8xf32, #tpu.memory_space<vmem>>, %arg8: memref<1x8x64xf32, #tpu.memory_space<vmem>>, %arg9: memref<1x1x2x8xf32, #tpu.memory_space<vmem>>) attributes {dimension_semantics = [#tpu.dimension_semantics<parallel>, #tpu.dimension_semantics<parallel>], iteration_bounds = array<i64: 2, 1>, scalar_prefetch = 0 : i64, scratch_operands = 0 : i64, tpu.core_type = #tpu.core_type<tc>, window_params = [{transform_indices = @transform_0, window_bounds = array<i64: 1, 16, 16, 4>}, {transform_indices = @transform_1, window_bounds = array<i64: 1, 2, 16, 4>}, {transform_indices = @transform_2, window_bounds = array<i64: 1, 2, 16, 4>}, {pipeline_mode = #tpu.pipeline_mode<synchronous>, transform_indices = @transform_3, window_bounds = array<i64: 1, 4>}, {pipeline_mode = #tpu.pipeline_mode<synchronous>, transform_indices = @transform_4, window_bounds = array<i64: 1, 4>}, {pipeline_mode = #tpu.pipeline_mode<synchronous>, transform_indices = @transform_5, window_bounds = array<i64: 36, 8>}, {transform_indices = @transform_6, window_bounds = array<i64: 1, 8, 64>}, {transform_indices = @transform_7, window_bounds = array<i64: 1, 1, 2, 8>}]} {
    %c0 = arith.constant 0 : index
    %c0_0 = arith.constant 0 : index
    %c0_1 = arith.constant 0 : index
    %c0_2 = arith.constant 0 : index
    %0 = vector.load %arg2[%c0, %c0_0, %c0_1, %c0_2] : memref<1x16x16x4xf32, #tpu.memory_space<vmem>>, vector<1x16x16x4xf32>
    %1 = vector.shape_cast %0 : vector<1x16x16x4xf32> to vector<16x16x4xf32>
    %c0_3 = arith.constant 0 : index
    %c0_4 = arith.constant 0 : index
    %c0_5 = arith.constant 0 : index
    %c0_6 = arith.constant 0 : index
    %2 = vector.load %arg3[%c0_3, %c0_4, %c0_5, %c0_6] : memref<1x2x16x4xf32, #tpu.memory_space<vmem>>, vector<1x2x16x4xf32>
    %3 = vector.shape_cast %2 : vector<1x2x16x4xf32> to vector<2x16x4xf32>
    %c0_7 = arith.constant 0 : index
    %c0_8 = arith.constant 0 : index
    %c0_9 = arith.constant 0 : index
    %c0_10 = arith.constant 0 : index
    %4 = vector.load %arg4[%c0_7, %c0_8, %c0_9, %c0_10] : memref<1x2x16x4xf32, #tpu.memory_space<vmem>>, vector<1x2x16x4xf32>
    %5 = vector.shape_cast %4 : vector<1x2x16x4xf32> to vector<2x16x4xf32>
    %6 = vector.shape_cast %1 : vector<16x16x4xf32> to vector<8x2x16x4xf32>
    %7 = vector.extract_strided_slice %6 {offsets = [0, 0, 0, 0], sizes = [8, 1, 16, 4], strides = [1, 1, 1, 1]} : vector<8x2x16x4xf32> to vector<8x1x16x4xf32>
    %8 = vector.shape_cast %7 : vector<8x1x16x4xf32> to vector<8x16x4xf32>
    %9 = vector.extract_strided_slice %6 {offsets = [0, 1, 0, 0], sizes = [8, 1, 16, 4], strides = [1, 1, 1, 1]} : vector<8x2x16x4xf32> to vector<8x1x16x4xf32>
    %10 = vector.shape_cast %9 : vector<8x1x16x4xf32> to vector<8x16x4xf32>
    %11 = arith.maximumf %8, %10 : vector<8x16x4xf32>
    %12 = vector.shape_cast %11 : vector<8x16x4xf32> to vector<8x8x2x4xf32>
    %13 = vector.extract_strided_slice %12 {offsets = [0, 0, 0, 0], sizes = [8, 8, 1, 4], strides = [1, 1, 1, 1]} : vector<8x8x2x4xf32> to vector<8x8x1x4xf32>
    %14 = vector.shape_cast %13 : vector<8x8x1x4xf32> to vector<8x8x4xf32>
    %15 = vector.extract_strided_slice %12 {offsets = [0, 0, 1, 0], sizes = [8, 8, 1, 4], strides = [1, 1, 1, 1]} : vector<8x8x2x4xf32> to vector<8x8x1x4xf32>
    %16 = vector.shape_cast %15 : vector<8x8x1x4xf32> to vector<8x8x4xf32>
    %17 = arith.maximumf %14, %16 : vector<8x8x4xf32>
    %18 = vector.shape_cast %3 : vector<2x16x4xf32> to vector<1x2x16x4xf32>
    %19 = vector.extract_strided_slice %18 {offsets = [0, 0, 0, 0], sizes = [1, 1, 16, 4], strides = [1, 1, 1, 1]} : vector<1x2x16x4xf32> to vector<1x1x16x4xf32>
    %20 = vector.shape_cast %19 : vector<1x1x16x4xf32> to vector<1x16x4xf32>
    %21 = vector.extract_strided_slice %18 {offsets = [0, 1, 0, 0], sizes = [1, 1, 16, 4], strides = [1, 1, 1, 1]} : vector<1x2x16x4xf32> to vector<1x1x16x4xf32>
    %22 = vector.shape_cast %21 : vector<1x1x16x4xf32> to vector<1x16x4xf32>
    %23 = arith.maximumf %20, %22 : vector<1x16x4xf32>
    %24 = vector.shape_cast %23 : vector<1x16x4xf32> to vector<1x8x2x4xf32>
    %25 = vector.extract_strided_slice %24 {offsets = [0, 0, 0, 0], sizes = [1, 8, 1, 4], strides = [1, 1, 1, 1]} : vector<1x8x2x4xf32> to vector<1x8x1x4xf32>
    %26 = vector.shape_cast %25 : vector<1x8x1x4xf32> to vector<1x8x4xf32>
    %27 = vector.extract_strided_slice %24 {offsets = [0, 0, 1, 0], sizes = [1, 8, 1, 4], strides = [1, 1, 1, 1]} : vector<1x8x2x4xf32> to vector<1x8x1x4xf32>
    %28 = vector.shape_cast %27 : vector<1x8x1x4xf32> to vector<1x8x4xf32>
    %29 = arith.maximumf %26, %28 : vector<1x8x4xf32>
    %30 = vector.shape_cast %5 : vector<2x16x4xf32> to vector<1x2x16x4xf32>
    %31 = vector.extract_strided_slice %30 {offsets = [0, 0, 0, 0], sizes = [1, 1, 16, 4], strides = [1, 1, 1, 1]} : vector<1x2x16x4xf32> to vector<1x1x16x4xf32>
    %32 = vector.shape_cast %31 : vector<1x1x16x4xf32> to vector<1x16x4xf32>
    %33 = vector.extract_strided_slice %30 {offsets = [0, 1, 0, 0], sizes = [1, 1, 16, 4], strides = [1, 1, 1, 1]} : vector<1x2x16x4xf32> to vector<1x1x16x4xf32>
    %34 = vector.shape_cast %33 : vector<1x1x16x4xf32> to vector<1x16x4xf32>
    %35 = arith.maximumf %32, %34 : vector<1x16x4xf32>
    %36 = vector.shape_cast %35 : vector<1x16x4xf32> to vector<1x8x2x4xf32>
    %37 = vector.extract_strided_slice %36 {offsets = [0, 0, 0, 0], sizes = [1, 8, 1, 4], strides = [1, 1, 1, 1]} : vector<1x8x2x4xf32> to vector<1x8x1x4xf32>
    %38 = vector.shape_cast %37 : vector<1x8x1x4xf32> to vector<1x8x4xf32>
    %39 = vector.extract_strided_slice %36 {offsets = [0, 0, 1, 0], sizes = [1, 8, 1, 4], strides = [1, 1, 1, 1]} : vector<1x8x2x4xf32> to vector<1x8x1x4xf32>
    %40 = vector.shape_cast %39 : vector<1x8x1x4xf32> to vector<1x8x4xf32>
    %41 = arith.maximumf %38, %40 : vector<1x8x4xf32>
    %c0_i32 = arith.constant 0 : i32
    %42 = arith.cmpi sgt, %arg1, %c0_i32 : i32
    %43 = arith.extui %42 : i1 to i32
    %44 = arith.sitofp %43 : i32 to f32
    %45 = vector.broadcast %44 : f32 to vector<1x8x4xf32>
    %46 = arith.mulf %29, %45 : vector<1x8x4xf32>
    %c0_i32_11 = arith.constant 0 : i32
    %47 = arith.cmpi slt, %arg1, %c0_i32_11 : i32
    %48 = arith.extui %47 : i1 to i32
    %49 = arith.sitofp %48 : i32 to f32
    %50 = vector.broadcast %49 : f32 to vector<1x8x4xf32>
    %51 = arith.mulf %41, %50 : vector<1x8x4xf32>
    %52 = tpu.concatenate %46, %17, %51 in 0 : vector<1x8x4xf32>, vector<8x8x4xf32>, vector<1x8x4xf32> -> vector<10x8x4xf32>
    %cst = arith.constant 0.000000e+00 : f32
    %53 = vector.broadcast %cst : f32 to vector<10x1x4xf32>
    %54 = tpu.concatenate %53, %52, %53 in 1 : vector<10x1x4xf32>, vector<10x8x4xf32>, vector<10x1x4xf32> -> vector<10x10x4xf32>
    %55 = vector.extract_strided_slice %54 {offsets = [0, 0, 0], sizes = [10, 8, 4], strides = [1, 1, 1]} : vector<10x10x4xf32> to vector<10x8x4xf32>
    %56 = vector.extract_strided_slice %54 {offsets = [0, 1, 0], sizes = [10, 8, 4], strides = [1, 1, 1]} : vector<10x10x4xf32> to vector<10x8x4xf32>
    %57 = vector.extract_strided_slice %54 {offsets = [0, 2, 0], sizes = [10, 8, 4], strides = [1, 1, 1]} : vector<10x10x4xf32> to vector<10x8x4xf32>
    %58 = tpu.concatenate %55, %56, %57 in 2 : vector<10x8x4xf32>, vector<10x8x4xf32>, vector<10x8x4xf32> -> vector<10x8x12xf32>
    %59 = vector.extract_strided_slice %58 {offsets = [0, 0, 0], sizes = [8, 8, 12], strides = [1, 1, 1]} : vector<10x8x12xf32> to vector<8x8x12xf32>
    %60 = vector.extract_strided_slice %58 {offsets = [1, 0, 0], sizes = [8, 8, 12], strides = [1, 1, 1]} : vector<10x8x12xf32> to vector<8x8x12xf32>
    %61 = vector.extract_strided_slice %58 {offsets = [2, 0, 0], sizes = [8, 8, 12], strides = [1, 1, 1]} : vector<10x8x12xf32> to vector<8x8x12xf32>
    %62 = tpu.concatenate %59, %60, %61 in 2 : vector<8x8x12xf32>, vector<8x8x12xf32>, vector<8x8x12xf32> -> vector<8x8x36xf32>
    %63 = vector.shape_cast %62 : vector<8x8x36xf32> to vector<64x36xf32>
    %c0_12 = arith.constant 0 : index
    %c0_13 = arith.constant 0 : index
    %64 = vector.load %arg7[%c0_12, %c0_13] : memref<36x8xf32, #tpu.memory_space<vmem>>, vector<36x8xf32>
    %cst_14 = arith.constant dense<0.000000e+00> : vector<64x8xf32>
    %65 = tpu.matmul %63, %64, %cst_14 {dimension_numbers = #tpu.dot_dimension_numbers<[1], [0], [0], [1], [0, 0, 1, 1], [], []>} : vector<64x36xf32>, vector<36x8xf32>, vector<64x8xf32> -> vector<64x8xf32>
    %66 = vector.shape_cast %65 : vector<64x8xf32> to vector<8x8x8xf32>
    %67 = vector.extract_strided_slice %66 {offsets = [0, 0, 0], sizes = [8, 1, 8], strides = [1, 1, 1]} : vector<8x8x8xf32> to vector<8x1x8xf32>
    %68 = vector.shape_cast %67 : vector<8x1x8xf32> to vector<8x8xf32>
    %69 = vector.extract_strided_slice %66 {offsets = [0, 1, 0], sizes = [8, 1, 8], strides = [1, 1, 1]} : vector<8x8x8xf32> to vector<8x1x8xf32>
    %70 = vector.shape_cast %69 : vector<8x1x8xf32> to vector<8x8xf32>
    %71 = vector.extract_strided_slice %66 {offsets = [0, 2, 0], sizes = [8, 1, 8], strides = [1, 1, 1]} : vector<8x8x8xf32> to vector<8x1x8xf32>
    %72 = vector.shape_cast %71 : vector<8x1x8xf32> to vector<8x8xf32>
    %73 = vector.extract_strided_slice %66 {offsets = [0, 3, 0], sizes = [8, 1, 8], strides = [1, 1, 1]} : vector<8x8x8xf32> to vector<8x1x8xf32>
    %74 = vector.shape_cast %73 : vector<8x1x8xf32> to vector<8x8xf32>
    %75 = vector.extract_strided_slice %66 {offsets = [0, 4, 0], sizes = [8, 1, 8], strides = [1, 1, 1]} : vector<8x8x8xf32> to vector<8x1x8xf32>
    %76 = vector.shape_cast %75 : vector<8x1x8xf32> to vector<8x8xf32>
    %77 = vector.extract_strided_slice %66 {offsets = [0, 5, 0], sizes = [8, 1, 8], strides = [1, 1, 1]} : vector<8x8x8xf32> to vector<8x1x8xf32>
    %78 = vector.shape_cast %77 : vector<8x1x8xf32> to vector<8x8xf32>
    %79 = vector.extract_strided_slice %66 {offsets = [0, 6, 0], sizes = [8, 1, 8], strides = [1, 1, 1]} : vector<8x8x8xf32> to vector<8x1x8xf32>
    %80 = vector.shape_cast %79 : vector<8x1x8xf32> to vector<8x8xf32>
    %81 = vector.extract_strided_slice %66 {offsets = [0, 7, 0], sizes = [8, 1, 8], strides = [1, 1, 1]} : vector<8x8x8xf32> to vector<8x1x8xf32>
    %82 = vector.shape_cast %81 : vector<8x1x8xf32> to vector<8x8xf32>
    %83 = tpu.concatenate %68, %70, %72, %74, %76, %78, %80, %82 in 1 : vector<8x8xf32>, vector<8x8xf32>, vector<8x8xf32>, vector<8x8xf32>, vector<8x8xf32>, vector<8x8xf32>, vector<8x8xf32>, vector<8x8xf32> -> vector<8x64xf32>
    %84 = vector.shape_cast %83 : vector<8x64xf32> to vector<1x8x64xf32>
    %c0_15 = arith.constant 0 : index
    %c0_16 = arith.constant 0 : index
    %c0_17 = arith.constant 0 : index
    %85 = vector.load %arg8[%c0_15, %c0_16, %c0_17] : memref<1x8x64xf32, #tpu.memory_space<vmem>>, vector<1x8x64xf32>
    tpu.vector_store %arg8[%c0_15, %c0_16, %c0_17], %84 {strides = array<i32>} : memref<1x8x64xf32, #tpu.memory_space<vmem>>, vector<1x8x64xf32>,
    %cst_18 = arith.constant dense<0.000000e+00> : vector<8xf32>
    %86 = vector.multi_reduction <add>, %65, %cst_18 [0] : vector<64x8xf32> to vector<8xf32>
    %87 = vector.shape_cast %86 : vector<8xf32> to vector<1x8xf32>
    %cst_19 = arith.constant 1.562500e-02 : f32
    %88 = vector.broadcast %cst_19 : f32 to vector<1x8xf32>
    %89 = arith.mulf %87, %88 : vector<1x8xf32>
    %90 = vector.broadcast %89 : vector<1x8xf32> to vector<64x8xf32>
    %91 = arith.subf %65, %90 : vector<64x8xf32>
    %92 = arith.mulf %91, %91 : vector<64x8xf32>
    %cst_20 = arith.constant dense<0.000000e+00> : vector<8xf32>
    %93 = vector.multi_reduction <add>, %92, %cst_20 [0] : vector<64x8xf32> to vector<8xf32>
    %94 = vector.shape_cast %93 : vector<8xf32> to vector<1x8xf32>
    %95 = tpu.concatenate %89, %94 in 0 : vector<1x8xf32>, vector<1x8xf32> -> vector<2x8xf32>
    %96 = vector.shape_cast %95 : vector<2x8xf32> to vector<1x1x2x8xf32>
    %c0_21 = arith.constant 0 : index
    %c0_22 = arith.constant 0 : index
    %c0_23 = arith.constant 0 : index
    %c0_24 = arith.constant 0 : index
    %97 = vector.load %arg9[%c0_21, %c0_22, %c0_23, %c0_24] : memref<1x1x2x8xf32, #tpu.memory_space<vmem>>, vector<1x1x2x8xf32>
    tpu.vector_store %arg9[%c0_21, %c0_22, %c0_23, %c0_24], %96 {strides = array<i32>} : memref<1x1x2x8xf32, #tpu.memory_space<vmem>>, vector<1x1x2x8xf32>,
    return
  }
  func.func @transform_0(%arg0: i32, %arg1: i32) -> (i32, i32, i32, i32) {
    %c0_i32 = arith.constant 0 : i32
    %c0_i32_0 = arith.constant 0 : i32
    %c0_i32_1 = arith.constant 0 : i32
    return %arg0, %arg1, %c0_i32, %c0_i32_0 : i32, i32, i32, i32
  }
  func.func @transform_1(%arg0: i32, %arg1: i32) -> (i32, i32, i32, i32) {
    %c8_i32 = arith.constant 8 : i32
    %0 = arith.muli %arg1, %c8_i32 : i32
    %c1_i32 = arith.constant 1 : i32
    %1 = arith.subi %0, %c1_i32 : i32
    %c0_i32 = arith.constant 0 : i32
    %2 = arith.maxsi %1, %c0_i32 : i32
    %c0_i32_0 = arith.constant 0 : i32
    %c0_i32_1 = arith.constant 0 : i32
    %c0_i32_2 = arith.constant 0 : i32
    return %arg0, %2, %c0_i32_0, %c0_i32_1 : i32, i32, i32, i32
  }
  func.func @transform_2(%arg0: i32, %arg1: i32) -> (i32, i32, i32, i32) {
    %c8_i32 = arith.constant 8 : i32
    %0 = arith.muli %arg1, %c8_i32 : i32
    %c8_i32_0 = arith.constant 8 : i32
    %1 = arith.addi %0, %c8_i32_0 : i32
    %c7_i32 = arith.constant 7 : i32
    %2 = arith.minsi %1, %c7_i32 : i32
    %c0_i32 = arith.constant 0 : i32
    %c0_i32_1 = arith.constant 0 : i32
    %c0_i32_2 = arith.constant 0 : i32
    return %arg0, %2, %c0_i32, %c0_i32_1 : i32, i32, i32, i32
  }
  func.func @transform_3(%arg0: i32, %arg1: i32) -> (i32, i32) {
    %c0_i32 = arith.constant 0 : i32
    %c0_i32_0 = arith.constant 0 : i32
    %c0_i32_1 = arith.constant 0 : i32
    return %c0_i32, %c0_i32_0 : i32, i32
  }
  func.func @transform_4(%arg0: i32, %arg1: i32) -> (i32, i32) {
    %c0_i32 = arith.constant 0 : i32
    %c0_i32_0 = arith.constant 0 : i32
    %c0_i32_1 = arith.constant 0 : i32
    return %c0_i32, %c0_i32_0 : i32, i32
  }
  func.func @transform_5(%arg0: i32, %arg1: i32) -> (i32, i32) {
    %c0_i32 = arith.constant 0 : i32
    %c0_i32_0 = arith.constant 0 : i32
    %c0_i32_1 = arith.constant 0 : i32
    return %c0_i32, %c0_i32_0 : i32, i32
  }
  func.func @transform_6(%arg0: i32, %arg1: i32) -> (i32, i32, i32) {
    %c0_i32 = arith.constant 0 : i32
    %c0_i32_0 = arith.constant 0 : i32
    return %arg0, %arg1, %c0_i32 : i32, i32, i32
  }
  func.func @transform_7(%arg0: i32, %arg1: i32) -> (i32, i32, i32, i32) {
    %c0_i32 = arith.constant 0 : i32
    %c0_i32_0 = arith.constant 0 : i32
    %c0_i32_1 = arith.constant 0 : i32
    return %arg0, %arg1, %c0_i32, %c0_i32_0 : i32, i32, i32, i32
  }
}

module attributes {stable_mosaic.version = 11 : i64} {
  func.func @_conv_kernel(%arg0: i32, %arg1: i32, %arg2: memref<1x8x8x8xf32, #tpu.memory_space<vmem>>, %arg3: memref<1x1x8x8xf32, #tpu.memory_space<vmem>>, %arg4: memref<1x1x8x8xf32, #tpu.memory_space<vmem>>, %arg5: memref<1x8xf32, #tpu.memory_space<vmem>>, %arg6: memref<1x8xf32, #tpu.memory_space<vmem>>, %arg7: memref<72x8xf32, #tpu.memory_space<vmem>>, %arg8: memref<1x8x64xf32, #tpu.memory_space<vmem>>, %arg9: memref<1x1x2x8xf32, #tpu.memory_space<vmem>>) attributes {dimension_semantics = [#tpu.dimension_semantics<parallel>, #tpu.dimension_semantics<parallel>], iteration_bounds = array<i64: 2, 1>, scalar_prefetch = 0 : i64, scratch_operands = 0 : i64, tpu.core_type = #tpu.core_type<tc>, window_params = [{transform_indices = @transform_0, window_bounds = array<i64: 1, 8, 8, 8>}, {transform_indices = @transform_1, window_bounds = array<i64: 1, 1, 8, 8>}, {transform_indices = @transform_2, window_bounds = array<i64: 1, 1, 8, 8>}, {pipeline_mode = #tpu.pipeline_mode<synchronous>, transform_indices = @transform_3, window_bounds = array<i64: 1, 8>}, {pipeline_mode = #tpu.pipeline_mode<synchronous>, transform_indices = @transform_4, window_bounds = array<i64: 1, 8>}, {pipeline_mode = #tpu.pipeline_mode<synchronous>, transform_indices = @transform_5, window_bounds = array<i64: 72, 8>}, {transform_indices = @transform_6, window_bounds = array<i64: 1, 8, 64>}, {transform_indices = @transform_7, window_bounds = array<i64: 1, 1, 2, 8>}]} {
    %c0 = arith.constant 0 : index
    %c0_0 = arith.constant 0 : index
    %c0_1 = arith.constant 0 : index
    %c0_2 = arith.constant 0 : index
    %0 = vector.load %arg2[%c0, %c0_0, %c0_1, %c0_2] : memref<1x8x8x8xf32, #tpu.memory_space<vmem>>, vector<1x8x8x8xf32>
    %1 = vector.shape_cast %0 : vector<1x8x8x8xf32> to vector<8x8x8xf32>
    %c0_3 = arith.constant 0 : index
    %c0_4 = arith.constant 0 : index
    %c0_5 = arith.constant 0 : index
    %c0_6 = arith.constant 0 : index
    %2 = vector.load %arg3[%c0_3, %c0_4, %c0_5, %c0_6] : memref<1x1x8x8xf32, #tpu.memory_space<vmem>>, vector<1x1x8x8xf32>
    %3 = vector.shape_cast %2 : vector<1x1x8x8xf32> to vector<1x8x8xf32>
    %c0_7 = arith.constant 0 : index
    %c0_8 = arith.constant 0 : index
    %c0_9 = arith.constant 0 : index
    %c0_10 = arith.constant 0 : index
    %4 = vector.load %arg4[%c0_7, %c0_8, %c0_9, %c0_10] : memref<1x1x8x8xf32, #tpu.memory_space<vmem>>, vector<1x1x8x8xf32>
    %5 = vector.shape_cast %4 : vector<1x1x8x8xf32> to vector<1x8x8xf32>
    %c0_11 = arith.constant 0 : index
    %c0_12 = arith.constant 0 : index
    %6 = vector.load %arg5[%c0_11, %c0_12] : memref<1x8xf32, #tpu.memory_space<vmem>>, vector<1x8xf32>
    %7 = vector.shape_cast %6 : vector<1x8xf32> to vector<1x1x8xf32>
    %c0_13 = arith.constant 0 : index
    %c0_14 = arith.constant 0 : index
    %8 = vector.load %arg6[%c0_13, %c0_14] : memref<1x8xf32, #tpu.memory_space<vmem>>, vector<1x8xf32>
    %9 = vector.shape_cast %8 : vector<1x8xf32> to vector<1x1x8xf32>
    %10 = vector.broadcast %7 : vector<1x1x8xf32> to vector<8x8x8xf32>
    %11 = arith.mulf %1, %10 : vector<8x8x8xf32>
    %12 = vector.broadcast %9 : vector<1x1x8xf32> to vector<8x8x8xf32>
    %13 = arith.addf %11, %12 : vector<8x8x8xf32>
    %cst = arith.constant 0.000000e+00 : f32
    %14 = vector.broadcast %cst : f32 to vector<8x8x8xf32>
    %15 = arith.maximumf %13, %14 : vector<8x8x8xf32>
    %16 = vector.broadcast %7 : vector<1x1x8xf32> to vector<1x8x8xf32>
    %17 = arith.mulf %3, %16 : vector<1x8x8xf32>
    %18 = vector.broadcast %9 : vector<1x1x8xf32> to vector<1x8x8xf32>
    %19 = arith.addf %17, %18 : vector<1x8x8xf32>
    %cst_15 = arith.constant 0.000000e+00 : f32
    %20 = vector.broadcast %cst_15 : f32 to vector<1x8x8xf32>
    %21 = arith.maximumf %19, %20 : vector<1x8x8xf32>
    %22 = vector.broadcast %7 : vector<1x1x8xf32> to vector<1x8x8xf32>
    %23 = arith.mulf %5, %22 : vector<1x8x8xf32>
    %24 = vector.broadcast %9 : vector<1x1x8xf32> to vector<1x8x8xf32>
    %25 = arith.addf %23, %24 : vector<1x8x8xf32>
    %cst_16 = arith.constant 0.000000e+00 : f32
    %26 = vector.broadcast %cst_16 : f32 to vector<1x8x8xf32>
    %27 = arith.maximumf %25, %26 : vector<1x8x8xf32>
    %c0_i32 = arith.constant 0 : i32
    %28 = arith.cmpi sgt, %arg1, %c0_i32 : i32
    %29 = arith.extui %28 : i1 to i32
    %30 = arith.sitofp %29 : i32 to f32
    %31 = vector.broadcast %30 : f32 to vector<1x8x8xf32>
    %32 = arith.mulf %21, %31 : vector<1x8x8xf32>
    %c0_i32_17 = arith.constant 0 : i32
    %33 = arith.cmpi slt, %arg1, %c0_i32_17 : i32
    %34 = arith.extui %33 : i1 to i32
    %35 = arith.sitofp %34 : i32 to f32
    %36 = vector.broadcast %35 : f32 to vector<1x8x8xf32>
    %37 = arith.mulf %27, %36 : vector<1x8x8xf32>
    %38 = tpu.concatenate %32, %15, %37 in 0 : vector<1x8x8xf32>, vector<8x8x8xf32>, vector<1x8x8xf32> -> vector<10x8x8xf32>
    %cst_18 = arith.constant 0.000000e+00 : f32
    %39 = vector.broadcast %cst_18 : f32 to vector<10x1x8xf32>
    %40 = tpu.concatenate %39, %38, %39 in 1 : vector<10x1x8xf32>, vector<10x8x8xf32>, vector<10x1x8xf32> -> vector<10x10x8xf32>
    %41 = vector.extract_strided_slice %40 {offsets = [0, 0, 0], sizes = [10, 8, 8], strides = [1, 1, 1]} : vector<10x10x8xf32> to vector<10x8x8xf32>
    %42 = vector.extract_strided_slice %40 {offsets = [0, 1, 0], sizes = [10, 8, 8], strides = [1, 1, 1]} : vector<10x10x8xf32> to vector<10x8x8xf32>
    %43 = vector.extract_strided_slice %40 {offsets = [0, 2, 0], sizes = [10, 8, 8], strides = [1, 1, 1]} : vector<10x10x8xf32> to vector<10x8x8xf32>
    %44 = tpu.concatenate %41, %42, %43 in 2 : vector<10x8x8xf32>, vector<10x8x8xf32>, vector<10x8x8xf32> -> vector<10x8x24xf32>
    %45 = vector.extract_strided_slice %44 {offsets = [0, 0, 0], sizes = [8, 8, 24], strides = [1, 1, 1]} : vector<10x8x24xf32> to vector<8x8x24xf32>
    %46 = vector.extract_strided_slice %44 {offsets = [1, 0, 0], sizes = [8, 8, 24], strides = [1, 1, 1]} : vector<10x8x24xf32> to vector<8x8x24xf32>
    %47 = vector.extract_strided_slice %44 {offsets = [2, 0, 0], sizes = [8, 8, 24], strides = [1, 1, 1]} : vector<10x8x24xf32> to vector<8x8x24xf32>
    %48 = tpu.concatenate %45, %46, %47 in 2 : vector<8x8x24xf32>, vector<8x8x24xf32>, vector<8x8x24xf32> -> vector<8x8x72xf32>
    %49 = vector.shape_cast %48 : vector<8x8x72xf32> to vector<64x72xf32>
    %c0_19 = arith.constant 0 : index
    %c0_20 = arith.constant 0 : index
    %50 = vector.load %arg7[%c0_19, %c0_20] : memref<72x8xf32, #tpu.memory_space<vmem>>, vector<72x8xf32>
    %cst_21 = arith.constant dense<0.000000e+00> : vector<64x8xf32>
    %51 = tpu.matmul %49, %50, %cst_21 {dimension_numbers = #tpu.dot_dimension_numbers<[1], [0], [0], [1], [0, 0, 1, 1], [], []>} : vector<64x72xf32>, vector<72x8xf32>, vector<64x8xf32> -> vector<64x8xf32>
    %52 = vector.shape_cast %51 : vector<64x8xf32> to vector<8x8x8xf32>
    %53 = vector.extract_strided_slice %52 {offsets = [0, 0, 0], sizes = [8, 1, 8], strides = [1, 1, 1]} : vector<8x8x8xf32> to vector<8x1x8xf32>
    %54 = vector.shape_cast %53 : vector<8x1x8xf32> to vector<8x8xf32>
    %55 = vector.extract_strided_slice %52 {offsets = [0, 1, 0], sizes = [8, 1, 8], strides = [1, 1, 1]} : vector<8x8x8xf32> to vector<8x1x8xf32>
    %56 = vector.shape_cast %55 : vector<8x1x8xf32> to vector<8x8xf32>
    %57 = vector.extract_strided_slice %52 {offsets = [0, 2, 0], sizes = [8, 1, 8], strides = [1, 1, 1]} : vector<8x8x8xf32> to vector<8x1x8xf32>
    %58 = vector.shape_cast %57 : vector<8x1x8xf32> to vector<8x8xf32>
    %59 = vector.extract_strided_slice %52 {offsets = [0, 3, 0], sizes = [8, 1, 8], strides = [1, 1, 1]} : vector<8x8x8xf32> to vector<8x1x8xf32>
    %60 = vector.shape_cast %59 : vector<8x1x8xf32> to vector<8x8xf32>
    %61 = vector.extract_strided_slice %52 {offsets = [0, 4, 0], sizes = [8, 1, 8], strides = [1, 1, 1]} : vector<8x8x8xf32> to vector<8x1x8xf32>
    %62 = vector.shape_cast %61 : vector<8x1x8xf32> to vector<8x8xf32>
    %63 = vector.extract_strided_slice %52 {offsets = [0, 5, 0], sizes = [8, 1, 8], strides = [1, 1, 1]} : vector<8x8x8xf32> to vector<8x1x8xf32>
    %64 = vector.shape_cast %63 : vector<8x1x8xf32> to vector<8x8xf32>
    %65 = vector.extract_strided_slice %52 {offsets = [0, 6, 0], sizes = [8, 1, 8], strides = [1, 1, 1]} : vector<8x8x8xf32> to vector<8x1x8xf32>
    %66 = vector.shape_cast %65 : vector<8x1x8xf32> to vector<8x8xf32>
    %67 = vector.extract_strided_slice %52 {offsets = [0, 7, 0], sizes = [8, 1, 8], strides = [1, 1, 1]} : vector<8x8x8xf32> to vector<8x1x8xf32>
    %68 = vector.shape_cast %67 : vector<8x1x8xf32> to vector<8x8xf32>
    %69 = tpu.concatenate %54, %56, %58, %60, %62, %64, %66, %68 in 1 : vector<8x8xf32>, vector<8x8xf32>, vector<8x8xf32>, vector<8x8xf32>, vector<8x8xf32>, vector<8x8xf32>, vector<8x8xf32>, vector<8x8xf32> -> vector<8x64xf32>
    %70 = vector.shape_cast %69 : vector<8x64xf32> to vector<1x8x64xf32>
    %c0_22 = arith.constant 0 : index
    %c0_23 = arith.constant 0 : index
    %c0_24 = arith.constant 0 : index
    %71 = vector.load %arg8[%c0_22, %c0_23, %c0_24] : memref<1x8x64xf32, #tpu.memory_space<vmem>>, vector<1x8x64xf32>
    tpu.vector_store %arg8[%c0_22, %c0_23, %c0_24], %70 {strides = array<i32>} : memref<1x8x64xf32, #tpu.memory_space<vmem>>, vector<1x8x64xf32>,
    %cst_25 = arith.constant dense<0.000000e+00> : vector<8xf32>
    %72 = vector.multi_reduction <add>, %51, %cst_25 [0] : vector<64x8xf32> to vector<8xf32>
    %73 = vector.shape_cast %72 : vector<8xf32> to vector<1x8xf32>
    %cst_26 = arith.constant 1.562500e-02 : f32
    %74 = vector.broadcast %cst_26 : f32 to vector<1x8xf32>
    %75 = arith.mulf %73, %74 : vector<1x8xf32>
    %76 = vector.broadcast %75 : vector<1x8xf32> to vector<64x8xf32>
    %77 = arith.subf %51, %76 : vector<64x8xf32>
    %78 = arith.mulf %77, %77 : vector<64x8xf32>
    %cst_27 = arith.constant dense<0.000000e+00> : vector<8xf32>
    %79 = vector.multi_reduction <add>, %78, %cst_27 [0] : vector<64x8xf32> to vector<8xf32>
    %80 = vector.shape_cast %79 : vector<8xf32> to vector<1x8xf32>
    %81 = tpu.concatenate %75, %80 in 0 : vector<1x8xf32>, vector<1x8xf32> -> vector<2x8xf32>
    %82 = vector.shape_cast %81 : vector<2x8xf32> to vector<1x1x2x8xf32>
    %c0_28 = arith.constant 0 : index
    %c0_29 = arith.constant 0 : index
    %c0_30 = arith.constant 0 : index
    %c0_31 = arith.constant 0 : index
    %83 = vector.load %arg9[%c0_28, %c0_29, %c0_30, %c0_31] : memref<1x1x2x8xf32, #tpu.memory_space<vmem>>, vector<1x1x2x8xf32>
    tpu.vector_store %arg9[%c0_28, %c0_29, %c0_30, %c0_31], %82 {strides = array<i32>} : memref<1x1x2x8xf32, #tpu.memory_space<vmem>>, vector<1x1x2x8xf32>,
    return
  }
  func.func @transform_0(%arg0: i32, %arg1: i32) -> (i32, i32, i32, i32) {
    %c0_i32 = arith.constant 0 : i32
    %c0_i32_0 = arith.constant 0 : i32
    %c0_i32_1 = arith.constant 0 : i32
    return %arg0, %arg1, %c0_i32, %c0_i32_0 : i32, i32, i32, i32
  }
  func.func @transform_1(%arg0: i32, %arg1: i32) -> (i32, i32, i32, i32) {
    %c8_i32 = arith.constant 8 : i32
    %0 = arith.muli %arg1, %c8_i32 : i32
    %c1_i32 = arith.constant 1 : i32
    %1 = arith.subi %0, %c1_i32 : i32
    %c0_i32 = arith.constant 0 : i32
    %2 = arith.maxsi %1, %c0_i32 : i32
    %c0_i32_0 = arith.constant 0 : i32
    %c0_i32_1 = arith.constant 0 : i32
    %c0_i32_2 = arith.constant 0 : i32
    return %arg0, %2, %c0_i32_0, %c0_i32_1 : i32, i32, i32, i32
  }
  func.func @transform_2(%arg0: i32, %arg1: i32) -> (i32, i32, i32, i32) {
    %c8_i32 = arith.constant 8 : i32
    %0 = arith.muli %arg1, %c8_i32 : i32
    %c8_i32_0 = arith.constant 8 : i32
    %1 = arith.addi %0, %c8_i32_0 : i32
    %c7_i32 = arith.constant 7 : i32
    %2 = arith.minsi %1, %c7_i32 : i32
    %c0_i32 = arith.constant 0 : i32
    %c0_i32_1 = arith.constant 0 : i32
    %c0_i32_2 = arith.constant 0 : i32
    return %arg0, %2, %c0_i32, %c0_i32_1 : i32, i32, i32, i32
  }
  func.func @transform_3(%arg0: i32, %arg1: i32) -> (i32, i32) {
    %c0_i32 = arith.constant 0 : i32
    %c0_i32_0 = arith.constant 0 : i32
    %c0_i32_1 = arith.constant 0 : i32
    return %c0_i32, %c0_i32_0 : i32, i32
  }
  func.func @transform_4(%arg0: i32, %arg1: i32) -> (i32, i32) {
    %c0_i32 = arith.constant 0 : i32
    %c0_i32_0 = arith.constant 0 : i32
    %c0_i32_1 = arith.constant 0 : i32
    return %c0_i32, %c0_i32_0 : i32, i32
  }
  func.func @transform_5(%arg0: i32, %arg1: i32) -> (i32, i32) {
    %c0_i32 = arith.constant 0 : i32
    %c0_i32_0 = arith.constant 0 : i32
    %c0_i32_1 = arith.constant 0 : i32
    return %c0_i32, %c0_i32_0 : i32, i32
  }
  func.func @transform_6(%arg0: i32, %arg1: i32) -> (i32, i32, i32) {
    %c0_i32 = arith.constant 0 : i32
    %c0_i32_0 = arith.constant 0 : i32
    return %arg0, %arg1, %c0_i32 : i32, i32, i32
  }
  func.func @transform_7(%arg0: i32, %arg1: i32) -> (i32, i32, i32, i32) {
    %c0_i32 = arith.constant 0 : i32
    %c0_i32_0 = arith.constant 0 : i32
    %c0_i32_1 = arith.constant 0 : i32
    return %arg0, %arg1, %c0_i32, %c0_i32_0 : i32, i32, i32, i32
  }
}

module attributes {stable_mosaic.version = 11 : i64} {
  func.func @_bn_relu_kernel(%arg0: i32, %arg1: i32, %arg2: memref<1x8x64xf32, #tpu.memory_space<vmem>>, %arg3: memref<1x64xf32, #tpu.memory_space<vmem>>, %arg4: memref<1x64xf32, #tpu.memory_space<vmem>>, %arg5: memref<1x8x64xf32, #tpu.memory_space<vmem>>) attributes {dimension_semantics = [#tpu.dimension_semantics<parallel>, #tpu.dimension_semantics<parallel>], iteration_bounds = array<i64: 2, 1>, scalar_prefetch = 0 : i64, scratch_operands = 0 : i64, tpu.core_type = #tpu.core_type<tc>, window_params = [{transform_indices = @transform_0, window_bounds = array<i64: 1, 8, 64>}, {pipeline_mode = #tpu.pipeline_mode<synchronous>, transform_indices = @transform_1, window_bounds = array<i64: 1, 64>}, {pipeline_mode = #tpu.pipeline_mode<synchronous>, transform_indices = @transform_2, window_bounds = array<i64: 1, 64>}, {transform_indices = @transform_3, window_bounds = array<i64: 1, 8, 64>}]} {
    %c0 = arith.constant 0 : index
    %c0_0 = arith.constant 0 : index
    %0 = vector.load %arg3[%c0, %c0_0] : memref<1x64xf32, #tpu.memory_space<vmem>>, vector<1x64xf32>
    %1 = vector.shape_cast %0 : vector<1x64xf32> to vector<1x1x64xf32>
    %c0_1 = arith.constant 0 : index
    %c0_2 = arith.constant 0 : index
    %2 = vector.load %arg4[%c0_1, %c0_2] : memref<1x64xf32, #tpu.memory_space<vmem>>, vector<1x64xf32>
    %3 = vector.shape_cast %2 : vector<1x64xf32> to vector<1x1x64xf32>
    %c0_3 = arith.constant 0 : index
    %c0_4 = arith.constant 0 : index
    %c0_5 = arith.constant 0 : index
    %4 = vector.load %arg2[%c0_3, %c0_4, %c0_5] : memref<1x8x64xf32, #tpu.memory_space<vmem>>, vector<1x8x64xf32>
    %5 = vector.broadcast %1 : vector<1x1x64xf32> to vector<1x8x64xf32>
    %6 = arith.mulf %4, %5 : vector<1x8x64xf32>
    %7 = vector.broadcast %3 : vector<1x1x64xf32> to vector<1x8x64xf32>
    %8 = arith.addf %6, %7 : vector<1x8x64xf32>
    %cst = arith.constant 0.000000e+00 : f32
    %9 = vector.broadcast %cst : f32 to vector<1x8x64xf32>
    %10 = arith.maximumf %8, %9 : vector<1x8x64xf32>
    %c0_6 = arith.constant 0 : index
    %c0_7 = arith.constant 0 : index
    %c0_8 = arith.constant 0 : index
    %11 = vector.load %arg5[%c0_6, %c0_7, %c0_8] : memref<1x8x64xf32, #tpu.memory_space<vmem>>, vector<1x8x64xf32>
    tpu.vector_store %arg5[%c0_6, %c0_7, %c0_8], %10 {strides = array<i32>} : memref<1x8x64xf32, #tpu.memory_space<vmem>>, vector<1x8x64xf32>,
    return
  }
  func.func @transform_0(%arg0: i32, %arg1: i32) -> (i32, i32, i32) {
    %c0_i32 = arith.constant 0 : i32
    %c0_i32_0 = arith.constant 0 : i32
    return %arg0, %arg1, %c0_i32 : i32, i32, i32
  }
  func.func @transform_1(%arg0: i32, %arg1: i32) -> (i32, i32) {
    %c0_i32 = arith.constant 0 : i32
    %c0_i32_0 = arith.constant 0 : i32
    %c0_i32_1 = arith.constant 0 : i32
    return %c0_i32, %c0_i32_0 : i32, i32
  }
  func.func @transform_2(%arg0: i32, %arg1: i32) -> (i32, i32) {
    %c0_i32 = arith.constant 0 : i32
    %c0_i32_0 = arith.constant 0 : i32
    %c0_i32_1 = arith.constant 0 : i32
    return %c0_i32, %c0_i32_0 : i32, i32
  }
  func.func @transform_3(%arg0: i32, %arg1: i32) -> (i32, i32, i32) {
    %c0_i32 = arith.constant 0 : i32
    %c0_i32_0 = arith.constant 0 : i32
    return %arg0, %arg1, %c0_i32 : i32, i32, i32
  }
}

</mosaic_0001>

<llo_original>
// kernel: tile.18
$region0: #{tile.18}
  #allocation0 [shape = 's32[1]{0}', space=sflag, size = 0x4, scoped, tag = 'scoped memory for tile.18']
  %s0 = inlined_call_operand.vmem [shape: f32[8], index: 0, kind: input, shape index: {}]
  %s1 = inlined_call_operand.vmem [shape: f32[8,8], index: 1, kind: output, shape index: {}]
  // Predicated region
  $region2: #{tile.18} parent=0 // pred_check
    _
  $region3: #{tile.18} parent=0 // pred_check_branch
    %3 = sbr.rel (0) target = $region5
  $region4: #{tile.18} parent=0 // pred_region
    _
  $region5: #{tile.18} parent=0 // pred_fallthru
    _
  %v4 = vld [vmem:[%s0] ss:$0 sm:$0xff]
  %5 = vst [vmem:[%s1] sm:$0xff] %v4

// kernel: tile.19
$region0: #{tile.19}
  %s0 = inlined_call_operand.vmem [shape: f32[8,8], index: 0, kind: input, shape index: {}]
  %s1 = inlined_call_operand.vmem [shape: f32[1,64], index: 1, kind: output, shape index: {}]
  $region1: #{tile.19} parent=0
    #allocation0 [shape = 'u8[4096]{0}', space=vmem, size = 0x1000, scoped, tag = 'scoped mem for output reshape']
    %v2 = vld [vmem:[%s0] sm:$0x1]
    %vm3 = vcmask 64512
    %4 = vst.msk [vmem:[#allocation0] sm:$0x1] %vm3, %v2
    %s5 = scalar_lea.vmem %s0, 7
    %v6 = vld [vmem:[%s5] sm:$0x1]
    %7 = vrot.lane.b32.xlu0 %v6, 56
    %v8 = vpop.permute.xlu0 %7
    %vm9 = vcmask 523712
    %10 = vst.msk [vmem:[#allocation0] sm:$0x1] %vm9, %v8
    %s11 = scalar_lea.vmem %s0, 6
    %v12 = vld [vmem:[%s11] sm:$0x1]
    %13 = vrot.lane.b32.xlu0 %v12, 48
    %v14 = vpop.permute.xlu0 %13
    %vm15 = vcmask 458112
    %16 = vst.msk [vmem:[#allocation0] sm:$0x1] %vm15, %v14
    %s17 = scalar_lea.vmem %s0, 5
    %v18 = vld [vmem:[%s17] sm:$0x1]
    %19 = vrot.lane.b32.xlu0 %v18, 40
    %v20 = vpop.permute.xlu0 %19
    %vm21 = vcmask 392512
    %22 = vst.msk [vmem:[#allocation0] sm:$0x1] %vm21, %v20
    %s23 = scalar_lea.vmem %s0, 4
    %v24 = vld [vmem:[%s23] sm:$0x1]
    %25 = vrot.lane.b32.xlu0 %v24, 32
    %v26 = vpop.permute.xlu0 %25
    %vm27 = vcmask 326912
    %28 = vst.msk [vmem:[#allocation0] sm:$0x1] %vm27, %v26
    %s29 = scalar_lea.vmem %s0, 3
    %v30 = vld [vmem:[%s29] sm:$0x1]
    %31 = vrot.lane.b32.xlu0 %v30, 24
    %v32 = vpop.permute.xlu0 %31
    %vm33 = vcmask 261312
    %34 = vst.msk [vmem:[#allocation0] sm:$0x1] %vm33, %v32
    %s35 = scalar_lea.vmem %s0, 2
    %v36 = vld [vmem:[%s35] sm:$0x1]
    %37 = vrot.lane.b32.xlu0 %v36, 16
    %v38 = vpop.permute.xlu0 %37
    %vm39 = vcmask 195712
    %40 = vst.msk [vmem:[#allocation0] sm:$0x1] %vm39, %v38
    %s41 = scalar_lea.vmem %s0, 1
    %v42 = vld [vmem:[%s41] sm:$0x1]
    %43 = vrot.lane.b32.xlu0 %v42, 8
    %v44 = vpop.permute.xlu0 %43
    %vm45 = vcmask 130112
    %46 = vst.msk [vmem:[#allocation0] sm:$0x1] %vm45, %v44
    %s48 = sshll.u32 1, 1
    %s49 = ssub.s32 %s48, 1
    %v51 = vld [vmem:[#allocation0] sm:%s49]
    %s52 = sshll.u32 1, 1
    %s53 = ssub.s32 %s52, 1
    %54 = vst [vmem:[%s1] sm:%s53] %v51

// kernel: down_block.5
$region0: #{down_block.5}
  #allocation0 [shape = 'u32[]', space=smem, size = 0x4, offset = 0x4, fixed_abs, tag = 'smem constant byte address 0x4 - core index']
  #allocation1 [shape = 'u32[144,128]{1,0:T(1,128)}', space=vmem, size = 0x12000, scoped, tag = 'internal scratch']
  %s0 = inlined_call_operand.vmem [shape: f32[2,8,64], index: 0, kind: input, shape index: {}]
  %s1 = inlined_call_operand.vmem [shape: f32[1,64], index: 1, kind: input, shape index: {}]
  %s2 = inlined_call_operand.vmem [shape: f32[1,64], index: 2, kind: input, shape index: {}]
  %s3 = inlined_call_operand.vmem [shape: f32[2,8,64], index: 3, kind: output, shape index: {}]
  %s4 = sld [smem:[#allocation0]]
  $region45: #{down_block.5} parent=0
    _
  %s6 = ssub.s32 1, %s4
  %s7 = scalar_select 0, %s6, %s4
  loop: start=0, step=1, limit=4
  $region2: #{down_block.5} parent=0 // loop_pre_header
    _
  $region3: #{down_block.5} parent=0 // loop_header
    %s9 = sphi 0, %s13
    %p10 = scmp.ge.s32.totalorder %s9, 4
    %s16 = sphi 0, %s28
    %s17 = sphi 0, %s24
    %s18 = sphi 0, %s16
    %s19 = sphi 0, %s17
    %s20 = sphi 0, %s18
    %s21 = sphi 0, %s19
    %s33 = sphi 0, %s35
    %s36 = sphi 0, %s33
    %s37 = sphi 0, %s36
    %s53 = sphi 0, %s37
    %s57 = sphi 0, %s57
    %s59 = sphi 0, %s57
    %s60 = sphi 0, %s59
    %s74 = sphi 0, %s60
    %s78 = sphi 0, %s78
    %s80 = sphi 0, %s78
    %s81 = sphi 0, %s80
    %s95 = sphi 0, %s81
    %s103 = sphi 0, %s105
    %s106 = sphi 0, %s103
    %s107 = sphi 0, %s106
    %s123 = sphi 0, %s107
  $region4: #{down_block.5} parent=0 // loop_header_branch
    %12 = sbr.rel (%p10) target = $region8
  $region5: #{down_block.5} parent=0 // loop_body
    %s14 = ssub.s32 %s9, 1
    %s15 = ssub.s32 %s9, 2
    %s22 = sadd.s32 1, %s17
    %p23 = scmp.ge.s32.totalorder %s22, 1
    %s24 = scalar_select %p23, 0, %s22
    %s25 = sadd.s32 1, %s16
    %s26 = scalar_select %p23, %s25, %s16
    %p27 = scmp.ge.s32.totalorder %s26, 2
    %s28 = scalar_select %p27, 0, %s26
    %s29 = ssub.s32 %s16, %s28
    %s30 = ssub.s32 %s17, %s24
    %s31 = sor.u32 %s29, %s30
    %p32 = scmp.eq.s32.totalorder %s31, 0
    %s34 = sadd.s32 %s33, 1
    %s35 = scalar_select %p32, %s33, %s34
    %p38 = pneg %p32
    %p39 = scmp.eq.s32.totalorder %s9, 1
    %p40 = por %p38, %p39
    %p41 = scmp.ne.s32.totalorder %s33, %s36
    %p42 = scmp.eq.s32.totalorder %s9, 0
    %p43 = por %p41, %p42
    %p44 = scmp.ne.s32.totalorder %s33, %s36
    %p45 = scmp.eq.s32.totalorder %s14, 1
    %p46 = por %p44, %p45
    %p47 = scmp.ne.s32.totalorder %s36, %s37
    %p48 = scmp.eq.s32.totalorder %s14, 0
    %p49 = por %p47, %p48
    %p50 = scmp.ne.s32.totalorder %s36, %s37
    %p51 = scmp.eq.s32.totalorder %s15, 1
    %p52 = por %p50, %p51
    %p54 = scmp.ne.s32.totalorder %s37, %s53
    %p55 = scmp.eq.s32.totalorder %s15, 0
    %p56 = por %p54, %p55
    %s58 = sadd.s32 %s57, 1
    %p61 = scmp.eq.s32.totalorder %s9, 1
    %p62 = scmp.ne.s32.totalorder %s57, %s59
    %p63 = scmp.eq.s32.totalorder %s9, 0
    %p64 = por %p62, %p63
    %p65 = scmp.ne.s32.totalorder %s57, %s59
    %p66 = scmp.eq.s32.totalorder %s14, 1
    %p67 = por %p65, %p66
    %p68 = scmp.ne.s32.totalorder %s59, %s60
    %p69 = scmp.eq.s32.totalorder %s14, 0
    %p70 = por %p68, %p69
    %p71 = scmp.ne.s32.totalorder %s59, %s60
    %p72 = scmp.eq.s32.totalorder %s15, 1
    %p73 = por %p71, %p72
    %p75 = scmp.ne.s32.totalorder %s60, %s74
    %p76 = scmp.eq.s32.totalorder %s15, 0
    %p77 = por %p75, %p76
    %s79 = sadd.s32 %s78, 1
    %p82 = scmp.eq.s32.totalorder %s9, 1
    %p83 = scmp.ne.s32.totalorder %s78, %s80
    %p84 = scmp.eq.s32.totalorder %s9, 0
    %p85 = por %p83, %p84
    %p86 = scmp.ne.s32.totalorder %s78, %s80
    %p87 = scmp.eq.s32.totalorder %s14, 1
    %p88 = por %p86, %p87
    %p89 = scmp.ne.s32.totalorder %s80, %s81
    %p90 = scmp.eq.s32.totalorder %s14, 0
    %p91 = por %p89, %p90
    %p92 = scmp.ne.s32.totalorder %s80, %s81
    %p93 = scmp.eq.s32.totalorder %s15, 1
    %p94 = por %p92, %p93
    %p96 = scmp.ne.s32.totalorder %s81, %s95
    %p97 = scmp.eq.s32.totalorder %s15, 0
    %p98 = por %p96, %p97
    %s99 = ssub.s32 %s16, %s28
    %s100 = ssub.s32 %s17, %s24
    %s101 = sor.u32 %s99, %s100
    %p102 = scmp.eq.s32.totalorder %s101, 0
    %s104 = sadd.s32 %s103, 1
    %s105 = scalar_select %p102, %s103, %s104
    %p108 = pneg %p102
    %p109 = scmp.eq.s32.totalorder %s9, 1
    %p110 = por %p108, %p109
    %p111 = scmp.ne.s32.totalorder %s103, %s106
    %p112 = scmp.eq.s32.totalorder %s9, 0
    %p113 = por %p111, %p112
    %p114 = scmp.ne.s32.totalorder %s103, %s106
    %p115 = scmp.eq.s32.totalorder %s14, 1
    %p116 = por %p114, %p115
    %p117 = scmp.ne.s32.totalorder %s106, %s107
    %p118 = scmp.eq.s32.totalorder %s14, 0
    %p119 = por %p117, %p118
    %p120 = scmp.ne.s32.totalorder %s106, %s107
    %p121 = scmp.eq.s32.totalorder %s15, 1
    %p122 = por %p120, %p121
    %p124 = scmp.ne.s32.totalorder %s107, %s123
    %p125 = scmp.eq.s32.totalorder %s15, 0
    %p126 = por %p124, %p125
    %p127 = scmp.le.s32.totalorder 1, %s9
    %p128 = scmp.lt.s32.totalorder %s9, 3
    %p129 = pnand %p127, %p128
    %p130 = pneg %p129
    // Predicated region
    $region9: #{down_block.5} parent=5 // pred_check
      _
    $region10: #{down_block.5} parent=5 // pred_check_branch
      %132 = sbr.rel (%p129) target = $region12
    $region11: #{down_block.5} parent=5 // pred_region
      %s133 = ssub.s32 %s9, 1
      // Predicated region
      $region13: #{down_block.5} parent=11 // pred_check
        %p134 = pneg %p70
      $region14: #{down_block.5} parent=11 // pred_check_branch
        %136 = sbr.rel (%p134) target = $region16
      $region15: #{down_block.5} parent=11 // pred_region
        _
      $region16: #{down_block.5} parent=11 // pred_fallthru
        _
      // Predicated region
      $region17: #{down_block.5} parent=11 // pred_check
        %p137 = pneg %p91
      $region18: #{down_block.5} parent=11 // pred_check_branch
        %139 = sbr.rel (%p137) target = $region20
      $region19: #{down_block.5} parent=11 // pred_region
        _
      $region20: #{down_block.5} parent=11 // pred_fallthru
        _
    $region12: #{down_block.5} parent=5 // pred_fallthru
      _
    %p140 = scmp.lt.s32.totalorder %s9, 2
    // Predicated region
    $region21: #{down_block.5} parent=5 // pred_check
      %p141 = pneg %p140
    $region22: #{down_block.5} parent=5 // pred_check_branch
      %143 = sbr.rel (%p141) target = $region24
    $region23: #{down_block.5} parent=5 // pred_region
      // Predicated region
      $region25: #{down_block.5} parent=23 // pred_check
        %p144 = pneg %p43
      $region26: #{down_block.5} parent=23 // pred_check_branch
        %146 = sbr.rel (%p144) target = $region28
      $region27: #{down_block.5} parent=23 // pred_region
        %p147 = scmp.lt.s32.totalorder %s16, 1
        %s148 = scalar_select %p147, %s16, 1
        %p149 = scmp.lt.s32.totalorder %s17, 0
        %s150 = scalar_select %p149, %s17, 0
        %s151 = sadd.s32 %s150, %s148
        %s152 = smul.addr %s151, 8
        %s153 = scalar_lea.vmem %s0, %s152
      $region28: #{down_block.5} parent=23 // pred_fallthru
        _
    $region24: #{down_block.5} parent=5 // pred_fallthru
      _
    %p154 = scmp.le.s32.totalorder 1, %s9
    %p155 = scmp.lt.s32.totalorder %s9, 3
    %p156 = pnand %p154, %p155
    %p157 = pneg %p156
    // Predicated region
    $region29: #{down_block.5} parent=5 // pred_check
      _
    $region30: #{down_block.5} parent=5 // pred_check_branch
      %159 = sbr.rel (%p156) target = $region32
    $region31: #{down_block.5} parent=5 // pred_region
      %s160 = ssub.s32 %s9, 1
      %p161 = scmp.lt.s32.totalorder %s18, 1
      %s162 = scalar_select %p161, %s18, 1
      %p163 = scmp.lt.s32.totalorder %s19, 0
      %s164 = scalar_select %p163, %s19, 0
      %s165 = sadd.s32 %s164, %s162
      %s166 = smul.addr %s165, 8
      %s167 = scalar_lea.vmem %s0, %s166
      %p168 = pneg %p49
      %p169 = pneg %p46
      %p170 = pneg %p70
      %p171 = pneg %p67
      %p172 = pneg %p91
      %p173 = pneg %p88
      %p174 = pneg %p119
      %p175 = pneg %p116
      %p176 = scmp.lt.s32.totalorder %s18, 1
      %s177 = scalar_select %p176, %s18, 1
      %p178 = scmp.lt.s32.totalorder %s19, 0
      %s179 = scalar_select %p178, %s19, 0
      %s180 = sadd.s32 %s179, %s177
      %s181 = smul.addr %s180, 8
      %s182 = scalar_lea.vmem %s3, %s181
      %p183 = scmp.lt.s32.totalorder %s18, 1
      %s184 = scalar_select %p183, %s18, 1
      %p185 = scmp.lt.s32.totalorder %s19, 0
      %s186 = scalar_select %p185, %s19, 0
      %s187 = sadd.s32 %s186, %s184
      %s188 = smul.addr %s187, 8
      %s189 = scalar_lea.vmem %s0, %s188
      %p190 = scmp.lt.s32.totalorder %s18, 1
      %s191 = scalar_select %p190, %s18, 1
      %p192 = scmp.lt.s32.totalorder %s19, 0
      %s193 = scalar_select %p192, %s19, 0
      %s194 = sadd.s32 %s193, %s191
      %s195 = smul.addr %s194, 8
      %s196 = scalar_lea.vmem %s3, %s195
      %v197 = vld [vmem:[%s1] sm:$0x1]
      %v198 = vld [vmem:[%s2] sm:$0x1]
      %v199 = vld [vmem:[%s189] sm:$0xff]
      %v201 = vlaneseq
      %v202 = vshrl.u32 %v201, 7
      %v203 = vsub.s32 0, %v202
      %v204 = vrot.slane %v197, %v203
      %v206 = vmul.f32 %v199, %v204
      %v208 = vlaneseq
      %v209 = vshrl.u32 %v208, 7
      %v210 = vsub.s32 0, %v209
      %v211 = vrot.slane %v198, %v210
      %v213 = vadd.f32 %v206, %v211
      %v214 = vmax.f32 %v213, 0.0
      %vm215 = vcmask 523264
      %216 = vst.msk [vmem:[%s196] sm:$0xff] %vm215, %v214
      %p217 = scmp.lt.s32.totalorder %s18, 1
      %s218 = scalar_select %p217, %s18, 1
      %p219 = scmp.lt.s32.totalorder %s19, 0
      %s220 = scalar_select %p219, %s19, 0
      %s221 = sadd.s32 %s220, %s218
      %s222 = smul.addr %s221, 8
      %s223 = scalar_lea.vmem %s3, %s222
      // Predicated region
      $region33: #{down_block.5} parent=31 // pred_check
        %p224 = pneg %p116
      $region34: #{down_block.5} parent=31 // pred_check_branch
        %226 = sbr.rel (%p224) target = $region36
      $region35: #{down_block.5} parent=31 // pred_region
        _
      $region36: #{down_block.5} parent=31 // pred_fallthru
        _
    $region32: #{down_block.5} parent=5 // pred_fallthru
      _
    %p227 = scmp.le.s32.totalorder 2, %s9
    // Predicated region
    $region37: #{down_block.5} parent=5 // pred_check
      %p228 = pneg %p227
    $region38: #{down_block.5} parent=5 // pred_check_branch
      %230 = sbr.rel (%p228) target = $region40
    $region39: #{down_block.5} parent=5 // pred_region
      %s231 = ssub.s32 %s9, 2
      // Predicated region
      $region41: #{down_block.5} parent=39 // pred_check
        %p232 = pneg %p122
      $region42: #{down_block.5} parent=39 // pred_check_branch
        %234 = sbr.rel (%p232) target = $region44
      $region43: #{down_block.5} parent=39 // pred_region
        %p235 = scmp.lt.s32.totalorder %s20, 1
        %s236 = scalar_select %p235, %s20, 1
        %p237 = scmp.lt.s32.totalorder %s21, 0
        %s238 = scalar_select %p237, %s21, 0
        %s239 = sadd.s32 %s238, %s236
        %s240 = smul.addr %s239, 8
        %s241 = scalar_lea.vmem %s3, %s240
      $region44: #{down_block.5} parent=39 // pred_fallthru
        _
    $region40: #{down_block.5} parent=5 // pred_fallthru
      _
  $region6: #{down_block.5} parent=0 // loop_footer
    %s13 = sadd.s32 1, %s9
  $region7: #{down_block.5} parent=0 // loop_footer_branch
    %8 = sbr.rel target = $region3
  $region8: #{down_block.5} parent=0 // loop_exit
    _

// kernel: down_block.4
$region0: #{down_block.4}
  #allocation0 [shape = 'u32[]', space=smem, size = 0x4, offset = 0x4, fixed_abs, tag = 'smem constant byte address 0x4 - core index']
  #allocation1 [shape = 'u32[144,128]{1,0:T(1,128)}', space=vmem, size = 0x12000, scoped, tag = 'internal scratch']
  %s0 = inlined_call_operand.vmem [shape: f32[2,8,8,8], index: 0, kind: input, shape index: {}, may-alias: {0,1,2}]
  %s1 = inlined_call_operand.vmem [shape: f32[2,8,8,8], index: 1, kind: input, shape index: {}, may-alias: {0,1,2}]
  %s2 = inlined_call_operand.vmem [shape: f32[2,8,8,8], index: 2, kind: input, shape index: {}, may-alias: {0,1,2}]
  %s3 = inlined_call_operand.vmem [shape: f32[1,8], index: 3, kind: input, shape index: {}]
  %s4 = inlined_call_operand.vmem [shape: f32[1,8], index: 4, kind: input, shape index: {}]
  %s5 = inlined_call_operand.vmem [shape: f32[72,8], index: 5, kind: input, shape index: {}]
  %s6 = inlined_call_operand.vmem [shape: f32[2,8,64], index: 6, kind: output, shape index: {0}]
  %s7 = inlined_call_operand.vmem [shape: f32[2,1,2,8], index: 7, kind: output, shape index: {1}]
  %8 = xla_tuple %s6, %s7
  %s9 = sld [smem:[#allocation0]]
  $region65: #{down_block.4} parent=0
    _
  %s11 = ssub.s32 1, %s9
  %s12 = scalar_select 0, %s11, %s9
  loop: start=0, step=1, limit=4
  $region2: #{down_block.4} parent=0 // loop_pre_header
    _
  $region3: #{down_block.4} parent=0 // loop_header
    %s14 = sphi 0, %s18
    %p15 = scmp.ge.s32.totalorder %s14, 4
    %s21 = sphi 0, %s33
    %s22 = sphi 0, %s29
    %s23 = sphi 0, %s21
    %s24 = sphi 0, %s22
    %s25 = sphi 0, %s23
    %s26 = sphi 0, %s24
    %s38 = sphi 0, %s40
    %s41 = sphi 0, %s38
    %s42 = sphi 0, %s41
    %s58 = sphi 0, %s42
    %s74 = sphi 0, %s76
    %s77 = sphi 0, %s74
    %s78 = sphi 0, %s77
    %s94 = sphi 0, %s78
    %s110 = sphi 0, %s112
    %s113 = sphi 0, %s110
    %s114 = sphi 0, %s113
    %s130 = sphi 0, %s114
    %s134 = sphi 0, %s134
    %s136 = sphi 0, %s134
    %s137 = sphi 0, %s136
    %s151 = sphi 0, %s137
    %s155 = sphi 0, %s155
    %s157 = sphi 0, %s155
    %s158 = sphi 0, %s157
    %s172 = sphi 0, %s158
    %s176 = sphi 0, %s176
    %s178 = sphi 0, %s176
    %s179 = sphi 0, %s178
    %s193 = sphi 0, %s179
    %s201 = sphi 0, %s203
    %s204 = sphi 0, %s201
    %s205 = sphi 0, %s204
    %s221 = sphi 0, %s205
    %s229 = sphi 0, %s231
    %s232 = sphi 0, %s229
    %s233 = sphi 0, %s232
    %s249 = sphi 0, %s233
  $region4: #{down_block.4} parent=0 // loop_header_branch
    %17 = sbr.rel (%p15) target = $region8
  $region5: #{down_block.4} parent=0 // loop_body
    %s19 = ssub.s32 %s14, 1
    %s20 = ssub.s32 %s14, 2
    %s27 = sadd.s32 1, %s22
    %p28 = scmp.ge.s32.totalorder %s27, 1
    %s29 = scalar_select %p28, 0, %s27
    %s30 = sadd.s32 1, %s21
    %s31 = scalar_select %p28, %s30, %s21
    %p32 = scmp.ge.s32.totalorder %s31, 2
    %s33 = scalar_select %p32, 0, %s31
    %s34 = ssub.s32 %s21, %s33
    %s35 = ssub.s32 %s22, %s29
    %s36 = sor.u32 %s34, %s35
    %p37 = scmp.eq.s32.totalorder %s36, 0
    %s39 = sadd.s32 %s38, 1
    %s40 = scalar_select %p37, %s38, %s39
    %p43 = pneg %p37
    %p44 = scmp.eq.s32.totalorder %s14, 1
    %p45 = por %p43, %p44
    %p46 = scmp.ne.s32.totalorder %s38, %s41
    %p47 = scmp.eq.s32.totalorder %s14, 0
    %p48 = por %p46, %p47
    %p49 = scmp.ne.s32.totalorder %s38, %s41
    %p50 = scmp.eq.s32.totalorder %s19, 1
    %p51 = por %p49, %p50
    %p52 = scmp.ne.s32.totalorder %s41, %s42
    %p53 = scmp.eq.s32.totalorder %s19, 0
    %p54 = por %p52, %p53
    %p55 = scmp.ne.s32.totalorder %s41, %s42
    %p56 = scmp.eq.s32.totalorder %s20, 1
    %p57 = por %p55, %p56
    %p59 = scmp.ne.s32.totalorder %s42, %s58
    %p60 = scmp.eq.s32.totalorder %s20, 0
    %p61 = por %p59, %p60
    %s62 = smul.u32 %s22, 8
    %s63 = ssub.s32 %s62, 1
    %p64 = scmp.gt.s32.totalorder %s63, 0
    %s65 = scalar_select %p64, %s63, 0
    %s66 = smul.u32 %s29, 8
    %s67 = ssub.s32 %s66, 1
    %p68 = scmp.gt.s32.totalorder %s67, 0
    %s69 = scalar_select %p68, %s67, 0
    %s70 = ssub.s32 %s21, %s33
    %s71 = ssub.s32 %s65, %s69
    %s72 = sor.u32 %s70, %s71
    %p73 = scmp.eq.s32.totalorder %s72, 0
    %s75 = sadd.s32 %s74, 1
    %s76 = scalar_select %p73, %s74, %s75
    %p79 = pneg %p73
    %p80 = scmp.eq.s32.totalorder %s14, 1
    %p81 = por %p79, %p80
    %p82 = scmp.ne.s32.totalorder %s74, %s77
    %p83 = scmp.eq.s32.totalorder %s14, 0
    %p84 = por %p82, %p83
    %p85 = scmp.ne.s32.totalorder %s74, %s77
    %p86 = scmp.eq.s32.totalorder %s19, 1
    %p87 = por %p85, %p86
    %p88 = scmp.ne.s32.totalorder %s77, %s78
    %p89 = scmp.eq.s32.totalorder %s19, 0
    %p90 = por %p88, %p89
    %p91 = scmp.ne.s32.totalorder %s77, %s78
    %p92 = scmp.eq.s32.totalorder %s20, 1
    %p93 = por %p91, %p92
    %p95 = scmp.ne.s32.totalorder %s78, %s94
    %p96 = scmp.eq.s32.totalorder %s20, 0
    %p97 = por %p95, %p96
    %s98 = smul.u32 %s22, 8
    %s99 = sadd.s32 %s98, 8
    %p100 = scmp.lt.s32.totalorder %s99, 7
    %s101 = scalar_select %p100, %s99, 7
    %s102 = smul.u32 %s29, 8
    %s103 = sadd.s32 %s102, 8
    %p104 = scmp.lt.s32.totalorder %s103, 7
    %s105 = scalar_select %p104, %s103, 7
    %s106 = ssub.s32 %s21, %s33
    %s107 = ssub.s32 %s101, %s105
    %s108 = sor.u32 %s106, %s107
    %p109 = scmp.eq.s32.totalorder %s108, 0
    %s111 = sadd.s32 %s110, 1
    %s112 = scalar_select %p109, %s110, %s111
    %p115 = pneg %p109
    %p116 = scmp.eq.s32.totalorder %s14, 1
    %p117 = por %p115, %p116
    %p118 = scmp.ne.s32.totalorder %s110, %s113
    %p119 = scmp.eq.s32.totalorder %s14, 0
    %p120 = por %p118, %p119
    %p121 = scmp.ne.s32.totalorder %s110, %s113
    %p122 = scmp.eq.s32.totalorder %s19, 1
    %p123 = por %p121, %p122
    %p124 = scmp.ne.s32.totalorder %s113, %s114
    %p125 = scmp.eq.s32.totalorder %s19, 0
    %p126 = por %p124, %p125
    %p127 = scmp.ne.s32.totalorder %s113, %s114
    %p128 = scmp.eq.s32.totalorder %s20, 1
    %p129 = por %p127, %p128
    %p131 = scmp.ne.s32.totalorder %s114, %s130
    %p132 = scmp.eq.s32.totalorder %s20, 0
    %p133 = por %p131, %p132
    %s135 = sadd.s32 %s134, 1
    %p138 = scmp.eq.s32.totalorder %s14, 1
    %p139 = scmp.ne.s32.totalorder %s134, %s136
    %p140 = scmp.eq.s32.totalorder %s14, 0
    %p141 = por %p139, %p140
    %p142 = scmp.ne.s32.totalorder %s134, %s136
    %p143 = scmp.eq.s32.totalorder %s19, 1
    %p144 = por %p142, %p143
    %p145 = scmp.ne.s32.totalorder %s136, %s137
    %p146 = scmp.eq.s32.totalorder %s19, 0
    %p147 = por %p145, %p146
    %p148 = scmp.ne.s32.totalorder %s136, %s137
    %p149 = scmp.eq.s32.totalorder %s20, 1
    %p150 = por %p148, %p149
    %p152 = scmp.ne.s32.totalorder %s137, %s151
    %p153 = scmp.eq.s32.totalorder %s20, 0
    %p154 = por %p152, %p153
    %s156 = sadd.s32 %s155, 1
    %p159 = scmp.eq.s32.totalorder %s14, 1
    %p160 = scmp.ne.s32.totalorder %s155, %s157
    %p161 = scmp.eq.s32.totalorder %s14, 0
    %p162 = por %p160, %p161
    %p163 = scmp.ne.s32.totalorder %s155, %s157
    %p164 = scmp.eq.s32.totalorder %s19, 1
    %p165 = por %p163, %p164
    %p166 = scmp.ne.s32.totalorder %s157, %s158
    %p167 = scmp.eq.s32.totalorder %s19, 0
    %p168 = por %p166, %p167
    %p169 = scmp.ne.s32.totalorder %s157, %s158
    %p170 = scmp.eq.s32.totalorder %s20, 1
    %p171 = por %p169, %p170
    %p173 = scmp.ne.s32.totalorder %s158, %s172
    %p174 = scmp.eq.s32.totalorder %s20, 0
    %p175 = por %p173, %p174
    %s177 = sadd.s32 %s176, 1
    %p180 = scmp.eq.s32.totalorder %s14, 1
    %p181 = scmp.ne.s32.totalorder %s176, %s178
    %p182 = scmp.eq.s32.totalorder %s14, 0
    %p183 = por %p181, %p182
    %p184 = scmp.ne.s32.totalorder %s176, %s178
    %p185 = scmp.eq.s32.totalorder %s19, 1
    %p186 = por %p184, %p185
    %p187 = scmp.ne.s32.totalorder %s178, %s179
    %p188 = scmp.eq.s32.totalorder %s19, 0
    %p189 = por %p187, %p188
    %p190 = scmp.ne.s32.totalorder %s178, %s179
    %p191 = scmp.eq.s32.totalorder %s20, 1
    %p192 = por %p190, %p191
    %p194 = scmp.ne.s32.totalorder %s179, %s193
    %p195 = scmp.eq.s32.totalorder %s20, 0
    %p196 = por %p194, %p195
    %s197 = ssub.s32 %s21, %s33
    %s198 = ssub.s32 %s22, %s29
    %s199 = sor.u32 %s197, %s198
    %p200 = scmp.eq.s32.totalorder %s199, 0
    %s202 = sadd.s32 %s201, 1
    %s203 = scalar_select %p200, %s201, %s202
    %p206 = pneg %p200
    %p207 = scmp.eq.s32.totalorder %s14, 1
    %p208 = por %p206, %p207
    %p209 = scmp.ne.s32.totalorder %s201, %s204
    %p210 = scmp.eq.s32.totalorder %s14, 0
    %p211 = por %p209, %p210
    %p212 = scmp.ne.s32.totalorder %s201, %s204
    %p213 = scmp.eq.s32.totalorder %s19, 1
    %p214 = por %p212, %p213
    %p215 = scmp.ne.s32.totalorder %s204, %s205
    %p216 = scmp.eq.s32.totalorder %s19, 0
    %p217 = por %p215, %p216
    %p218 = scmp.ne.s32.totalorder %s204, %s205
    %p219 = scmp.eq.s32.totalorder %s20, 1
    %p220 = por %p218, %p219
    %p222 = scmp.ne.s32.totalorder %s205, %s221
    %p223 = scmp.eq.s32.totalorder %s20, 0
    %p224 = por %p222, %p223
    %s225 = ssub.s32 %s21, %s33
    %s226 = ssub.s32 %s22, %s29
    %s227 = sor.u32 %s225, %s226
    %p228 = scmp.eq.s32.totalorder %s227, 0
    %s230 = sadd.s32 %s229, 1
    %s231 = scalar_select %p228, %s229, %s230
    %p234 = pneg %p228
    %p235 = scmp.eq.s32.totalorder %s14, 1
    %p236 = por %p234, %p235
    %p237 = scmp.ne.s32.totalorder %s229, %s232
    %p238 = scmp.eq.s32.totalorder %s14, 0
    %p239 = por %p237, %p238
    %p240 = scmp.ne.s32.totalorder %s229, %s232
    %p241 = scmp.eq.s32.totalorder %s19, 1
    %p242 = por %p240, %p241
    %p243 = scmp.ne.s32.totalorder %s232, %s233
    %p244 = scmp.eq.s32.totalorder %s19, 0
    %p245 = por %p243, %p244
    %p246 = scmp.ne.s32.totalorder %s232, %s233
    %p247 = scmp.eq.s32.totalorder %s20, 1
    %p248 = por %p246, %p247
    %p250 = scmp.ne.s32.totalorder %s233, %s249
    %p251 = scmp.eq.s32.totalorder %s20, 0
    %p252 = por %p250, %p251
    %p253 = scmp.le.s32.totalorder 1, %s14
    %p254 = scmp.lt.s32.totalorder %s14, 3
    %p255 = pnand %p253, %p254
    %p256 = pneg %p255
    // Predicated region
    $region9: #{down_block.4} parent=5 // pred_check
      _
    $region10: #{down_block.4} parent=5 // pred_check_branch
      %258 = sbr.rel (%p255) target = $region12
    $region11: #{down_block.4} parent=5 // pred_region
      %s259 = ssub.s32 %s14, 1
      // Predicated region
      $region13: #{down_block.4} parent=11 // pred_check
        %p260 = pneg %p147
      $region14: #{down_block.4} parent=11 // pred_check_branch
        %262 = sbr.rel (%p260) target = $region16
      $region15: #{down_block.4} parent=11 // pred_region
        _
      $region16: #{down_block.4} parent=11 // pred_fallthru
        _
      // Predicated region
      $region17: #{down_block.4} parent=11 // pred_check
        %p263 = pneg %p168
      $region18: #{down_block.4} parent=11 // pred_check_branch
        %265 = sbr.rel (%p263) target = $region20
      $region19: #{down_block.4} parent=11 // pred_region
        _
      $region20: #{down_block.4} parent=11 // pred_fallthru
        _
      // Predicated region
      $region21: #{down_block.4} parent=11 // pred_check
        %p266 = pneg %p189
      $region22: #{down_block.4} parent=11 // pred_check_branch
        %268 = sbr.rel (%p266) target = $region24
      $region23: #{down_block.4} parent=11 // pred_region
        _
      $region24: #{down_block.4} parent=11 // pred_fallthru
        _
    $region12: #{down_block.4} parent=5 // pred_fallthru
      _
    %p269 = scmp.lt.s32.totalorder %s14, 2
    // Predicated region
    $region25: #{down_block.4} parent=5 // pred_check
      %p270 = pneg %p269
    $region26: #{down_block.4} parent=5 // pred_check_branch
      %272 = sbr.rel (%p270) target = $region28
    $region27: #{down_block.4} parent=5 // pred_region
      // Predicated region
      $region29: #{down_block.4} parent=27 // pred_check
        %p273 = pneg %p48
      $region30: #{down_block.4} parent=27 // pred_check_branch
        %275 = sbr.rel (%p273) target = $region32
      $region31: #{down_block.4} parent=27 // pred_region
        %s276 = smul.u32 8, %s22
        %p277 = scmp.lt.s32.totalorder %s21, 1
        %s278 = scalar_select %p277, %s21, 1
        %p279 = scmp.lt.s32.totalorder %s276, 7
        %s280 = scalar_select %p279, %s276, 7
        %s281 = smul.addr %s278, 8
        %s282 = sadd.s32 %s280, %s281
        %s283 = smul.addr %s282, 8
        %s284 = scalar_lea.vmem %s0, %s283
        %s285 = smul.u32 8, %s22
      $region32: #{down_block.4} parent=27 // pred_fallthru
        _
      // Predicated region
      $region33: #{down_block.4} parent=27 // pred_check
        %p286 = pneg %p84
      $region34: #{down_block.4} parent=27 // pred_check_branch
        %288 = sbr.rel (%p286) target = $region36
      $region35: #{down_block.4} parent=27 // pred_region
        %s289 = smul.u32 %s22, 8
        %s290 = ssub.s32 %s289, 1
        %p291 = scmp.gt.s32.totalorder %s290, 0
        %s292 = scalar_select %p291, %s290, 0
        %p293 = scmp.lt.s32.totalorder %s21, 1
        %s294 = scalar_select %p293, %s21, 1
        %p295 = scmp.lt.s32.totalorder %s292, 7
        %s296 = scalar_select %p295, %s292, 7
        %s297 = smul.addr %s294, 8
        %s298 = sadd.s32 %s296, %s297
        %s299 = smul.addr %s298, 8
        %s300 = scalar_lea.vmem %s1, %s299
        %s301 = smul.u32 %s22, 8
        %s302 = ssub.s32 %s301, 1
        %p303 = scmp.gt.s32.totalorder %s302, 0
        %s304 = scalar_select %p303, %s302, 0
      $region36: #{down_block.4} parent=27 // pred_fallthru
        _
      // Predicated region
      $region37: #{down_block.4} parent=27 // pred_check
        %p305 = pneg %p120
      $region38: #{down_block.4} parent=27 // pred_check_branch
        %307 = sbr.rel (%p305) target = $region40
      $region39: #{down_block.4} parent=27 // pred_region
        %s308 = smul.u32 %s22, 8
        %s309 = sadd.s32 %s308, 8
        %p310 = scmp.lt.s32.totalorder %s309, 7
        %s311 = scalar_select %p310, %s309, 7
        %p312 = scmp.lt.s32.totalorder %s21, 1
        %s313 = scalar_select %p312, %s21, 1
        %p314 = scmp.lt.s32.totalorder %s311, 7
        %s315 = scalar_select %p314, %s311, 7
        %s316 = smul.addr %s313, 8
        %s317 = sadd.s32 %s315, %s316
        %s318 = smul.addr %s317, 8
        %s319 = scalar_lea.vmem %s2, %s318
        %s320 = smul.u32 %s22, 8
        %s321 = sadd.s32 %s320, 8
        %p322 = scmp.lt.s32.totalorder %s321, 7
        %s323 = scalar_select %p322, %s321, 7
      $region40: #{down_block.4} parent=27 // pred_fallthru
        _
    $region28: #{down_block.4} parent=5 // pred_fallthru
      _
    %p324 = scmp.le.s32.totalorder 1, %s14
    %p325 = scmp.lt.s32.totalorder %s14, 3
    %p326 = pnand %p324, %p325
    %p327 = pneg %p326
    // Predicated region
    $region41: #{down_block.4} parent=5 // pred_check
      _
    $region42: #{down_block.4} parent=5 // pred_check_branch
      %329 = sbr.rel (%p326) target = $region44
    $region43: #{down_block.4} parent=5 // pred_region
      %s330 = ssub.s32 %s14, 1
      %s331 = smul.u32 8, %s24
      %p332 = scmp.lt.s32.totalorder %s23, 1
      %s333 = scalar_select %p332, %s23, 1
      %p334 = scmp.lt.s32.totalorder %s331, 7
      %s335 = scalar_select %p334, %s331, 7
      %s336 = smul.addr %s333, 8
      %s337 = sadd.s32 %s335, %s336
      %s338 = smul.addr %s337, 8
      %s339 = scalar_lea.vmem %s0, %s338
      %p340 = pneg %p54
      %p341 = pneg %p51
      %s342 = smul.u32 %s24, 8
      %s343 = ssub.s32 %s342, 1
      %p344 = scmp.gt.s32.totalorder %s343, 0
      %s345 = scalar_select %p344, %s343, 0
      %p346 = scmp.lt.s32.totalorder %s23, 1
      %s347 = scalar_select %p346, %s23, 1
      %p348 = scmp.lt.s32.totalorder %s345, 7
      %s349 = scalar_select %p348, %s345, 7
      %s350 = smul.addr %s347, 8
      %s351 = sadd.s32 %s349, %s350
      %s352 = smul.addr %s351, 8
      %s353 = scalar_lea.vmem %s1, %s352
      %p354 = pneg %p90
      %p355 = pneg %p87
      %s356 = smul.u32 %s24, 8
      %s357 = sadd.s32 %s356, 8
      %p358 = scmp.lt.s32.totalorder %s357, 7
      %s359 = scalar_select %p358, %s357, 7
      %p360 = scmp.lt.s32.totalorder %s23, 1
      %s361 = scalar_select %p360, %s23, 1
      %p362 = scmp.lt.s32.totalorder %s359, 7
      %s363 = scalar_select %p362, %s359, 7
      %s364 = smul.addr %s361, 8
      %s365 = sadd.s32 %s363, %s364
      %s366 = smul.addr %s365, 8
      %s367 = scalar_lea.vmem %s2, %s366
      %p368 = pneg %p126
      %p369 = pneg %p123
      %p370 = pneg %p147
      %p371 = pneg %p144
      %p372 = pneg %p168
      %p373 = pneg %p165
      %p374 = pneg %p189
      %p375 = pneg %p186
      %p376 = pneg %p217
      %p377 = pneg %p214
      %p378 = scmp.lt.s32.totalorder %s23, 1
      %s379 = scalar_select %p378, %s23, 1
      %p380 = scmp.lt.s32.totalorder %s24, 0
      %s381 = scalar_select %p380, %s24, 0
      %s382 = sadd.s32 %s381, %s379
      %s383 = smul.addr %s382, 8
      %s384 = scalar_lea.vmem %s6, %s383
      %p385 = pneg %p245
      %p386 = pneg %p242
      %p387 = scmp.lt.s32.totalorder %s23, 1
      %s388 = scalar_select %p387, %s23, 1
      %p389 = scmp.lt.s32.totalorder %s24, 0
      %s390 = scalar_select %p389, %s24, 0
      %s391 = sadd.s32 %s390, %s388
      %s392 = smul.addr %s391, 2
      %s393 = scalar_lea.vmem %s7, %s392
      %s394 = smul.u32 8, %s24
      %p395 = scmp.lt.s32.totalorder %s23, 1
      %s396 = scalar_select %p395, %s23, 1
      %p397 = scmp.lt.s32.totalorder %s394, 7
      %s398 = scalar_select %p397, %s394, 7
      %s399 = smul.addr %s396, 8
      %s400 = sadd.s32 %s398, %s399
      %s401 = smul.addr %s400, 8
      %s402 = scalar_lea.vmem %s0, %s401
      %s403 = smul.u32 8, %s24
      %s404 = smul.u32 %s24, 8
      %s405 = ssub.s32 %s404, 1
      %p406 = scmp.gt.s32.totalorder %s405, 0
      %s407 = scalar_select %p406, %s405, 0
      %p408 = scmp.lt.s32.totalorder %s23, 1
      %s409 = scalar_select %p408, %s23, 1
      %p410 = scmp.lt.s32.totalorder %s407, 7
      %s411 = scalar_select %p410, %s407, 7
      %s412 = smul.addr %s409, 8
      %s413 = sadd.s32 %s411, %s412
      %s414 = smul.addr %s413, 8
      %s415 = scalar_lea.vmem %s1, %s414
      %s416 = smul.u32 %s24, 8
      %s417 = ssub.s32 %s416, 1
      %p418 = scmp.gt.s32.totalorder %s417, 0
      %s419 = scalar_select %p418, %s417, 0
      %s420 = smul.u32 %s24, 8
      %s421 = sadd.s32 %s420, 8
      %p422 = scmp.lt.s32.totalorder %s421, 7
      %s423 = scalar_select %p422, %s421, 7
      %p424 = scmp.lt.s32.totalorder %s23, 1
      %s425 = scalar_select %p424, %s23, 1
      %p426 = scmp.lt.s32.totalorder %s423, 7
      %s427 = scalar_select %p426, %s423, 7
      %s428 = smul.addr %s425, 8
      %s429 = sadd.s32 %s427, %s428
      %s430 = smul.addr %s429, 8
      %s431 = scalar_lea.vmem %s2, %s430
      %s432 = smul.u32 %s24, 8
      %s433 = sadd.s32 %s432, 8
      %p434 = scmp.lt.s32.totalorder %s433, 7
      %s435 = scalar_select %p434, %s433, 7
      %p436 = scmp.lt.s32.totalorder %s23, 1
      %s437 = scalar_select %p436, %s23, 1
      %p438 = scmp.lt.s32.totalorder %s24, 0
      %s439 = scalar_select %p438, %s24, 0
      %s440 = sadd.s32 %s439, %s437
      %s441 = smul.addr %s440, 8
      %s442 = scalar_lea.vmem %s6, %s441
      %p443 = scmp.lt.s32.totalorder %s23, 1
      %s444 = scalar_select %p443, %s23, 1
      %p445 = scmp.lt.s32.totalorder %s24, 0
      %s446 = scalar_select %p445, %s24, 0
      %s447 = sadd.s32 %s446, %s444
      %s448 = smul.addr %s447, 2
      %s449 = scalar_lea.vmem %s7, %s448
      %v450 = vld [vmem:[%s402] sm:$0xff]
      %v451 = vld [vmem:[%s402 + $0x8] sm:$0xff]
      %v452 = vld [vmem:[%s402 + $0x10] sm:$0xff]
      %v453 = vld [vmem:[%s402 + $0x18] sm:$0xff]
      %v454 = vld [vmem:[%s402 + $0x20] sm:$0xff]
      %v455 = vld [vmem:[%s402 + $0x28] sm:$0xff]
      %v456 = vld [vmem:[%s402 + $0x30] sm:$0xff]
      %v457 = vld [vmem:[%s402 + $0x38] sm:$0xff]
      %v458 = vld [vmem:[%s415] sm:$0xff]
      %v459 = vld [vmem:[%s431] sm:$0xff]
      %v460 = vld [vmem:[%s3] sm:$0x1]
      %v461 = vld [vmem:[%s4] sm:$0x1]
      %v463 = vlaneseq
      %v464 = vshrl.u32 %v463, 7
      %v465 = vsub.s32 0, %v464
      %v466 = vrot.slane %v460, %v465
      %v468 = vmul.f32 %v450, %v466
      %v469 = vmul.f32 %v451, %v466
      %v470 = vmul.f32 %v452, %v466
      %v471 = vmul.f32 %v453, %v466
      %v472 = vmul.f32 %v454, %v466
      %v473 = vmul.f32 %v455, %v466
      %v474 = vmul.f32 %v456, %v466
      %v475 = vmul.f32 %v457, %v466
      %v477 = vlaneseq
      %v478 = vshrl.u32 %v477, 7
      %v479 = vsub.s32 0, %v478
      %v480 = vrot.slane %v461, %v479
      %v482 = vadd.f32 %v468, %v480
      %v483 = vadd.f32 %v469, %v480
      %v484 = vadd.f32 %v470, %v480
      %v485 = vadd.f32 %v471, %v480
      %v486 = vadd.f32 %v472, %v480
      %v487 = vadd.f32 %v473, %v480
      %v488 = vadd.f32 %v474, %v480
      %v489 = vadd.f32 %v475, %v480
      %v490 = vmax.f32 %v482, 0.0
      %v491 = vmax.f32 %v483, 0.0
      %v492 = vmax.f32 %v484, 0.0
      %v493 = vmax.f32 %v485, 0.0
      %v494 = vmax.f32 %v486, 0.0
      %v495 = vmax.f32 %v487, 0.0
      %v496 = vmax.f32 %v488, 0.0
      %v497 = vmax.f32 %v489, 0.0
      %v498 = vmul.f32 %v458, %v466
      %v499 = vadd.f32 %v498, %v480
      %v500 = vmax.f32 %v499, 0.0
      %v501 = vmul.f32 %v459, %v466
      %v502 = vadd.f32 %v501, %v480
      %v503 = vmax.f32 %v502, 0.0
      %p504 = scmp.gt.s32.totalorder %s24, 0
      %s505 = scalar_select %p504, 1, 0
      %s506 = scvt.s32.f32 %s505
      %v507 = vstv %s506
      %v508 = vmul.f32 %v500, %v507
      %p509 = scmp.lt.s32.totalorder %s24, 0
      %s510 = scalar_select %p509, 1, 0
      %s511 = scvt.s32.f32 %s510
      %v512 = vstv %s511
      %v513 = vmul.f32 %v503, %v512
      %v524 = vrot.slane %v508, 7
      %v525 = vrot.slane %v490, 7
      %v526 = vrot.slane %v491, 7
      %v527 = vrot.slane %v492, 7
      %v528 = vrot.slane %v493, 7
      %v529 = vrot.slane %v494, 7
      %v530 = vrot.slane %v495, 7
      %v531 = vrot.slane %v496, 7
      %v532 = vrot.slane %v497, 7
      %v533 = vrot.slane %v513, 7
      %vm544 = vcmask 1040384
      %v545 = vsel %vm544, 0.0, %v524
      %v546 = vsel %vm544, 0.0, %v525
      %v547 = vsel %vm544, 0.0, %v526
      %v548 = vsel %vm544, 0.0, %v527
      %v549 = vsel %vm544, 0.0, %v528
      %v550 = vsel %vm544, 0.0, %v529
      %v551 = vsel %vm544, 0.0, %v530
      %v552 = vsel %vm544, 0.0, %v531
      %v553 = vsel %vm544, 0.0, %v532
      %v554 = vsel %vm544, 0.0, %v533
      %v555 = vsel %vm544, %v524, 0.0
      %v556 = vsel %vm544, %v525, 0.0
      %v557 = vsel %vm544, %v526, 0.0
      %v558 = vsel %vm544, %v527, 0.0
      %v559 = vsel %vm544, %v528, 0.0
      %v560 = vsel %vm544, %v529, 0.0
      %v561 = vsel %vm544, %v530, 0.0
      %v562 = vsel %vm544, %v531, 0.0
      %v563 = vsel %vm544, %v532, 0.0
      %v564 = vsel %vm544, %v533, 0.0
      %vm585 = vcmask 1046528
      %v586 = vrot.slane %v545, 1
      %v587 = vrot.slane %v555, 1
      %v588 = vsel %vm585, %v586, %v587
      %v589 = vrot.slane %v546, 1
      %v590 = vrot.slane %v556, 1
      %v591 = vsel %vm585, %v589, %v590
      %v592 = vrot.slane %v547, 1
      %v593 = vrot.slane %v557, 1
      %v594 = vsel %vm585, %v592, %v593
      %v595 = vrot.slane %v548, 1
      %v596 = vrot.slane %v558, 1
      %v597 = vsel %vm585, %v595, %v596
      %v598 = vrot.slane %v549, 1
      %v599 = vrot.slane %v559, 1
      %v600 = vsel %vm585, %v598, %v599
      %v601 = vrot.slane %v550, 1
      %v602 = vrot.slane %v560, 1
      %v603 = vsel %vm585, %v601, %v602
      %v604 = vrot.slane %v551, 1
      %v605 = vrot.slane %v561, 1
      %v606 = vsel %vm585, %v604, %v605
      %v607 = vrot.slane %v552, 1
      %v608 = vrot.slane %v562, 1
      %v609 = vsel %vm585, %v607, %v608
      %v610 = vrot.slane %v553, 1
      %v611 = vrot.slane %v563, 1
      %v612 = vsel %vm585, %v610, %v611
      %v613 = vrot.slane %v554, 1
      %v614 = vrot.slane %v564, 1
      %v615 = vsel %vm585, %v613, %v614
      %616 = vrot.lane.b32.xlu0 %v588, 8
      %v617 = vpop.permute.xlu0 %616
      %618 = vrot.lane.b32.xlu0 %v591, 8
      %v619 = vpop.permute.xlu0 %618
      %620 = vrot.lane.b32.xlu0 %v594, 8
      %v621 = vpop.permute.xlu0 %620
      %622 = vrot.lane.b32.xlu0 %v597, 8
      %v623 = vpop.permute.xlu0 %622
      %624 = vrot.lane.b32.xlu0 %v600, 8
      %v625 = vpop.permute.xlu0 %624
      %626 = vrot.lane.b32.xlu0 %v603, 8
      %v627 = vpop.permute.xlu0 %626
      %628 = vrot.lane.b32.xlu0 %v606, 8
      %v629 = vpop.permute.xlu0 %628
      %630 = vrot.lane.b32.xlu0 %v609, 8
      %v631 = vpop.permute.xlu0 %630
      %632 = vrot.lane.b32.xlu0 %v612, 8
      %v633 = vpop.permute.xlu0 %632
      %634 = vrot.lane.b32.xlu0 %v615, 8
      %v635 = vpop.permute.xlu0 %634
      %vm646 = vcmask 1045504
      %v647 = vrot.slane %v545, 2
      %v648 = vrot.slane %v555, 2
      %v649 = vsel %vm646, %v647, %v648
      %v650 = vrot.slane %v546, 2
      %v651 = vrot.slane %v556, 2
      %v652 = vsel %vm646, %v650, %v651
      %v653 = vrot.slane %v547, 2
      %v654 = vrot.slane %v557, 2
      %v655 = vsel %vm646, %v653, %v654
      %v656 = vrot.slane %v548, 2
      %v657 = vrot.slane %v558, 2
      %v658 = vsel %vm646, %v656, %v657
      %v659 = vrot.slane %v549, 2
      %v660 = vrot.slane %v559, 2
      %v661 = vsel %vm646, %v659, %v660
      %v662 = vrot.slane %v550, 2
      %v663 = vrot.slane %v560, 2
      %v664 = vsel %vm646, %v662, %v663
      %v665 = vrot.slane %v551, 2
      %v666 = vrot.slane %v561, 2
      %v667 = vsel %vm646, %v665, %v666
      %v668 = vrot.slane %v552, 2
      %v669 = vrot.slane %v562, 2
      %v670 = vsel %vm646, %v668, %v669
      %v671 = vrot.slane %v553, 2
      %v672 = vrot.slane %v563, 2
      %v673 = vsel %vm646, %v671, %v672
      %v674 = vrot.slane %v554, 2
      %v675 = vrot.slane %v564, 2
      %v676 = vsel %vm646, %v674, %v675
      %677 = vrot.lane.b32.xlu0 %v649, 16
      %v678 = vpop.permute.xlu0 %677
      %679 = vrot.lane.b32.xlu0 %v652, 16
      %v680 = vpop.permute.xlu0 %679
      %681 = vrot.lane.b32.xlu0 %v655, 16
      %v682 = vpop.permute.xlu0 %681
      %683 = vrot.lane.b32.xlu0 %v658, 16
      %v684 = vpop.permute.xlu0 %683
      %685 = vrot.lane.b32.xlu0 %v661, 16
      %v686 = vpop.permute.xlu0 %685
      %687 = vrot.lane.b32.xlu0 %v664, 16
      %v688 = vpop.permute.xlu0 %687
      %689 = vrot.lane.b32.xlu0 %v667, 16
      %v690 = vpop.permute.xlu0 %689
      %691 = vrot.lane.b32.xlu0 %v670, 16
      %v692 = vpop.permute.xlu0 %691
      %693 = vrot.lane.b32.xlu0 %v673, 16
      %v694 = vpop.permute.xlu0 %693
      %695 = vrot.lane.b32.xlu0 %v676, 16
      %v696 = vpop.permute.xlu0 %695
      %vm707 = vcmask 64512
      %v708 = vsel %vm707, %v545, %v617
      %v709 = vsel %vm707, %v546, %v619
      %v710 = vsel %vm707, %v547, %v621
      %v711 = vsel %vm707, %v548, %v623
      %v712 = vsel %vm707, %v549, %v625
      %v713 = vsel %vm707, %v550, %v627
      %v714 = vsel %vm707, %v551, %v629
      %v715 = vsel %vm707, %v552, %v631
      %v716 = vsel %vm707, %v553, %v633
      %v717 = vsel %vm707, %v554, %v635
      %vm718 = vcmask 130048
      %v719 = vsel %vm718, %v708, %v678
      %v720 = vsel %vm718, %v709, %v680
      %v721 = vsel %vm718, %v710, %v682
      %v722 = vsel %vm718, %v711, %v684
      %v723 = vsel %vm718, %v712, %v686
      %v724 = vsel %vm718, %v713, %v688
      %v725 = vsel %vm718, %v714, %v690
      %v726 = vsel %vm718, %v715, %v692
      %v727 = vsel %vm718, %v716, %v694
      %v728 = vsel %vm718, %v717, %v696
      %737 = vrot.lane.b32.xlu0 %v720, 24
      %v738 = vpop.permute.xlu0 %737
      %739 = vrot.lane.b32.xlu0 %v721, 24
      %v740 = vpop.permute.xlu0 %739
      %741 = vrot.lane.b32.xlu0 %v722, 24
      %v742 = vpop.permute.xlu0 %741
      %743 = vrot.lane.b32.xlu0 %v723, 24
      %v744 = vpop.permute.xlu0 %743
      %745 = vrot.lane.b32.xlu0 %v724, 24
      %v746 = vpop.permute.xlu0 %745
      %747 = vrot.lane.b32.xlu0 %v725, 24
      %v748 = vpop.permute.xlu0 %747
      %749 = vrot.lane.b32.xlu0 %v726, 24
      %v750 = vpop.permute.xlu0 %749
      %751 = vrot.lane.b32.xlu0 %v727, 24
      %v752 = vpop.permute.xlu0 %751
      %762 = vrot.lane.b32.xlu0 %v721, 48
      %v763 = vpop.permute.xlu0 %762
      %764 = vrot.lane.b32.xlu0 %v722, 48
      %v765 = vpop.permute.xlu0 %764
      %766 = vrot.lane.b32.xlu0 %v723, 48
      %v767 = vpop.permute.xlu0 %766
      %768 = vrot.lane.b32.xlu0 %v724, 48
      %v769 = vpop.permute.xlu0 %768
      %770 = vrot.lane.b32.xlu0 %v725, 48
      %v771 = vpop.permute.xlu0 %770
      %772 = vrot.lane.b32.xlu0 %v726, 48
      %v773 = vpop.permute.xlu0 %772
      %774 = vrot.lane.b32.xlu0 %v727, 48
      %v775 = vpop.permute.xlu0 %774
      %776 = vrot.lane.b32.xlu0 %v728, 48
      %v777 = vpop.permute.xlu0 %776
      %vm786 = vcmask 195584
      %v787 = vsel %vm786, %v719, %v738
      %v788 = vsel %vm786, %v720, %v740
      %v789 = vsel %vm786, %v721, %v742
      %v790 = vsel %vm786, %v722, %v744
      %v791 = vsel %vm786, %v723, %v746
      %v792 = vsel %vm786, %v724, %v748
      %v793 = vsel %vm786, %v725, %v750
      %v794 = vsel %vm786, %v726, %v752
      %vm795 = vcmask 392192
      %v796 = vsel %vm795, %v787, %v763
      %v797 = vsel %vm795, %v788, %v765
      %v798 = vsel %vm795, %v789, %v767
      %v799 = vsel %vm795, %v790, %v769
      %v800 = vsel %vm795, %v791, %v771
      %v801 = vsel %vm795, %v792, %v773
      %v802 = vsel %vm795, %v793, %v775
      %v803 = vsel %vm795, %v794, %v777
      %v804 = vld [vmem:[%s5] sm:$0xff]
      %v805 = vld [vmem:[%s5 + $0x8] sm:$0xff]
      %v806 = vld [vmem:[%s5 + $0x10] sm:$0xff]
      %v807 = vld [vmem:[%s5 + $0x18] sm:$0xff]
      %v808 = vld [vmem:[%s5 + $0x20] sm:$0xff]
      %v809 = vld [vmem:[%s5 + $0x28] sm:$0xff]
      %v810 = vld [vmem:[%s5 + $0x30] sm:$0xff]
      %v811 = vld [vmem:[%s5 + $0x38] sm:$0xff]
      %v812 = vld [vmem:[%s5 + $0x40] sm:$0xff]
      %vm813 = vcmask 588800
      %v815 = vsel %vm813, %v796, 0
      %v818 = vsel %vm813, %v797, 0
      %v821 = vsel %vm813, %v798, 0
      %v824 = vsel %vm813, %v799, 0
      %v827 = vsel %vm813, %v800, 0
      %v830 = vsel %vm813, %v801, 0
      %v833 = vsel %vm813, %v802, 0
      %v836 = vsel %vm813, %v803, 0
      %838 = vmatprep.subr.mxu0 0.0
      %839 = vmatpush1.msra.mxu0 0.0
      %840 = vmatprep.subr.mxu0 0.0
      %841 = vmatpush1.msra.mxu0 0.0
      %842 = vmatprep.subr.mxu0 0.0
      %843 = vmatpush1.msra.mxu0 0.0
      %844 = vmatprep.subr.mxu0 0.0
      %845 = vmatpush1.msra.mxu0 0.0
      %846 = vmatprep.subr.mxu0 0.0
      %847 = vmatpush1.msra.mxu0 0.0
      %848 = vmatprep.subr.mxu0 0.0
      %849 = vmatpush1.msra.mxu0 0.0
      %850 = vmatprep.subr.mxu0 0.0
      %851 = vmatpush1.msra.mxu0 0.0
      %852 = vmatprep.subr.mxu0 0.0
      %853 = vmatpush1.msra.mxu0 %v812
      %854 = vmatprep.subr.mxu0 0.0
      %855 = vmatpush1.msra.mxu0 %v811
      %856 = vmatprep.subr.mxu0 0.0
      %857 = vmatpush1.msra.mxu0 %v810
      %858 = vmatprep.subr.mxu0 0.0
      %859 = vmatpush1.msra.mxu0 %v809
      %860 = vmatprep.subr.mxu0 0.0
      %861 = vmatpush1.msra.mxu0 %v808
      %862 = vmatprep.subr.mxu0 0.0
      %863 = vmatpush1.msra.mxu0 %v807
      %864 = vmatprep.subr.mxu0 0.0
      %865 = vmatpush1.msra.mxu0 %v806
      %866 = vmatprep.subr.mxu0 0.0
      %867 = vmatpush1.msra.mxu0 %v805
      %868 = vmatprep.subr.mxu0 0.0
      %869 = vmatpush1.msra.mxu0 %v804
      %870 = vmatprep.subr.mxu0 0.0
      %871 = vmatpush2.msra.mxu0 0.0
      %872 = vmatprep.subr.mxu0 0.0
      %873 = vmatpush2.msra.mxu0 0.0
      %874 = vmatprep.subr.mxu0 0.0
      %875 = vmatpush2.msra.mxu0 0.0
      %876 = vmatprep.subr.mxu0 0.0
      %877 = vmatpush2.msra.mxu0 0.0
      %878 = vmatprep.subr.mxu0 0.0
      %879 = vmatpush2.msra.mxu0 0.0
      %880 = vmatprep.subr.mxu0 0.0
      %881 = vmatpush2.msra.mxu0 0.0
      %882 = vmatprep.subr.mxu0 0.0
      %883 = vmatpush2.msra.mxu0 0.0
      %884 = vmatprep.subr.mxu0 0.0
      %885 = vmatpush2.msra.mxu0 0.0
      %886 = vmatprep.subr.mxu0 0.0
      %887 = vmatpush2.msra.mxu0 0.0
      %888 = vmatprep.subr.mxu0 0.0
      %889 = vmatpush2.msra.mxu0 0.0
      %890 = vmatprep.subr.mxu0 0.0
      %891 = vmatpush2.msra.mxu0 0.0
      %892 = vmatprep.subr.mxu0 0.0
      %893 = vmatpush2.msra.mxu0 0.0
      %894 = vmatprep.subr.mxu0 0.0
      %895 = vmatpush2.msra.mxu0 0.0
      %896 = vmatprep.subr.mxu0 0.0
      %897 = vmatpush2.msra.mxu0 0.0
      %898 = vmatprep.subr.mxu0 0.0
      %899 = vmatpush2.msra.mxu0 0.0
      %900 = vmatprep.subr.mxu0 0.0
      %901 = vmatpush2.msra.mxu0 0.0
      %902 = vmatprep.mubr.f32.mxu0 0.0
      %903 = vmatmul.mubr.f32.gmra.mxu0 %v815
      %v904 = vpop.f32.mrf.mxu0
      %v905 = vadd.f32 0.0, %v904
      %v906 = vpop.f32.mrf.mxu0
      %907 = vmatprep.mubr.f32.mxu0 0.0
      %908 = vmatmul.mubr.f32.gmra.mxu0 %v818
      %v909 = vpop.f32.mrf.mxu0
      %v910 = vadd.f32 0.0, %v909
      %v911 = vpop.f32.mrf.mxu0
      %912 = vmatprep.mubr.f32.mxu0 0.0
      %913 = vmatmul.mubr.f32.gmra.mxu0 %v821
      %v914 = vpop.f32.mrf.mxu0
      %v915 = vadd.f32 0.0, %v914
      %v916 = vpop.f32.mrf.mxu0
      %917 = vmatprep.mubr.f32.mxu0 0.0
      %918 = vmatmul.mubr.f32.gmra.mxu0 %v824
      %v919 = vpop.f32.mrf.mxu0
      %v920 = vadd.f32 0.0, %v919
      %v921 = vpop.f32.mrf.mxu0
      %922 = vmatprep.mubr.f32.mxu0 0.0
      %923 = vmatmul.mubr.f32.gmra.mxu0 %v827
      %v924 = vpop.f32.mrf.mxu0
      %v925 = vadd.f32 0.0, %v924
      %v926 = vpop.f32.mrf.mxu0
      %927 = vmatprep.mubr.f32.mxu0 0.0
      %928 = vmatmul.mubr.f32.gmra.mxu0 %v830
      %v929 = vpop.f32.mrf.mxu0
      %v930 = vadd.f32 0.0, %v929
      %v931 = vpop.f32.mrf.mxu0
      %932 = vmatprep.mubr.f32.mxu0 0.0
      %933 = vmatmul.mubr.f32.gmra.mxu0 %v833
      %v934 = vpop.f32.mrf.mxu0
      %v935 = vadd.f32 0.0, %v934
      %v936 = vpop.f32.mrf.mxu0
      %937 = vmatprep.mubr.f32.mxu0 0.0
      %938 = vmatmul.mubr.f32.gmra.mxu0 %v836
      %v939 = vpop.f32.mrf.mxu0
      %v940 = vadd.f32 0.0, %v939
      %v941 = vpop.f32.mrf.mxu0
      %942 = vdwg.mxu0
      %v951 = vrot.slane %v910, 7
      %vm952 = vcmask 1041409
      %v953 = vsel %vm952, %v951, %v905
      %v954 = vrot.slane %v915, 6
      %vm955 = vcmask 1042434
      %v956 = vsel %vm955, %v954, %v953
      %v957 = vrot.slane %v920, 5
      %vm958 = vcmask 1043459
      %v959 = vsel %vm958, %v957, %v956
      %v960 = vrot.slane %v925, 4
      %vm961 = vcmask 1044484
      %v962 = vsel %vm961, %v960, %v959
      %v963 = vrot.slane %v930, 3
      %vm964 = vcmask 1045509
      %v965 = vsel %vm964, %v963, %v962
      %v966 = vrot.slane %v935, 2
      %vm967 = vcmask 1046534
      %v968 = vsel %vm967, %v966, %v965
      %v969 = vrot.slane %v940, 1
      %vm970 = vcmask 1047559
      %v971 = vsel %vm970, %v969, %v968
      %v973 = vrot.slane %v905, 1
      %v974 = vsel %vm952, %v910, %v973
      %v975 = vrot.slane %v915, 7
      %v976 = vsel %vm955, %v975, %v974
      %v977 = vrot.slane %v920, 6
      %v978 = vsel %vm958, %v977, %v976
      %v979 = vrot.slane %v925, 5
      %v980 = vsel %vm961, %v979, %v978
      %v981 = vrot.slane %v930, 4
      %v982 = vsel %vm964, %v981, %v980
      %v983 = vrot.slane %v935, 3
      %v984 = vsel %vm967, %v983, %v982
      %v985 = vrot.slane %v940, 2
      %v986 = vsel %vm970, %v985, %v984
      %987 = vrot.lane.b32.xlu0 %v986, 8
      %v988 = vpop.permute.xlu0 %987
      %v990 = vrot.slane %v905, 2
      %v991 = vrot.slane %v910, 1
      %v992 = vsel %vm952, %v991, %v990
      %v993 = vsel %vm955, %v915, %v992
      %v994 = vrot.slane %v920, 7
      %v995 = vsel %vm958, %v994, %v993
      %v996 = vrot.slane %v925, 6
      %v997 = vsel %vm961, %v996, %v995
      %v998 = vrot.slane %v930, 5
      %v999 = vsel %vm964, %v998, %v997
      %v1000 = vrot.slane %v935, 4
      %v1001 = vsel %vm967, %v1000, %v999
      %v1002 = vrot.slane %v940, 3
      %v1003 = vsel %vm970, %v1002, %v1001
      %1004 = vrot.lane.b32.xlu0 %v1003, 16
      %v1005 = vpop.permute.xlu0 %1004
      %v1007 = vrot.slane %v905, 3
      %v1008 = vrot.slane %v910, 2
      %v1009 = vsel %vm952, %v1008, %v1007
      %v1010 = vrot.slane %v915, 1
      %v1011 = vsel %vm955, %v1010, %v1009
      %v1012 = vsel %vm958, %v920, %v1011
      %v1013 = vrot.slane %v925, 7
      %v1014 = vsel %vm961, %v1013, %v1012
      %v1015 = vrot.slane %v930, 6
      %v1016 = vsel %vm964, %v1015, %v1014
      %v1017 = vrot.slane %v935, 5
      %v1018 = vsel %vm967, %v1017, %v1016
      %v1019 = vrot.slane %v940, 4
      %v1020 = vsel %vm970, %v1019, %v1018
      %1021 = vrot.lane.b32.xlu0 %v1020, 24
      %v1022 = vpop.permute.xlu0 %1021
      %v1024 = vrot.slane %v905, 4
      %v1025 = vrot.slane %v910, 3
      %v1026 = vsel %vm952, %v1025, %v1024
      %v1027 = vrot.slane %v915, 2
      %v1028 = vsel %vm955, %v1027, %v1026
      %v1029 = vrot.slane %v920, 1
      %v1030 = vsel %vm958, %v1029, %v1028
      %v1031 = vsel %vm961, %v925, %v1030
      %v1032 = vrot.slane %v930, 7
      %v1033 = vsel %vm964, %v1032, %v1031
      %v1034 = vrot.slane %v935, 6
      %v1035 = vsel %vm967, %v1034, %v1033
      %v1036 = vrot.slane %v940, 5
      %v1037 = vsel %vm970, %v1036, %v1035
      %1038 = vrot.lane.b32.xlu0 %v1037, 32
      %v1039 = vpop.permute.xlu0 %1038
      %v1041 = vrot.slane %v905, 5
      %v1042 = vrot.slane %v910, 4
      %v1043 = vsel %vm952, %v1042, %v1041
      %v1044 = vrot.slane %v915, 3
      %v1045 = vsel %vm955, %v1044, %v1043
      %v1046 = vrot.slane %v920, 2
      %v1047 = vsel %vm958, %v1046, %v1045
      %v1048 = vrot.slane %v925, 1
      %v1049 = vsel %vm961, %v1048, %v1047
      %v1050 = vsel %vm964, %v930, %v1049
      %v1051 = vrot.slane %v935, 7
      %v1052 = vsel %vm967, %v1051, %v1050
      %v1053 = vrot.slane %v940, 6
      %v1054 = vsel %vm970, %v1053, %v1052
      %1055 = vrot.lane.b32.xlu0 %v1054, 40
      %v1056 = vpop.permute.xlu0 %1055
      %v1058 = vrot.slane %v905, 6
      %v1059 = vrot.slane %v910, 5
      %v1060 = vsel %vm952, %v1059, %v1058
      %v1061 = vrot.slane %v915, 4
      %v1062 = vsel %vm955, %v1061, %v1060
      %v1063 = vrot.slane %v920, 3
      %v1064 = vsel %vm958, %v1063, %v1062
      %v1065 = vrot.slane %v925, 2
      %v1066 = vsel %vm961, %v1065, %v1064
      %v1067 = vrot.slane %v930, 1
      %v1068 = vsel %vm964, %v1067, %v1066
      %v1069 = vsel %vm967, %v935, %v1068
      %v1070 = vrot.slane %v940, 7
      %v1071 = vsel %vm970, %v1070, %v1069
      %1072 = vrot.lane.b32.xlu0 %v1071, 48
      %v1073 = vpop.permute.xlu0 %1072
      %v1075 = vrot.slane %v905, 7
      %v1076 = vrot.slane %v910, 6
      %v1077 = vsel %vm952, %v1076, %v1075
      %v1078 = vrot.slane %v915, 5
      %v1079 = vsel %vm955, %v1078, %v1077
      %v1080 = vrot.slane %v920, 4
      %v1081 = vsel %vm958, %v1080, %v1079
      %v1082 = vrot.slane %v925, 3
      %v1083 = vsel %vm961, %v1082, %v1081
      %v1084 = vrot.slane %v930, 2
      %v1085 = vsel %vm964, %v1084, %v1083
      %v1086 = vrot.slane %v935, 1
      %v1087 = vsel %vm967, %v1086, %v1085
      %v1088 = vsel %vm970, %v940, %v1087
      %1089 = vrot.lane.b32.xlu0 %v1088, 56
      %v1090 = vpop.permute.xlu0 %1089
      %v1092 = vsel %vm707, %v971, %v988
      %v1093 = vsel %vm718, %v1092, %v1005
      %v1094 = vsel %vm786, %v1093, %v1022
      %vm1095 = vcmask 261120
      %v1096 = vsel %vm1095, %v1094, %v1039
      %vm1097 = vcmask 326656
      %v1098 = vsel %vm1097, %v1096, %v1056
      %v1099 = vsel %vm795, %v1098, %v1073
      %vm1100 = vcmask 457728
      %v1101 = vsel %vm1100, %v1099, %v1090
      %vm1102 = vcmask 523264
      %1103 = vst.msk [vmem:[%s442] sm:$0xff] %vm1102, %v1101
      %v1104 = vsel %vm707, %v905, 0.0
      %v1105 = vsel %vm707, %v910, 0.0
      %v1106 = vadd.f32 %v1104, %v1105
      %v1107 = vsel %vm707, %v915, 0.0
      %v1108 = vadd.f32 %v1106, %v1107
      %v1109 = vsel %vm707, %v920, 0.0
      %v1110 = vadd.f32 %v1108, %v1109
      %v1111 = vsel %vm707, %v925, 0.0
      %v1112 = vadd.f32 %v1110, %v1111
      %v1113 = vsel %vm707, %v930, 0.0
      %v1114 = vadd.f32 %v1112, %v1113
      %v1115 = vsel %vm707, %v935, 0.0
      %v1116 = vadd.f32 %v1114, %v1115
      %v1117 = vsel %vm707, %v940, 0.0
      %v1118 = vadd.f32 %v1116, %v1117
      %v1119 = vrot.slane %v1118, 4
      %v1120 = vadd.f32 %v1118, %v1119
      %v1121 = vrot.slane %v1120, 2
      %v1122 = vadd.f32 %v1120, %v1121
      %v1123 = vrot.slane %v1122, 1
      %v1124 = vadd.f32 %v1122, %v1123
      %v1125 = vmul.f32 %v1124, 0.015625
      %v1126 = vsub.f32 %v905, %v1125
      %v1127 = vsub.f32 %v910, %v1125
      %v1128 = vsub.f32 %v915, %v1125
      %v1129 = vsub.f32 %v920, %v1125
      %v1130 = vsub.f32 %v925, %v1125
      %v1131 = vsub.f32 %v930, %v1125
      %v1132 = vsub.f32 %v935, %v1125
      %v1133 = vsub.f32 %v940, %v1125
      %v1134 = vmul.f32 %v1126, %v1126
      %v1135 = vmul.f32 %v1127, %v1127
      %v1136 = vmul.f32 %v1128, %v1128
      %v1137 = vmul.f32 %v1129, %v1129
      %v1138 = vmul.f32 %v1130, %v1130
      %v1139 = vmul.f32 %v1131, %v1131
      %v1140 = vmul.f32 %v1132, %v1132
      %v1141 = vmul.f32 %v1133, %v1133
      %v1142 = vsel %vm707, %v1134, 0.0
      %v1143 = vsel %vm707, %v1135, 0.0
      %v1144 = vadd.f32 %v1142, %v1143
      %v1145 = vsel %vm707, %v1136, 0.0
      %v1146 = vadd.f32 %v1144, %v1145
      %v1147 = vsel %vm707, %v1137, 0.0
      %v1148 = vadd.f32 %v1146, %v1147
      %v1149 = vsel %vm707, %v1138, 0.0
      %v1150 = vadd.f32 %v1148, %v1149
      %v1151 = vsel %vm707, %v1139, 0.0
      %v1152 = vadd.f32 %v1150, %v1151
      %v1153 = vsel %vm707, %v1140, 0.0
      %v1154 = vadd.f32 %v1152, %v1153
      %v1155 = vsel %vm707, %v1141, 0.0
      %v1156 = vadd.f32 %v1154, %v1155
      %v1157 = vrot.slane %v1156, 4
      %v1158 = vadd.f32 %v1156, %v1157
      %v1159 = vrot.slane %v1158, 2
      %v1160 = vadd.f32 %v1158, %v1159
      %v1161 = vrot.slane %v1160, 1
      %v1162 = vadd.f32 %v1160, %v1161
      %v1163 = vsel %vm544, %v1125, %v1162
      %vm1164 = vcmask 58368
      %1165 = vst.msk [vmem:[%s449] sm:$0x3] %vm1164, %v1163
      %p1166 = scmp.lt.s32.totalorder %s23, 1
      %s1167 = scalar_select %p1166, %s23, 1
      %p1168 = scmp.lt.s32.totalorder %s24, 0
      %s1169 = scalar_select %p1168, %s24, 0
      %s1170 = sadd.s32 %s1169, %s1167
      %s1171 = smul.addr %s1170, 8
      %s1172 = scalar_lea.vmem %s6, %s1171
      %p1173 = scmp.lt.s32.totalorder %s23, 1
      %s1174 = scalar_select %p1173, %s23, 1
      %p1175 = scmp.lt.s32.totalorder %s24, 0
      %s1176 = scalar_select %p1175, %s24, 0
      %s1177 = sadd.s32 %s1176, %s1174
      %s1178 = smul.addr %s1177, 2
      %s1179 = scalar_lea.vmem %s7, %s1178
      // Predicated region
      $region45: #{down_block.4} parent=43 // pred_check
        %p1180 = pneg %p214
      $region46: #{down_block.4} parent=43 // pred_check_branch
        %1182 = sbr.rel (%p1180) target = $region48
      $region47: #{down_block.4} parent=43 // pred_region
        _
      $region48: #{down_block.4} parent=43 // pred_fallthru
        _
      // Predicated region
      $region49: #{down_block.4} parent=43 // pred_check
        %p1183 = pneg %p242
      $region50: #{down_block.4} parent=43 // pred_check_branch
        %1185 = sbr.rel (%p1183) target = $region52
      $region51: #{down_block.4} parent=43 // pred_region
        _
      $region52: #{down_block.4} parent=43 // pred_fallthru
        _
    $region44: #{down_block.4} parent=5 // pred_fallthru
      _
    %p1186 = scmp.le.s32.totalorder 2, %s14
    // Predicated region
    $region53: #{down_block.4} parent=5 // pred_check
      %p1187 = pneg %p1186
    $region54: #{down_block.4} parent=5 // pred_check_branch
      %1189 = sbr.rel (%p1187) target = $region56
    $region55: #{down_block.4} parent=5 // pred_region
      %s1190 = ssub.s32 %s14, 2
      // Predicated region
      $region57: #{down_block.4} parent=55 // pred_check
        %p1191 = pneg %p220
      $region58: #{down_block.4} parent=55 // pred_check_branch
        %1193 = sbr.rel (%p1191) target = $region60
      $region59: #{down_block.4} parent=55 // pred_region
        %p1194 = scmp.lt.s32.totalorder %s25, 1
        %s1195 = scalar_select %p1194, %s25, 1
        %p1196 = scmp.lt.s32.totalorder %s26, 0
        %s1197 = scalar_select %p1196, %s26, 0
        %s1198 = sadd.s32 %s1197, %s1195
        %s1199 = smul.addr %s1198, 8
        %s1200 = scalar_lea.vmem %s6, %s1199
      $region60: #{down_block.4} parent=55 // pred_fallthru
        _
      // Predicated region
      $region61: #{down_block.4} parent=55 // pred_check
        %p1201 = pneg %p248
      $region62: #{down_block.4} parent=55 // pred_check_branch
        %1203 = sbr.rel (%p1201) target = $region64
      $region63: #{down_block.4} parent=55 // pred_region
        %p1204 = scmp.lt.s32.totalorder %s25, 1
        %s1205 = scalar_select %p1204, %s25, 1
        %p1206 = scmp.lt.s32.totalorder %s26, 0
        %s1207 = scalar_select %p1206, %s26, 0
        %s1208 = sadd.s32 %s1207, %s1205
        %s1209 = smul.addr %s1208, 2
        %s1210 = scalar_lea.vmem %s7, %s1209
      $region64: #{down_block.4} parent=55 // pred_fallthru
        _
    $region56: #{down_block.4} parent=5 // pred_fallthru
      _
  $region6: #{down_block.4} parent=0 // loop_footer
    %s18 = sadd.s32 1, %s14
  $region7: #{down_block.4} parent=0 // loop_footer_branch
    %13 = sbr.rel target = $region3
  $region8: #{down_block.4} parent=0 // loop_exit
    _

// kernel: down_block.3
$region0: #{down_block.3}
  #allocation0 [shape = 'u32[]', space=smem, size = 0x4, offset = 0x4, fixed_abs, tag = 'smem constant byte address 0x4 - core index']
  #allocation1 [shape = 'u32[144,128]{1,0:T(1,128)}', space=vmem, size = 0x12000, scoped, tag = 'internal scratch']
  %s0 = inlined_call_operand.vmem [shape: f32[2,16,16,4], index: 0, kind: input, shape index: {}, may-alias: {0,1,2}]
  %s1 = inlined_call_operand.vmem [shape: f32[2,16,16,4], index: 1, kind: input, shape index: {}, may-alias: {0,1,2}]
  %s2 = inlined_call_operand.vmem [shape: f32[2,16,16,4], index: 2, kind: input, shape index: {}, may-alias: {0,1,2}]
  %s3 = inlined_call_operand.vmem [shape: f32[1,4], index: 3, kind: input, shape index: {}]
  %s4 = inlined_call_operand.vmem [shape: f32[1,4], index: 4, kind: input, shape index: {}]
  %s5 = inlined_call_operand.vmem [shape: f32[36,8], index: 5, kind: input, shape index: {}]
  %s6 = inlined_call_operand.vmem [shape: f32[2,8,64], index: 6, kind: output, shape index: {0}]
  %s7 = inlined_call_operand.vmem [shape: f32[2,1,2,8], index: 7, kind: output, shape index: {1}]
  %8 = xla_tuple %s6, %s7
  %s9 = sld [smem:[#allocation0]]
  $region65: #{down_block.3} parent=0
    _
  %s11 = ssub.s32 1, %s9
  %s12 = scalar_select 0, %s11, %s9
  loop: start=0, step=1, limit=4
  $region2: #{down_block.3} parent=0 // loop_pre_header
    _
  $region3: #{down_block.3} parent=0 // loop_header
    %s14 = sphi 0, %s18
    %p15 = scmp.ge.s32.totalorder %s14, 4
    %s21 = sphi 0, %s33
    %s22 = sphi 0, %s29
    %s23 = sphi 0, %s21
    %s24 = sphi 0, %s22
    %s25 = sphi 0, %s23
    %s26 = sphi 0, %s24
    %s38 = sphi 0, %s40
    %s41 = sphi 0, %s38
    %s42 = sphi 0, %s41
    %s58 = sphi 0, %s42
    %s74 = sphi 0, %s76
    %s77 = sphi 0, %s74
    %s78 = sphi 0, %s77
    %s94 = sphi 0, %s78
    %s110 = sphi 0, %s112
    %s113 = sphi 0, %s110
    %s114 = sphi 0, %s113
    %s130 = sphi 0, %s114
    %s134 = sphi 0, %s134
    %s136 = sphi 0, %s134
    %s137 = sphi 0, %s136
    %s151 = sphi 0, %s137
    %s155 = sphi 0, %s155
    %s157 = sphi 0, %s155
    %s158 = sphi 0, %s157
    %s172 = sphi 0, %s158
    %s176 = sphi 0, %s176
    %s178 = sphi 0, %s176
    %s179 = sphi 0, %s178
    %s193 = sphi 0, %s179
    %s201 = sphi 0, %s203
    %s204 = sphi 0, %s201
    %s205 = sphi 0, %s204
    %s221 = sphi 0, %s205
    %s229 = sphi 0, %s231
    %s232 = sphi 0, %s229
    %s233 = sphi 0, %s232
    %s249 = sphi 0, %s233
  $region4: #{down_block.3} parent=0 // loop_header_branch
    %17 = sbr.rel (%p15) target = $region8
  $region5: #{down_block.3} parent=0 // loop_body
    %s19 = ssub.s32 %s14, 1
    %s20 = ssub.s32 %s14, 2
    %s27 = sadd.s32 1, %s22
    %p28 = scmp.ge.s32.totalorder %s27, 1
    %s29 = scalar_select %p28, 0, %s27
    %s30 = sadd.s32 1, %s21
    %s31 = scalar_select %p28, %s30, %s21
    %p32 = scmp.ge.s32.totalorder %s31, 2
    %s33 = scalar_select %p32, 0, %s31
    %s34 = ssub.s32 %s21, %s33
    %s35 = ssub.s32 %s22, %s29
    %s36 = sor.u32 %s34, %s35
    %p37 = scmp.eq.s32.totalorder %s36, 0
    %s39 = sadd.s32 %s38, 1
    %s40 = scalar_select %p37, %s38, %s39
    %p43 = pneg %p37
    %p44 = scmp.eq.s32.totalorder %s14, 1
    %p45 = por %p43, %p44
    %p46 = scmp.ne.s32.totalorder %s38, %s41
    %p47 = scmp.eq.s32.totalorder %s14, 0
    %p48 = por %p46, %p47
    %p49 = scmp.ne.s32.totalorder %s38, %s41
    %p50 = scmp.eq.s32.totalorder %s19, 1
    %p51 = por %p49, %p50
    %p52 = scmp.ne.s32.totalorder %s41, %s42
    %p53 = scmp.eq.s32.totalorder %s19, 0
    %p54 = por %p52, %p53
    %p55 = scmp.ne.s32.totalorder %s41, %s42
    %p56 = scmp.eq.s32.totalorder %s20, 1
    %p57 = por %p55, %p56
    %p59 = scmp.ne.s32.totalorder %s42, %s58
    %p60 = scmp.eq.s32.totalorder %s20, 0
    %p61 = por %p59, %p60
    %s62 = smul.u32 %s22, 8
    %s63 = ssub.s32 %s62, 1
    %p64 = scmp.gt.s32.totalorder %s63, 0
    %s65 = scalar_select %p64, %s63, 0
    %s66 = smul.u32 %s29, 8
    %s67 = ssub.s32 %s66, 1
    %p68 = scmp.gt.s32.totalorder %s67, 0
    %s69 = scalar_select %p68, %s67, 0
    %s70 = ssub.s32 %s21, %s33
    %s71 = ssub.s32 %s65, %s69
    %s72 = sor.u32 %s70, %s71
    %p73 = scmp.eq.s32.totalorder %s72, 0
    %s75 = sadd.s32 %s74, 1
    %s76 = scalar_select %p73, %s74, %s75
    %p79 = pneg %p73
    %p80 = scmp.eq.s32.totalorder %s14, 1
    %p81 = por %p79, %p80
    %p82 = scmp.ne.s32.totalorder %s74, %s77
    %p83 = scmp.eq.s32.totalorder %s14, 0
    %p84 = por %p82, %p83
    %p85 = scmp.ne.s32.totalorder %s74, %s77
    %p86 = scmp.eq.s32.totalorder %s19, 1
    %p87 = por %p85, %p86
    %p88 = scmp.ne.s32.totalorder %s77, %s78
    %p89 = scmp.eq.s32.totalorder %s19, 0
    %p90 = por %p88, %p89
    %p91 = scmp.ne.s32.totalorder %s77, %s78
    %p92 = scmp.eq.s32.totalorder %s20, 1
    %p93 = por %p91, %p92
    %p95 = scmp.ne.s32.totalorder %s78, %s94
    %p96 = scmp.eq.s32.totalorder %s20, 0
    %p97 = por %p95, %p96
    %s98 = smul.u32 %s22, 8
    %s99 = sadd.s32 %s98, 8
    %p100 = scmp.lt.s32.totalorder %s99, 7
    %s101 = scalar_select %p100, %s99, 7
    %s102 = smul.u32 %s29, 8
    %s103 = sadd.s32 %s102, 8
    %p104 = scmp.lt.s32.totalorder %s103, 7
    %s105 = scalar_select %p104, %s103, 7
    %s106 = ssub.s32 %s21, %s33
    %s107 = ssub.s32 %s101, %s105
    %s108 = sor.u32 %s106, %s107
    %p109 = scmp.eq.s32.totalorder %s108, 0
    %s111 = sadd.s32 %s110, 1
    %s112 = scalar_select %p109, %s110, %s111
    %p115 = pneg %p109
    %p116 = scmp.eq.s32.totalorder %s14, 1
    %p117 = por %p115, %p116
    %p118 = scmp.ne.s32.totalorder %s110, %s113
    %p119 = scmp.eq.s32.totalorder %s14, 0
    %p120 = por %p118, %p119
    %p121 = scmp.ne.s32.totalorder %s110, %s113
    %p122 = scmp.eq.s32.totalorder %s19, 1
    %p123 = por %p121, %p122
    %p124 = scmp.ne.s32.totalorder %s113, %s114
    %p125 = scmp.eq.s32.totalorder %s19, 0
    %p126 = por %p124, %p125
    %p127 = scmp.ne.s32.totalorder %s113, %s114
    %p128 = scmp.eq.s32.totalorder %s20, 1
    %p129 = por %p127, %p128
    %p131 = scmp.ne.s32.totalorder %s114, %s130
    %p132 = scmp.eq.s32.totalorder %s20, 0
    %p133 = por %p131, %p132
    %s135 = sadd.s32 %s134, 1
    %p138 = scmp.eq.s32.totalorder %s14, 1
    %p139 = scmp.ne.s32.totalorder %s134, %s136
    %p140 = scmp.eq.s32.totalorder %s14, 0
    %p141 = por %p139, %p140
    %p142 = scmp.ne.s32.totalorder %s134, %s136
    %p143 = scmp.eq.s32.totalorder %s19, 1
    %p144 = por %p142, %p143
    %p145 = scmp.ne.s32.totalorder %s136, %s137
    %p146 = scmp.eq.s32.totalorder %s19, 0
    %p147 = por %p145, %p146
    %p148 = scmp.ne.s32.totalorder %s136, %s137
    %p149 = scmp.eq.s32.totalorder %s20, 1
    %p150 = por %p148, %p149
    %p152 = scmp.ne.s32.totalorder %s137, %s151
    %p153 = scmp.eq.s32.totalorder %s20, 0
    %p154 = por %p152, %p153
    %s156 = sadd.s32 %s155, 1
    %p159 = scmp.eq.s32.totalorder %s14, 1
    %p160 = scmp.ne.s32.totalorder %s155, %s157
    %p161 = scmp.eq.s32.totalorder %s14, 0
    %p162 = por %p160, %p161
    %p163 = scmp.ne.s32.totalorder %s155, %s157
    %p164 = scmp.eq.s32.totalorder %s19, 1
    %p165 = por %p163, %p164
    %p166 = scmp.ne.s32.totalorder %s157, %s158
    %p167 = scmp.eq.s32.totalorder %s19, 0
    %p168 = por %p166, %p167
    %p169 = scmp.ne.s32.totalorder %s157, %s158
    %p170 = scmp.eq.s32.totalorder %s20, 1
    %p171 = por %p169, %p170
    %p173 = scmp.ne.s32.totalorder %s158, %s172
    %p174 = scmp.eq.s32.totalorder %s20, 0
    %p175 = por %p173, %p174
    %s177 = sadd.s32 %s176, 1
    %p180 = scmp.eq.s32.totalorder %s14, 1
    %p181 = scmp.ne.s32.totalorder %s176, %s178
    %p182 = scmp.eq.s32.totalorder %s14, 0
    %p183 = por %p181, %p182
    %p184 = scmp.ne.s32.totalorder %s176, %s178
    %p185 = scmp.eq.s32.totalorder %s19, 1
    %p186 = por %p184, %p185
    %p187 = scmp.ne.s32.totalorder %s178, %s179
    %p188 = scmp.eq.s32.totalorder %s19, 0
    %p189 = por %p187, %p188
    %p190 = scmp.ne.s32.totalorder %s178, %s179
    %p191 = scmp.eq.s32.totalorder %s20, 1
    %p192 = por %p190, %p191
    %p194 = scmp.ne.s32.totalorder %s179, %s193
    %p195 = scmp.eq.s32.totalorder %s20, 0
    %p196 = por %p194, %p195
    %s197 = ssub.s32 %s21, %s33
    %s198 = ssub.s32 %s22, %s29
    %s199 = sor.u32 %s197, %s198
    %p200 = scmp.eq.s32.totalorder %s199, 0
    %s202 = sadd.s32 %s201, 1
    %s203 = scalar_select %p200, %s201, %s202
    %p206 = pneg %p200
    %p207 = scmp.eq.s32.totalorder %s14, 1
    %p208 = por %p206, %p207
    %p209 = scmp.ne.s32.totalorder %s201, %s204
    %p210 = scmp.eq.s32.totalorder %s14, 0
    %p211 = por %p209, %p210
    %p212 = scmp.ne.s32.totalorder %s201, %s204
    %p213 = scmp.eq.s32.totalorder %s19, 1
    %p214 = por %p212, %p213
    %p215 = scmp.ne.s32.totalorder %s204, %s205
    %p216 = scmp.eq.s32.totalorder %s19, 0
    %p217 = por %p215, %p216
    %p218 = scmp.ne.s32.totalorder %s204, %s205
    %p219 = scmp.eq.s32.totalorder %s20, 1
    %p220 = por %p218, %p219
    %p222 = scmp.ne.s32.totalorder %s205, %s221
    %p223 = scmp.eq.s32.totalorder %s20, 0
    %p224 = por %p222, %p223
    %s225 = ssub.s32 %s21, %s33
    %s226 = ssub.s32 %s22, %s29
    %s227 = sor.u32 %s225, %s226
    %p228 = scmp.eq.s32.totalorder %s227, 0
    %s230 = sadd.s32 %s229, 1
    %s231 = scalar_select %p228, %s229, %s230
    %p234 = pneg %p228
    %p235 = scmp.eq.s32.totalorder %s14, 1
    %p236 = por %p234, %p235
    %p237 = scmp.ne.s32.totalorder %s229, %s232
    %p238 = scmp.eq.s32.totalorder %s14, 0
    %p239 = por %p237, %p238
    %p240 = scmp.ne.s32.totalorder %s229, %s232
    %p241 = scmp.eq.s32.totalorder %s19, 1
    %p242 = por %p240, %p241
    %p243 = scmp.ne.s32.totalorder %s232, %s233
    %p244 = scmp.eq.s32.totalorder %s19, 0
    %p245 = por %p243, %p244
    %p246 = scmp.ne.s32.totalorder %s232, %s233
    %p247 = scmp.eq.s32.totalorder %s20, 1
    %p248 = por %p246, %p247
    %p250 = scmp.ne.s32.totalorder %s233, %s249
    %p251 = scmp.eq.s32.totalorder %s20, 0
    %p252 = por %p250, %p251
    %p253 = scmp.le.s32.totalorder 1, %s14
    %p254 = scmp.lt.s32.totalorder %s14, 3
    %p255 = pnand %p253, %p254
    %p256 = pneg %p255
    // Predicated region
    $region9: #{down_block.3} parent=5 // pred_check
      _
    $region10: #{down_block.3} parent=5 // pred_check_branch
      %258 = sbr.rel (%p255) target = $region12
    $region11: #{down_block.3} parent=5 // pred_region
      %s259 = ssub.s32 %s14, 1
      // Predicated region
      $region13: #{down_block.3} parent=11 // pred_check
        %p260 = pneg %p147
      $region14: #{down_block.3} parent=11 // pred_check_branch
        %262 = sbr.rel (%p260) target = $region16
      $region15: #{down_block.3} parent=11 // pred_region
        _
      $region16: #{down_block.3} parent=11 // pred_fallthru
        _
      // Predicated region
      $region17: #{down_block.3} parent=11 // pred_check
        %p263 = pneg %p168
      $region18: #{down_block.3} parent=11 // pred_check_branch
        %265 = sbr.rel (%p263) target = $region20
      $region19: #{down_block.3} parent=11 // pred_region
        _
      $region20: #{down_block.3} parent=11 // pred_fallthru
        _
      // Predicated region
      $region21: #{down_block.3} parent=11 // pred_check
        %p266 = pneg %p189
      $region22: #{down_block.3} parent=11 // pred_check_branch
        %268 = sbr.rel (%p266) target = $region24
      $region23: #{down_block.3} parent=11 // pred_region
        _
      $region24: #{down_block.3} parent=11 // pred_fallthru
        _
    $region12: #{down_block.3} parent=5 // pred_fallthru
      _
    %p269 = scmp.lt.s32.totalorder %s14, 2
    // Predicated region
    $region25: #{down_block.3} parent=5 // pred_check
      %p270 = pneg %p269
    $region26: #{down_block.3} parent=5 // pred_check_branch
      %272 = sbr.rel (%p270) target = $region28
    $region27: #{down_block.3} parent=5 // pred_region
      // Predicated region
      $region29: #{down_block.3} parent=27 // pred_check
        %p273 = pneg %p48
      $region30: #{down_block.3} parent=27 // pred_check_branch
        %275 = sbr.rel (%p273) target = $region32
      $region31: #{down_block.3} parent=27 // pred_region
        %s276 = smul.u32 16, %s22
        %p277 = scmp.lt.s32.totalorder %s21, 1
        %s278 = scalar_select %p277, %s21, 1
        %p279 = scmp.lt.s32.totalorder %s276, 15
        %s280 = scalar_select %p279, %s276, 15
        %s281 = smul.addr %s280, 2
        %s282 = smul.addr %s278, 32
        %s283 = sadd.s32 %s281, %s282
        %s284 = smul.addr %s283, 8
        %s285 = scalar_lea.vmem %s0, %s284
        %s286 = smul.u32 16, %s22
      $region32: #{down_block.3} parent=27 // pred_fallthru
        _
      // Predicated region
      $region33: #{down_block.3} parent=27 // pred_check
        %p287 = pneg %p84
      $region34: #{down_block.3} parent=27 // pred_check_branch
        %289 = sbr.rel (%p287) target = $region36
      $region35: #{down_block.3} parent=27 // pred_region
        %s290 = smul.u32 %s22, 8
        %s291 = ssub.s32 %s290, 1
        %p292 = scmp.gt.s32.totalorder %s291, 0
        %s293 = scalar_select %p292, %s291, 0
        %s294 = smul.u32 2, %s293
        %p295 = scmp.lt.s32.totalorder %s21, 1
        %s296 = scalar_select %p295, %s21, 1
        %p297 = scmp.lt.s32.totalorder %s294, 15
        %s298 = scalar_select %p297, %s294, 15
        %s299 = smul.addr %s298, 2
        %s300 = smul.addr %s296, 32
        %s301 = sadd.s32 %s299, %s300
        %s302 = smul.addr %s301, 8
        %s303 = scalar_lea.vmem %s1, %s302
        %s304 = smul.u32 %s22, 8
        %s305 = ssub.s32 %s304, 1
        %p306 = scmp.gt.s32.totalorder %s305, 0
        %s307 = scalar_select %p306, %s305, 0
        %s308 = smul.u32 2, %s307
      $region36: #{down_block.3} parent=27 // pred_fallthru
        _
      // Predicated region
      $region37: #{down_block.3} parent=27 // pred_check
        %p309 = pneg %p120
      $region38: #{down_block.3} parent=27 // pred_check_branch
        %311 = sbr.rel (%p309) target = $region40
      $region39: #{down_block.3} parent=27 // pred_region
        %s312 = smul.u32 %s22, 8
        %s313 = sadd.s32 %s312, 8
        %p314 = scmp.lt.s32.totalorder %s313, 7
        %s315 = scalar_select %p314, %s313, 7
        %s316 = smul.u32 2, %s315
        %p317 = scmp.lt.s32.totalorder %s21, 1
        %s318 = scalar_select %p317, %s21, 1
        %p319 = scmp.lt.s32.totalorder %s316, 15
        %s320 = scalar_select %p319, %s316, 15
        %s321 = smul.addr %s320, 2
        %s322 = smul.addr %s318, 32
        %s323 = sadd.s32 %s321, %s322
        %s324 = smul.addr %s323, 8
        %s325 = scalar_lea.vmem %s2, %s324
        %s326 = smul.u32 %s22, 8
        %s327 = sadd.s32 %s326, 8
        %p328 = scmp.lt.s32.totalorder %s327, 7
        %s329 = scalar_select %p328, %s327, 7
        %s330 = smul.u32 2, %s329
      $region40: #{down_block.3} parent=27 // pred_fallthru
        _
    $region28: #{down_block.3} parent=5 // pred_fallthru
      _
    %p331 = scmp.le.s32.totalorder 1, %s14
    %p332 = scmp.lt.s32.totalorder %s14, 3
    %p333 = pnand %p331, %p332
    %p334 = pneg %p333
    // Predicated region
    $region41: #{down_block.3} parent=5 // pred_check
      _
    $region42: #{down_block.3} parent=5 // pred_check_branch
      %336 = sbr.rel (%p333) target = $region44
    $region43: #{down_block.3} parent=5 // pred_region
      %s337 = ssub.s32 %s14, 1
      %s338 = smul.u32 16, %s24
      %p339 = scmp.lt.s32.totalorder %s23, 1
      %s340 = scalar_select %p339, %s23, 1
      %p341 = scmp.lt.s32.totalorder %s338, 15
      %s342 = scalar_select %p341, %s338, 15
      %s343 = smul.addr %s342, 2
      %s344 = smul.addr %s340, 32
      %s345 = sadd.s32 %s343, %s344
      %s346 = smul.addr %s345, 8
      %s347 = scalar_lea.vmem %s0, %s346
      %p348 = pneg %p54
      %p349 = pneg %p51
      %s350 = smul.u32 %s24, 8
      %s351 = ssub.s32 %s350, 1
      %p352 = scmp.gt.s32.totalorder %s351, 0
      %s353 = scalar_select %p352, %s351, 0
      %s354 = smul.u32 2, %s353
      %p355 = scmp.lt.s32.totalorder %s23, 1
      %s356 = scalar_select %p355, %s23, 1
      %p357 = scmp.lt.s32.totalorder %s354, 15
      %s358 = scalar_select %p357, %s354, 15
      %s359 = smul.addr %s358, 2
      %s360 = smul.addr %s356, 32
      %s361 = sadd.s32 %s359, %s360
      %s362 = smul.addr %s361, 8
      %s363 = scalar_lea.vmem %s1, %s362
      %p364 = pneg %p90
      %p365 = pneg %p87
      %s366 = smul.u32 %s24, 8
      %s367 = sadd.s32 %s366, 8
      %p368 = scmp.lt.s32.totalorder %s367, 7
      %s369 = scalar_select %p368, %s367, 7
      %s370 = smul.u32 2, %s369
      %p371 = scmp.lt.s32.totalorder %s23, 1
      %s372 = scalar_select %p371, %s23, 1
      %p373 = scmp.lt.s32.totalorder %s370, 15
      %s374 = scalar_select %p373, %s370, 15
      %s375 = smul.addr %s374, 2
      %s376 = smul.addr %s372, 32
      %s377 = sadd.s32 %s375, %s376
      %s378 = smul.addr %s377, 8
      %s379 = scalar_lea.vmem %s2, %s378
      %p380 = pneg %p126
      %p381 = pneg %p123
      %p382 = pneg %p147
      %p383 = pneg %p144
      %p384 = pneg %p168
      %p385 = pneg %p165
      %p386 = pneg %p189
      %p387 = pneg %p186
      %p388 = pneg %p217
      %p389 = pneg %p214
      %p390 = scmp.lt.s32.totalorder %s23, 1
      %s391 = scalar_select %p390, %s23, 1
      %p392 = scmp.lt.s32.totalorder %s24, 0
      %s393 = scalar_select %p392, %s24, 0
      %s394 = sadd.s32 %s393, %s391
      %s395 = smul.addr %s394, 8
      %s396 = scalar_lea.vmem %s6, %s395
      %p397 = pneg %p245
      %p398 = pneg %p242
      %p399 = scmp.lt.s32.totalorder %s23, 1
      %s400 = scalar_select %p399, %s23, 1
      %p401 = scmp.lt.s32.totalorder %s24, 0
      %s402 = scalar_select %p401, %s24, 0
      %s403 = sadd.s32 %s402, %s400
      %s404 = smul.addr %s403, 2
      %s405 = scalar_lea.vmem %s7, %s404
      %s406 = smul.u32 16, %s24
      %p407 = scmp.lt.s32.totalorder %s23, 1
      %s408 = scalar_select %p407, %s23, 1
      %p409 = scmp.lt.s32.totalorder %s406, 15
      %s410 = scalar_select %p409, %s406, 15
      %s411 = smul.addr %s410, 2
      %s412 = smul.addr %s408, 32
      %s413 = sadd.s32 %s411, %s412
      %s414 = smul.addr %s413, 8
      %s415 = scalar_lea.vmem %s0, %s414
      %s416 = smul.u32 16, %s24
      %s417 = smul.u32 %s24, 8
      %s418 = ssub.s32 %s417, 1
      %p419 = scmp.gt.s32.totalorder %s418, 0
      %s420 = scalar_select %p419, %s418, 0
      %s421 = smul.u32 2, %s420
      %p422 = scmp.lt.s32.totalorder %s23, 1
      %s423 = scalar_select %p422, %s23, 1
      %p424 = scmp.lt.s32.totalorder %s421, 15
      %s425 = scalar_select %p424, %s421, 15
      %s426 = smul.addr %s425, 2
      %s427 = smul.addr %s423, 32
      %s428 = sadd.s32 %s426, %s427
      %s429 = smul.addr %s428, 8
      %s430 = scalar_lea.vmem %s1, %s429
      %s431 = smul.u32 %s24, 8
      %s432 = ssub.s32 %s431, 1
      %p433 = scmp.gt.s32.totalorder %s432, 0
      %s434 = scalar_select %p433, %s432, 0
      %s435 = smul.u32 2, %s434
      %s436 = smul.u32 %s24, 8
      %s437 = sadd.s32 %s436, 8
      %p438 = scmp.lt.s32.totalorder %s437, 7
      %s439 = scalar_select %p438, %s437, 7
      %s440 = smul.u32 2, %s439
      %p441 = scmp.lt.s32.totalorder %s23, 1
      %s442 = scalar_select %p441, %s23, 1
      %p443 = scmp.lt.s32.totalorder %s440, 15
      %s444 = scalar_select %p443, %s440, 15
      %s445 = smul.addr %s444, 2
      %s446 = smul.addr %s442, 32
      %s447 = sadd.s32 %s445, %s446
      %s448 = smul.addr %s447, 8
      %s449 = scalar_lea.vmem %s2, %s448
      %s450 = smul.u32 %s24, 8
      %s451 = sadd.s32 %s450, 8
      %p452 = scmp.lt.s32.totalorder %s451, 7
      %s453 = scalar_select %p452, %s451, 7
      %s454 = smul.u32 2, %s453
      %p455 = scmp.lt.s32.totalorder %s23, 1
      %s456 = scalar_select %p455, %s23, 1
      %p457 = scmp.lt.s32.totalorder %s24, 0
      %s458 = scalar_select %p457, %s24, 0
      %s459 = sadd.s32 %s458, %s456
      %s460 = smul.addr %s459, 8
      %s461 = scalar_lea.vmem %s6, %s460
      %p462 = scmp.lt.s32.totalorder %s23, 1
      %s463 = scalar_select %p462, %s23, 1
      %p464 = scmp.lt.s32.totalorder %s24, 0
      %s465 = scalar_select %p464, %s24, 0
      %s466 = sadd.s32 %s465, %s463
      %s467 = smul.addr %s466, 2
      %s468 = scalar_lea.vmem %s7, %s467
      %v469 = vld [vmem:[%s415] sm:$0xff]
      %v470 = vld [vmem:[%s415 + $0x8] sm:$0xff]
      %v471 = vld [vmem:[%s415 + $0x10] sm:$0xff]
      %v472 = vld [vmem:[%s415 + $0x18] sm:$0xff]
      %v473 = vld [vmem:[%s415 + $0x20] sm:$0xff]
      %v474 = vld [vmem:[%s415 + $0x28] sm:$0xff]
      %v475 = vld [vmem:[%s415 + $0x30] sm:$0xff]
      %v476 = vld [vmem:[%s415 + $0x38] sm:$0xff]
      %v477 = vld [vmem:[%s415 + $0x40] sm:$0xff]
      %v478 = vld [vmem:[%s415 + $0x48] sm:$0xff]
      %v479 = vld [vmem:[%s415 + $0x50] sm:$0xff]
      %v480 = vld [vmem:[%s415 + $0x58] sm:$0xff]
      %v481 = vld [vmem:[%s415 + $0x60] sm:$0xff]
      %v482 = vld [vmem:[%s415 + $0x68] sm:$0xff]
      %v483 = vld [vmem:[%s415 + $0x70] sm:$0xff]
      %v484 = vld [vmem:[%s415 + $0x78] sm:$0xff]
      %v485 = vld [vmem:[%s415 + $0x80] sm:$0xff]
      %v486 = vld [vmem:[%s415 + $0x88] sm:$0xff]
      %v487 = vld [vmem:[%s415 + $0x90] sm:$0xff]
      %v488 = vld [vmem:[%s415 + $0x98] sm:$0xff]
      %v489 = vld [vmem:[%s415 + $0xa0] sm:$0xff]
      %v490 = vld [vmem:[%s415 + $0xa8] sm:$0xff]
      %v491 = vld [vmem:[%s415 + $0xb0] sm:$0xff]
      %v492 = vld [vmem:[%s415 + $0xb8] sm:$0xff]
      %v493 = vld [vmem:[%s415 + $0xc0] sm:$0xff]
      %v494 = vld [vmem:[%s415 + $0xc8] sm:$0xff]
      %v495 = vld [vmem:[%s415 + $0xd0] sm:$0xff]
      %v496 = vld [vmem:[%s415 + $0xd8] sm:$0xff]
      %v497 = vld [vmem:[%s415 + $0xe0] sm:$0xff]
      %v498 = vld [vmem:[%s415 + $0xe8] sm:$0xff]
      %v499 = vld [vmem:[%s415 + $0xf0] sm:$0xff]
      %v500 = vld [vmem:[%s415 + $0xf8] sm:$0xff]
      %v501 = vld [vmem:[%s430] sm:$0xff]
      %v502 = vld [vmem:[%s430 + $0x8] sm:$0xff]
      %v503 = vld [vmem:[%s430 + $0x10] sm:$0xff]
      %v504 = vld [vmem:[%s430 + $0x18] sm:$0xff]
      %v505 = vld [vmem:[%s449] sm:$0xff]
      %v506 = vld [vmem:[%s449 + $0x8] sm:$0xff]
      %v507 = vld [vmem:[%s449 + $0x10] sm:$0xff]
      %v508 = vld [vmem:[%s449 + $0x18] sm:$0xff]
      %v509 = vmax.f32 %v469, %v471
      %v510 = vmax.f32 %v470, %v472
      %v511 = vmax.f32 %v473, %v475
      %v512 = vmax.f32 %v474, %v476
      %v513 = vmax.f32 %v477, %v479
      %v514 = vmax.f32 %v478, %v480
      %v515 = vmax.f32 %v481, %v483
      %v516 = vmax.f32 %v482, %v484
      %v517 = vmax.f32 %v485, %v487
      %v518 = vmax.f32 %v486, %v488
      %v519 = vmax.f32 %v489, %v491
      %v520 = vmax.f32 %v490, %v492
      %v521 = vmax.f32 %v493, %v495
      %v522 = vmax.f32 %v494, %v496
      %v523 = vmax.f32 %v497, %v499
      %v524 = vmax.f32 %v498, %v500
      %v541 = vcombine.high %v509, %v509
      %v543 = vunpack.c.l.s4 1983009808
      %v544 = vunpack.c.0.s8 %v543
      %v545 = vlaneseq
      %v546 = vshrl.u32 %v545, 7
      %v547 = vsub.s32 %v544, %v546
      %v548 = vrot.slane %v509, %v547
      %v550 = vunpack.c.l.s4 1983009808
      %v551 = vunpack.c.0.s8 %v550
      %v552 = vlaneseq
      %v553 = vshrl.u32 %v552, 7
      %v554 = vsub.s32 %v551, %v553
      %v555 = vrot.slane %v541, %v554
      %v556 = vcombine.high %v548, %v548
      %v557 = vcombine.high %v555, %v555
      %v558 = vcombine.high %v510, %v510
      %v560 = vunpack.c.l.s4 1983009808
      %v561 = vunpack.c.0.s8 %v560
      %v562 = vlaneseq
      %v563 = vshrl.u32 %v562, 7
      %v564 = vsub.s32 %v561, %v563
      %v565 = vrot.slane %v510, %v564
      %v567 = vunpack.c.l.s4 1983009808
      %v568 = vunpack.c.0.s8 %v567
      %v569 = vlaneseq
      %v570 = vshrl.u32 %v569, 7
      %v571 = vsub.s32 %v568, %v570
      %v572 = vrot.slane %v558, %v571
      %v573 = vcombine.high %v565, %v565
      %v574 = vcombine.high %v572, %v572
      %v575 = vcombine.high %v511, %v511
      %v577 = vunpack.c.l.s4 1983009808
      %v578 = vunpack.c.0.s8 %v577
      %v579 = vlaneseq
      %v580 = vshrl.u32 %v579, 7
      %v581 = vsub.s32 %v578, %v580
      %v582 = vrot.slane %v511, %v581
      %v584 = vunpack.c.l.s4 1983009808
      %v585 = vunpack.c.0.s8 %v584
      %v586 = vlaneseq
      %v587 = vshrl.u32 %v586, 7
      %v588 = vsub.s32 %v585, %v587
      %v589 = vrot.slane %v575, %v588
      %v590 = vcombine.high %v582, %v582
      %v591 = vcombine.high %v589, %v589
      %v592 = vcombine.high %v512, %v512
      %v594 = vunpack.c.l.s4 1983009808
      %v595 = vunpack.c.0.s8 %v594
      %v596 = vlaneseq
      %v597 = vshrl.u32 %v596, 7
      %v598 = vsub.s32 %v595, %v597
      %v599 = vrot.slane %v512, %v598
      %v601 = vunpack.c.l.s4 1983009808
      %v602 = vunpack.c.0.s8 %v601
      %v603 = vlaneseq
      %v604 = vshrl.u32 %v603, 7
      %v605 = vsub.s32 %v602, %v604
      %v606 = vrot.slane %v592, %v605
      %v607 = vcombine.high %v599, %v599
      %v608 = vcombine.high %v606, %v606
      %v609 = vcombine.high %v513, %v513
      %v611 = vunpack.c.l.s4 1983009808
      %v612 = vunpack.c.0.s8 %v611
      %v613 = vlaneseq
      %v614 = vshrl.u32 %v613, 7
      %v615 = vsub.s32 %v612, %v614
      %v616 = vrot.slane %v513, %v615
      %v618 = vunpack.c.l.s4 1983009808
      %v619 = vunpack.c.0.s8 %v618
      %v620 = vlaneseq
      %v621 = vshrl.u32 %v620, 7
      %v622 = vsub.s32 %v619, %v621
      %v623 = vrot.slane %v609, %v622
      %v624 = vcombine.high %v616, %v616
      %v625 = vcombine.high %v623, %v623
      %v626 = vcombine.high %v514, %v514
      %v628 = vunpack.c.l.s4 1983009808
      %v629 = vunpack.c.0.s8 %v628
      %v630 = vlaneseq
      %v631 = vshrl.u32 %v630, 7
      %v632 = vsub.s32 %v629, %v631
      %v633 = vrot.slane %v514, %v632
      %v635 = vunpack.c.l.s4 1983009808
      %v636 = vunpack.c.0.s8 %v635
      %v637 = vlaneseq
      %v638 = vshrl.u32 %v637, 7
      %v639 = vsub.s32 %v636, %v638
      %v640 = vrot.slane %v626, %v639
      %v641 = vcombine.high %v633, %v633
      %v642 = vcombine.high %v640, %v640
      %v643 = vcombine.high %v515, %v515
      %v645 = vunpack.c.l.s4 1983009808
      %v646 = vunpack.c.0.s8 %v645
      %v647 = vlaneseq
      %v648 = vshrl.u32 %v647, 7
      %v649 = vsub.s32 %v646, %v648
      %v650 = vrot.slane %v515, %v649
      %v652 = vunpack.c.l.s4 1983009808
      %v653 = vunpack.c.0.s8 %v652
      %v654 = vlaneseq
      %v655 = vshrl.u32 %v654, 7
      %v656 = vsub.s32 %v653, %v655
      %v657 = vrot.slane %v643, %v656
      %v658 = vcombine.high %v650, %v650
      %v659 = vcombine.high %v657, %v657
      %v660 = vcombine.high %v516, %v516
      %v662 = vunpack.c.l.s4 1983009808
      %v663 = vunpack.c.0.s8 %v662
      %v664 = vlaneseq
      %v665 = vshrl.u32 %v664, 7
      %v666 = vsub.s32 %v663, %v665
      %v667 = vrot.slane %v516, %v666
      %v669 = vunpack.c.l.s4 1983009808
      %v670 = vunpack.c.0.s8 %v669
      %v671 = vlaneseq
      %v672 = vshrl.u32 %v671, 7
      %v673 = vsub.s32 %v670, %v672
      %v674 = vrot.slane %v660, %v673
      %v675 = vcombine.high %v667, %v667
      %v676 = vcombine.high %v674, %v674
      %v677 = vcombine.high %v517, %v517
      %v679 = vunpack.c.l.s4 1983009808
      %v680 = vunpack.c.0.s8 %v679
      %v681 = vlaneseq
      %v682 = vshrl.u32 %v681, 7
      %v683 = vsub.s32 %v680, %v682
      %v684 = vrot.slane %v517, %v683
      %v686 = vunpack.c.l.s4 1983009808
      %v687 = vunpack.c.0.s8 %v686
      %v688 = vlaneseq
      %v689 = vshrl.u32 %v688, 7
      %v690 = vsub.s32 %v687, %v689
      %v691 = vrot.slane %v677, %v690
      %v692 = vcombine.high %v684, %v684
      %v693 = vcombine.high %v691, %v691
      %v694 = vcombine.high %v518, %v518
      %v696 = vunpack.c.l.s4 1983009808
      %v697 = vunpack.c.0.s8 %v696
      %v698 = vlaneseq
      %v699 = vshrl.u32 %v698, 7
      %v700 = vsub.s32 %v697, %v699
      %v701 = vrot.slane %v518, %v700
      %v703 = vunpack.c.l.s4 1983009808
      %v704 = vunpack.c.0.s8 %v703
      %v705 = vlaneseq
      %v706 = vshrl.u32 %v705, 7
      %v707 = vsub.s32 %v704, %v706
      %v708 = vrot.slane %v694, %v707
      %v709 = vcombine.high %v701, %v701
      %v710 = vcombine.high %v708, %v708
      %v711 = vcombine.high %v519, %v519
      %v713 = vunpack.c.l.s4 1983009808
      %v714 = vunpack.c.0.s8 %v713
      %v715 = vlaneseq
      %v716 = vshrl.u32 %v715, 7
      %v717 = vsub.s32 %v714, %v716
      %v718 = vrot.slane %v519, %v717
      %v720 = vunpack.c.l.s4 1983009808
      %v721 = vunpack.c.0.s8 %v720
      %v722 = vlaneseq
      %v723 = vshrl.u32 %v722, 7
      %v724 = vsub.s32 %v721, %v723
      %v725 = vrot.slane %v711, %v724
      %v726 = vcombine.high %v718, %v718
      %v727 = vcombine.high %v725, %v725
      %v728 = vcombine.high %v520, %v520
      %v730 = vunpack.c.l.s4 1983009808
      %v731 = vunpack.c.0.s8 %v730
      %v732 = vlaneseq
      %v733 = vshrl.u32 %v732, 7
      %v734 = vsub.s32 %v731, %v733
      %v735 = vrot.slane %v520, %v734
      %v737 = vunpack.c.l.s4 1983009808
      %v738 = vunpack.c.0.s8 %v737
      %v739 = vlaneseq
      %v740 = vshrl.u32 %v739, 7
      %v741 = vsub.s32 %v738, %v740
      %v742 = vrot.slane %v728, %v741
      %v743 = vcombine.high %v735, %v735
      %v744 = vcombine.high %v742, %v742
      %v745 = vcombine.high %v521, %v521
      %v747 = vunpack.c.l.s4 1983009808
      %v748 = vunpack.c.0.s8 %v747
      %v749 = vlaneseq
      %v750 = vshrl.u32 %v749, 7
      %v751 = vsub.s32 %v748, %v750
      %v752 = vrot.slane %v521, %v751
      %v754 = vunpack.c.l.s4 1983009808
      %v755 = vunpack.c.0.s8 %v754
      %v756 = vlaneseq
      %v757 = vshrl.u32 %v756, 7
      %v758 = vsub.s32 %v755, %v757
      %v759 = vrot.slane %v745, %v758
      %v760 = vcombine.high %v752, %v752
      %v761 = vcombine.high %v759, %v759
      %v762 = vcombine.high %v522, %v522
      %v764 = vunpack.c.l.s4 1983009808
      %v765 = vunpack.c.0.s8 %v764
      %v766 = vlaneseq
      %v767 = vshrl.u32 %v766, 7
      %v768 = vsub.s32 %v765, %v767
      %v769 = vrot.slane %v522, %v768
      %v771 = vunpack.c.l.s4 1983009808
      %v772 = vunpack.c.0.s8 %v771
      %v773 = vlaneseq
      %v774 = vshrl.u32 %v773, 7
      %v775 = vsub.s32 %v772, %v774
      %v776 = vrot.slane %v762, %v775
      %v777 = vcombine.high %v769, %v769
      %v778 = vcombine.high %v776, %v776
      %v779 = vcombine.high %v523, %v523
      %v781 = vunpack.c.l.s4 1983009808
      %v782 = vunpack.c.0.s8 %v781
      %v783 = vlaneseq
      %v784 = vshrl.u32 %v783, 7
      %v785 = vsub.s32 %v782, %v784
      %v786 = vrot.slane %v523, %v785
      %v788 = vunpack.c.l.s4 1983009808
      %v789 = vunpack.c.0.s8 %v788
      %v790 = vlaneseq
      %v791 = vshrl.u32 %v790, 7
      %v792 = vsub.s32 %v789, %v791
      %v793 = vrot.slane %v779, %v792
      %v794 = vcombine.high %v786, %v786
      %v795 = vcombine.high %v793, %v793
      %v796 = vcombine.high %v524, %v524
      %v798 = vunpack.c.l.s4 1983009808
      %v799 = vunpack.c.0.s8 %v798
      %v800 = vlaneseq
      %v801 = vshrl.u32 %v800, 7
      %v802 = vsub.s32 %v799, %v801
      %v803 = vrot.slane %v524, %v802
      %v805 = vunpack.c.l.s4 1983009808
      %v806 = vunpack.c.0.s8 %v805
      %v807 = vlaneseq
      %v808 = vshrl.u32 %v807, 7
      %v809 = vsub.s32 %v806, %v808
      %v810 = vrot.slane %v796, %v809
      %v811 = vcombine.high %v803, %v803
      %v812 = vcombine.high %v810, %v810
      %v877 = vrot.slane %v548, 7
      %v878 = vrot.slane %v877, 2
      %v879 = vrot.slane %v556, 7
      %v880 = vrot.slane %v879, 2
      %v881 = vrot.slane %v555, 7
      %v882 = vrot.slane %v881, 2
      %v883 = vrot.slane %v557, 7
      %v884 = vrot.slane %v883, 2
      %v885 = vrot.slane %v565, 7
      %v886 = vrot.slane %v885, 2
      %v887 = vrot.slane %v573, 7
      %v888 = vrot.slane %v887, 2
      %v889 = vrot.slane %v572, 7
      %v890 = vrot.slane %v889, 2
      %v891 = vrot.slane %v574, 7
      %v892 = vrot.slane %v891, 2
      %v893 = vrot.slane %v582, 7
      %v894 = vrot.slane %v893, 2
      %v895 = vrot.slane %v590, 7
      %v896 = vrot.slane %v895, 2
      %v897 = vrot.slane %v589, 7
      %v898 = vrot.slane %v897, 2
      %v899 = vrot.slane %v591, 7
      %v900 = vrot.slane %v899, 2
      %v901 = vrot.slane %v599, 7
      %v902 = vrot.slane %v901, 2
      %v903 = vrot.slane %v607, 7
      %v904 = vrot.slane %v903, 2
      %v905 = vrot.slane %v606, 7
      %v906 = vrot.slane %v905, 2
      %v907 = vrot.slane %v608, 7
      %v908 = vrot.slane %v907, 2
      %v909 = vrot.slane %v616, 7
      %v910 = vrot.slane %v909, 2
      %v911 = vrot.slane %v624, 7
      %v912 = vrot.slane %v911, 2
      %v913 = vrot.slane %v623, 7
      %v914 = vrot.slane %v913, 2
      %v915 = vrot.slane %v625, 7
      %v916 = vrot.slane %v915, 2
      %v917 = vrot.slane %v633, 7
      %v918 = vrot.slane %v917, 2
      %v919 = vrot.slane %v641, 7
      %v920 = vrot.slane %v919, 2
      %v921 = vrot.slane %v640, 7
      %v922 = vrot.slane %v921, 2
      %v923 = vrot.slane %v642, 7
      %v924 = vrot.slane %v923, 2
      %v925 = vrot.slane %v650, 7
      %v926 = vrot.slane %v925, 2
      %v927 = vrot.slane %v658, 7
      %v928 = vrot.slane %v927, 2
      %v929 = vrot.slane %v657, 7
      %v930 = vrot.slane %v929, 2
      %v931 = vrot.slane %v659, 7
      %v932 = vrot.slane %v931, 2
      %v933 = vrot.slane %v667, 7
      %v934 = vrot.slane %v933, 2
      %v935 = vrot.slane %v675, 7
      %v936 = vrot.slane %v935, 2
      %v937 = vrot.slane %v674, 7
      %v938 = vrot.slane %v937, 2
      %v939 = vrot.slane %v676, 7
      %v940 = vrot.slane %v939, 2
      %v941 = vrot.slane %v684, 7
      %v942 = vrot.slane %v941, 2
      %v943 = vrot.slane %v692, 7
      %v944 = vrot.slane %v943, 2
      %v945 = vrot.slane %v691, 7
      %v946 = vrot.slane %v945, 2
      %v947 = vrot.slane %v693, 7
      %v948 = vrot.slane %v947, 2
      %v949 = vrot.slane %v701, 7
      %v950 = vrot.slane %v949, 2
      %v951 = vrot.slane %v709, 7
      %v952 = vrot.slane %v951, 2
      %v953 = vrot.slane %v708, 7
      %v954 = vrot.slane %v953, 2
      %v955 = vrot.slane %v710, 7
      %v956 = vrot.slane %v955, 2
      %v957 = vrot.slane %v718, 7
      %v958 = vrot.slane %v957, 2
      %v959 = vrot.slane %v726, 7
      %v960 = vrot.slane %v959, 2
      %v961 = vrot.slane %v725, 7
      %v962 = vrot.slane %v961, 2
      %v963 = vrot.slane %v727, 7
      %v964 = vrot.slane %v963, 2
      %v965 = vrot.slane %v735, 7
      %v966 = vrot.slane %v965, 2
      %v967 = vrot.slane %v743, 7
      %v968 = vrot.slane %v967, 2
      %v969 = vrot.slane %v742, 7
      %v970 = vrot.slane %v969, 2
      %v971 = vrot.slane %v744, 7
      %v972 = vrot.slane %v971, 2
      %v973 = vrot.slane %v752, 7
      %v974 = vrot.slane %v973, 2
      %v975 = vrot.slane %v760, 7
      %v976 = vrot.slane %v975, 2
      %v977 = vrot.slane %v759, 7
      %v978 = vrot.slane %v977, 2
      %v979 = vrot.slane %v761, 7
      %v980 = vrot.slane %v979, 2
      %v981 = vrot.slane %v769, 7
      %v982 = vrot.slane %v981, 2
      %v983 = vrot.slane %v777, 7
      %v984 = vrot.slane %v983, 2
      %v985 = vrot.slane %v776, 7
      %v986 = vrot.slane %v985, 2
      %v987 = vrot.slane %v778, 7
      %v988 = vrot.slane %v987, 2
      %v989 = vrot.slane %v786, 7
      %v990 = vrot.slane %v989, 2
      %v991 = vrot.slane %v794, 7
      %v992 = vrot.slane %v991, 2
      %v993 = vrot.slane %v793, 7
      %v994 = vrot.slane %v993, 2
      %v995 = vrot.slane %v795, 7
      %v996 = vrot.slane %v995, 2
      %v997 = vrot.slane %v803, 7
      %v998 = vrot.slane %v997, 2
      %v999 = vrot.slane %v811, 7
      %v1000 = vrot.slane %v999, 2
      %v1001 = vrot.slane %v810, 7
      %v1002 = vrot.slane %v1001, 2
      %v1003 = vrot.slane %v812, 7
      %v1004 = vrot.slane %v1003, 2
      %v1069 = vmax.f32 %v548, %v878
      %v1070 = vmax.f32 %v556, %v880
      %v1071 = vmax.f32 %v555, %v882
      %v1072 = vmax.f32 %v557, %v884
      %v1073 = vmax.f32 %v565, %v886
      %v1074 = vmax.f32 %v573, %v888
      %v1075 = vmax.f32 %v572, %v890
      %v1076 = vmax.f32 %v574, %v892
      %v1077 = vmax.f32 %v582, %v894
      %v1078 = vmax.f32 %v590, %v896
      %v1079 = vmax.f32 %v589, %v898
      %v1080 = vmax.f32 %v591, %v900
      %v1081 = vmax.f32 %v599, %v902
      %v1082 = vmax.f32 %v607, %v904
      %v1083 = vmax.f32 %v606, %v906
      %v1084 = vmax.f32 %v608, %v908
      %v1085 = vmax.f32 %v616, %v910
      %v1086 = vmax.f32 %v624, %v912
      %v1087 = vmax.f32 %v623, %v914
      %v1088 = vmax.f32 %v625, %v916
      %v1089 = vmax.f32 %v633, %v918
      %v1090 = vmax.f32 %v641, %v920
      %v1091 = vmax.f32 %v640, %v922
      %v1092 = vmax.f32 %v642, %v924
      %v1093 = vmax.f32 %v650, %v926
      %v1094 = vmax.f32 %v658, %v928
      %v1095 = vmax.f32 %v657, %v930
      %v1096 = vmax.f32 %v659, %v932
      %v1097 = vmax.f32 %v667, %v934
      %v1098 = vmax.f32 %v675, %v936
      %v1099 = vmax.f32 %v674, %v938
      %v1100 = vmax.f32 %v676, %v940
      %v1101 = vmax.f32 %v684, %v942
      %v1102 = vmax.f32 %v692, %v944
      %v1103 = vmax.f32 %v691, %v946
      %v1104 = vmax.f32 %v693, %v948
      %v1105 = vmax.f32 %v701, %v950
      %v1106 = vmax.f32 %v709, %v952
      %v1107 = vmax.f32 %v708, %v954
      %v1108 = vmax.f32 %v710, %v956
      %v1109 = vmax.f32 %v718, %v958
      %v1110 = vmax.f32 %v726, %v960
      %v1111 = vmax.f32 %v725, %v962
      %v1112 = vmax.f32 %v727, %v964
      %v1113 = vmax.f32 %v735, %v966
      %v1114 = vmax.f32 %v743, %v968
      %v1115 = vmax.f32 %v742, %v970
      %v1116 = vmax.f32 %v744, %v972
      %v1117 = vmax.f32 %v752, %v974
      %v1118 = vmax.f32 %v760, %v976
      %v1119 = vmax.f32 %v759, %v978
      %v1120 = vmax.f32 %v761, %v980
      %v1121 = vmax.f32 %v769, %v982
      %v1122 = vmax.f32 %v777, %v984
      %v1123 = vmax.f32 %v776, %v986
      %v1124 = vmax.f32 %v778, %v988
      %v1125 = vmax.f32 %v786, %v990
      %v1126 = vmax.f32 %v794, %v992
      %v1127 = vmax.f32 %v793, %v994
      %v1128 = vmax.f32 %v795, %v996
      %v1129 = vmax.f32 %v803, %v998
      %v1130 = vmax.f32 %v811, %v1000
      %v1131 = vmax.f32 %v810, %v1002
      %v1132 = vmax.f32 %v812, %v1004
      %v1133 = vmax.f32 %v501, %v503
      %v1134 = vmax.f32 %v502, %v504
      %v1137 = vcombine.high %v1133, %v1133
      %v1139 = vunpack.c.l.s4 1983009808
      %v1140 = vunpack.c.0.s8 %v1139
      %v1141 = vlaneseq
      %v1142 = vshrl.u32 %v1141, 7
      %v1143 = vsub.s32 %v1140, %v1142
      %v1144 = vrot.slane %v1133, %v1143
      %v1146 = vunpack.c.l.s4 1983009808
      %v1147 = vunpack.c.0.s8 %v1146
      %v1148 = vlaneseq
      %v1149 = vshrl.u32 %v1148, 7
      %v1150 = vsub.s32 %v1147, %v1149
      %v1151 = vrot.slane %v1137, %v1150
      %v1152 = vcombine.high %v1144, %v1144
      %v1153 = vcombine.high %v1151, %v1151
      %v1154 = vcombine.high %v1134, %v1134
      %v1156 = vunpack.c.l.s4 1983009808
      %v1157 = vunpack.c.0.s8 %v1156
      %v1158 = vlaneseq
      %v1159 = vshrl.u32 %v1158, 7
      %v1160 = vsub.s32 %v1157, %v1159
      %v1161 = vrot.slane %v1134, %v1160
      %v1163 = vunpack.c.l.s4 1983009808
      %v1164 = vunpack.c.0.s8 %v1163
      %v1165 = vlaneseq
      %v1166 = vshrl.u32 %v1165, 7
      %v1167 = vsub.s32 %v1164, %v1166
      %v1168 = vrot.slane %v1154, %v1167
      %v1169 = vcombine.high %v1161, %v1161
      %v1170 = vcombine.high %v1168, %v1168
      %v1179 = vrot.slane %v1144, 7
      %v1180 = vrot.slane %v1179, 2
      %v1181 = vrot.slane %v1152, 7
      %v1182 = vrot.slane %v1181, 2
      %v1183 = vrot.slane %v1151, 7
      %v1184 = vrot.slane %v1183, 2
      %v1185 = vrot.slane %v1153, 7
      %v1186 = vrot.slane %v1185, 2
      %v1187 = vrot.slane %v1161, 7
      %v1188 = vrot.slane %v1187, 2
      %v1189 = vrot.slane %v1169, 7
      %v1190 = vrot.slane %v1189, 2
      %v1191 = vrot.slane %v1168, 7
      %v1192 = vrot.slane %v1191, 2
      %v1193 = vrot.slane %v1170, 7
      %v1194 = vrot.slane %v1193, 2
      %v1203 = vmax.f32 %v1144, %v1180
      %v1204 = vmax.f32 %v1152, %v1182
      %v1205 = vmax.f32 %v1151, %v1184
      %v1206 = vmax.f32 %v1153, %v1186
      %v1207 = vmax.f32 %v1161, %v1188
      %v1208 = vmax.f32 %v1169, %v1190
      %v1209 = vmax.f32 %v1168, %v1192
      %v1210 = vmax.f32 %v1170, %v1194
      %v1211 = vmax.f32 %v505, %v507
      %v1212 = vmax.f32 %v506, %v508
      %v1215 = vcombine.high %v1211, %v1211
      %v1217 = vunpack.c.l.s4 1983009808
      %v1218 = vunpack.c.0.s8 %v1217
      %v1219 = vlaneseq
      %v1220 = vshrl.u32 %v1219, 7
      %v1221 = vsub.s32 %v1218, %v1220
      %v1222 = vrot.slane %v1211, %v1221
      %v1224 = vunpack.c.l.s4 1983009808
      %v1225 = vunpack.c.0.s8 %v1224
      %v1226 = vlaneseq
      %v1227 = vshrl.u32 %v1226, 7
      %v1228 = vsub.s32 %v1225, %v1227
      %v1229 = vrot.slane %v1215, %v1228
      %v1230 = vcombine.high %v1222, %v1222
      %v1231 = vcombine.high %v1229, %v1229
      %v1232 = vcombine.high %v1212, %v1212
      %v1234 = vunpack.c.l.s4 1983009808
      %v1235 = vunpack.c.0.s8 %v1234
      %v1236 = vlaneseq
      %v1237 = vshrl.u32 %v1236, 7
      %v1238 = vsub.s32 %v1235, %v1237
      %v1239 = vrot.slane %v1212, %v1238
      %v1241 = vunpack.c.l.s4 1983009808
      %v1242 = vunpack.c.0.s8 %v1241
      %v1243 = vlaneseq
      %v1244 = vshrl.u32 %v1243, 7
      %v1245 = vsub.s32 %v1242, %v1244
      %v1246 = vrot.slane %v1232, %v1245
      %v1247 = vcombine.high %v1239, %v1239
      %v1248 = vcombine.high %v1246, %v1246
      %v1257 = vrot.slane %v1222, 7
      %v1258 = vrot.slane %v1257, 2
      %v1259 = vrot.slane %v1230, 7
      %v1260 = vrot.slane %v1259, 2
      %v1261 = vrot.slane %v1229, 7
      %v1262 = vrot.slane %v1261, 2
      %v1263 = vrot.slane %v1231, 7
      %v1264 = vrot.slane %v1263, 2
      %v1265 = vrot.slane %v1239, 7
      %v1266 = vrot.slane %v1265, 2
      %v1267 = vrot.slane %v1247, 7
      %v1268 = vrot.slane %v1267, 2
      %v1269 = vrot.slane %v1246, 7
      %v1270 = vrot.slane %v1269, 2
      %v1271 = vrot.slane %v1248, 7
      %v1272 = vrot.slane %v1271, 2
      %v1281 = vmax.f32 %v1222, %v1258
      %v1282 = vmax.f32 %v1230, %v1260
      %v1283 = vmax.f32 %v1229, %v1262
      %v1284 = vmax.f32 %v1231, %v1264
      %v1285 = vmax.f32 %v1239, %v1266
      %v1286 = vmax.f32 %v1247, %v1268
      %v1287 = vmax.f32 %v1246, %v1270
      %v1288 = vmax.f32 %v1248, %v1272
      %p1289 = scmp.gt.s32.totalorder %s24, 0
      %s1290 = scalar_select %p1289, 1, 0
      %s1291 = scvt.s32.f32 %s1290
      %v1292 = vstv %s1291
      %v1293 = vmul.f32 %v1203, %v1292
      %v1294 = vmul.f32 %v1204, %v1292
      %v1295 = vmul.f32 %v1205, %v1292
      %v1296 = vmul.f32 %v1206, %v1292
      %v1297 = vmul.f32 %v1207, %v1292
      %v1298 = vmul.f32 %v1208, %v1292
      %v1299 = vmul.f32 %v1209, %v1292
      %v1300 = vmul.f32 %v1210, %v1292
      %p1301 = scmp.lt.s32.totalorder %s24, 0
      %s1302 = scalar_select %p1301, 1, 0
      %s1303 = scvt.s32.f32 %s1302
      %v1304 = vstv %s1303
      %v1305 = vmul.f32 %v1281, %v1304
      %v1306 = vmul.f32 %v1282, %v1304
      %v1307 = vmul.f32 %v1283, %v1304
      %v1308 = vmul.f32 %v1284, %v1304
      %v1309 = vmul.f32 %v1285, %v1304
      %v1310 = vmul.f32 %v1286, %v1304
      %v1311 = vmul.f32 %v1287, %v1304
      %v1312 = vmul.f32 %v1288, %v1304
      %v1393 = vlaneseq
      %v1394 = vshrl.u32 %v1393, 7
      %v1395 = vsub.s32 0, %v1394
      %v1396 = vrot.slane %v1293, %v1395
      %v1397 = vlaneseq
      %v1398 = vshrl.u32 %v1397, 7
      %v1399 = vsub.s32 0, %v1398
      %v1400 = vrot.slane %v1294, %v1399
      %v1401 = vlaneseq
      %v1402 = vshrl.u32 %v1401, 7
      %v1403 = vsub.s32 0, %v1402
      %v1404 = vrot.slane %v1295, %v1403
      %v1405 = vlaneseq
      %v1406 = vshrl.u32 %v1405, 7
      %v1407 = vsub.s32 0, %v1406
      %v1408 = vrot.slane %v1296, %v1407
      %v1409 = vlaneseq
      %v1410 = vshrl.u32 %v1409, 7
      %v1411 = vsub.s32 0, %v1410
      %v1412 = vrot.slane %v1297, %v1411
      %v1413 = vlaneseq
      %v1414 = vshrl.u32 %v1413, 7
      %v1415 = vsub.s32 0, %v1414
      %v1416 = vrot.slane %v1298, %v1415
      %v1417 = vlaneseq
      %v1418 = vshrl.u32 %v1417, 7
      %v1419 = vsub.s32 0, %v1418
      %v1420 = vrot.slane %v1299, %v1419
      %v1421 = vlaneseq
      %v1422 = vshrl.u32 %v1421, 7
      %v1423 = vsub.s32 0, %v1422
      %v1424 = vrot.slane %v1300, %v1423
      %v1425 = vlaneseq
      %v1426 = vshrl.u32 %v1425, 7
      %v1427 = vsub.s32 0, %v1426
      %v1428 = vrot.slane %v1069, %v1427
      %v1429 = vlaneseq
      %v1430 = vshrl.u32 %v1429, 7
      %v1431 = vsub.s32 0, %v1430
      %v1432 = vrot.slane %v1070, %v1431
      %v1433 = vlaneseq
      %v1434 = vshrl.u32 %v1433, 7
      %v1435 = vsub.s32 0, %v1434
      %v1436 = vrot.slane %v1071, %v1435
      %v1437 = vlaneseq
      %v1438 = vshrl.u32 %v1437, 7
      %v1439 = vsub.s32 0, %v1438
      %v1440 = vrot.slane %v1072, %v1439
      %v1441 = vlaneseq
      %v1442 = vshrl.u32 %v1441, 7
      %v1443 = vsub.s32 0, %v1442
      %v1444 = vrot.slane %v1073, %v1443
      %v1445 = vlaneseq
      %v1446 = vshrl.u32 %v1445, 7
      %v1447 = vsub.s32 0, %v1446
      %v1448 = vrot.slane %v1074, %v1447
      %v1449 = vlaneseq
      %v1450 = vshrl.u32 %v1449, 7
      %v1451 = vsub.s32 0, %v1450
      %v1452 = vrot.slane %v1075, %v1451
      %v1453 = vlaneseq
      %v1454 = vshrl.u32 %v1453, 7
      %v1455 = vsub.s32 0, %v1454
      %v1456 = vrot.slane %v1076, %v1455
      %v1457 = vlaneseq
      %v1458 = vshrl.u32 %v1457, 7
      %v1459 = vsub.s32 0, %v1458
      %v1460 = vrot.slane %v1077, %v1459
      %v1461 = vlaneseq
      %v1462 = vshrl.u32 %v1461, 7
      %v1463 = vsub.s32 0, %v1462
      %v1464 = vrot.slane %v1078, %v1463
      %v1465 = vlaneseq
      %v1466 = vshrl.u32 %v1465, 7
      %v1467 = vsub.s32 0, %v1466
      %v1468 = vrot.slane %v1079, %v1467
      %v1469 = vlaneseq
      %v1470 = vshrl.u32 %v1469, 7
      %v1471 = vsub.s32 0, %v1470
      %v1472 = vrot.slane %v1080, %v1471
      %v1473 = vlaneseq
      %v1474 = vshrl.u32 %v1473, 7
      %v1475 = vsub.s32 0, %v1474
      %v1476 = vrot.slane %v1081, %v1475
      %v1477 = vlaneseq
      %v1478 = vshrl.u32 %v1477, 7
      %v1479 = vsub.s32 0, %v1478
      %v1480 = vrot.slane %v1082, %v1479
      %v1481 = vlaneseq
      %v1482 = vshrl.u32 %v1481, 7
      %v1483 = vsub.s32 0, %v1482
      %v1484 = vrot.slane %v1083, %v1483
      %v1485 = vlaneseq
      %v1486 = vshrl.u32 %v1485, 7
      %v1487 = vsub.s32 0, %v1486
      %v1488 = vrot.slane %v1084, %v1487
      %v1489 = vlaneseq
      %v1490 = vshrl.u32 %v1489, 7
      %v1491 = vsub.s32 0, %v1490
      %v1492 = vrot.slane %v1085, %v1491
      %v1493 = vlaneseq
      %v1494 = vshrl.u32 %v1493, 7
      %v1495 = vsub.s32 0, %v1494
      %v1496 = vrot.slane %v1086, %v1495
      %v1497 = vlaneseq
      %v1498 = vshrl.u32 %v1497, 7
      %v1499 = vsub.s32 0, %v1498
      %v1500 = vrot.slane %v1087, %v1499
      %v1501 = vlaneseq
      %v1502 = vshrl.u32 %v1501, 7
      %v1503 = vsub.s32 0, %v1502
      %v1504 = vrot.slane %v1088, %v1503
      %v1505 = vlaneseq
      %v1506 = vshrl.u32 %v1505, 7
      %v1507 = vsub.s32 0, %v1506
      %v1508 = vrot.slane %v1089, %v1507
      %v1509 = vlaneseq
      %v1510 = vshrl.u32 %v1509, 7
      %v1511 = vsub.s32 0, %v1510
      %v1512 = vrot.slane %v1090, %v1511
      %v1513 = vlaneseq
      %v1514 = vshrl.u32 %v1513, 7
      %v1515 = vsub.s32 0, %v1514
      %v1516 = vrot.slane %v1091, %v1515
      %v1517 = vlaneseq
      %v1518 = vshrl.u32 %v1517, 7
      %v1519 = vsub.s32 0, %v1518
      %v1520 = vrot.slane %v1092, %v1519
      %v1521 = vlaneseq
      %v1522 = vshrl.u32 %v1521, 7
      %v1523 = vsub.s32 0, %v1522
      %v1524 = vrot.slane %v1093, %v1523
      %v1525 = vlaneseq
      %v1526 = vshrl.u32 %v1525, 7
      %v1527 = vsub.s32 0, %v1526
      %v1528 = vrot.slane %v1094, %v1527
      %v1529 = vlaneseq
      %v1530 = vshrl.u32 %v1529, 7
      %v1531 = vsub.s32 0, %v1530
      %v1532 = vrot.slane %v1095, %v1531
      %v1533 = vlaneseq
      %v1534 = vshrl.u32 %v1533, 7
      %v1535 = vsub.s32 0, %v1534
      %v1536 = vrot.slane %v1096, %v1535
      %v1537 = vlaneseq
      %v1538 = vshrl.u32 %v1537, 7
      %v1539 = vsub.s32 0, %v1538
      %v1540 = vrot.slane %v1097, %v1539
      %v1541 = vlaneseq
      %v1542 = vshrl.u32 %v1541, 7
      %v1543 = vsub.s32 0, %v1542
      %v1544 = vrot.slane %v1098, %v1543
      %v1545 = vlaneseq
      %v1546 = vshrl.u32 %v1545, 7
      %v1547 = vsub.s32 0, %v1546
      %v1548 = vrot.slane %v1099, %v1547
      %v1549 = vlaneseq
      %v1550 = vshrl.u32 %v1549, 7
      %v1551 = vsub.s32 0, %v1550
      %v1552 = vrot.slane %v1100, %v1551
      %v1553 = vlaneseq
      %v1554 = vshrl.u32 %v1553, 7
      %v1555 = vsub.s32 0, %v1554
      %v1556 = vrot.slane %v1101, %v1555
      %v1557 = vlaneseq
      %v1558 = vshrl.u32 %v1557, 7
      %v1559 = vsub.s32 0, %v1558
      %v1560 = vrot.slane %v1102, %v1559
      %v1561 = vlaneseq
      %v1562 = vshrl.u32 %v1561, 7
      %v1563 = vsub.s32 0, %v1562
      %v1564 = vrot.slane %v1103, %v1563
      %v1565 = vlaneseq
      %v1566 = vshrl.u32 %v1565, 7
      %v1567 = vsub.s32 0, %v1566
      %v1568 = vrot.slane %v1104, %v1567
      %v1569 = vlaneseq
      %v1570 = vshrl.u32 %v1569, 7
      %v1571 = vsub.s32 0, %v1570
      %v1572 = vrot.slane %v1105, %v1571
      %v1573 = vlaneseq
      %v1574 = vshrl.u32 %v1573, 7
      %v1575 = vsub.s32 0, %v1574
      %v1576 = vrot.slane %v1106, %v1575
      %v1577 = vlaneseq
      %v1578 = vshrl.u32 %v1577, 7
      %v1579 = vsub.s32 0, %v1578
      %v1580 = vrot.slane %v1107, %v1579
      %v1581 = vlaneseq
      %v1582 = vshrl.u32 %v1581, 7
      %v1583 = vsub.s32 0, %v1582
      %v1584 = vrot.slane %v1108, %v1583
      %v1585 = vlaneseq
      %v1586 = vshrl.u32 %v1585, 7
      %v1587 = vsub.s32 0, %v1586
      %v1588 = vrot.slane %v1109, %v1587
      %v1589 = vlaneseq
      %v1590 = vshrl.u32 %v1589, 7
      %v1591 = vsub.s32 0, %v1590
      %v1592 = vrot.slane %v1110, %v1591
      %v1593 = vlaneseq
      %v1594 = vshrl.u32 %v1593, 7
      %v1595 = vsub.s32 0, %v1594
      %v1596 = vrot.slane %v1111, %v1595
      %v1597 = vlaneseq
      %v1598 = vshrl.u32 %v1597, 7
      %v1599 = vsub.s32 0, %v1598
      %v1600 = vrot.slane %v1112, %v1599
      %v1601 = vlaneseq
      %v1602 = vshrl.u32 %v1601, 7
      %v1603 = vsub.s32 0, %v1602
      %v1604 = vrot.slane %v1113, %v1603
      %v1605 = vlaneseq
      %v1606 = vshrl.u32 %v1605, 7
      %v1607 = vsub.s32 0, %v1606
      %v1608 = vrot.slane %v1114, %v1607
      %v1609 = vlaneseq
      %v1610 = vshrl.u32 %v1609, 7
      %v1611 = vsub.s32 0, %v1610
      %v1612 = vrot.slane %v1115, %v1611
      %v1613 = vlaneseq
      %v1614 = vshrl.u32 %v1613, 7
      %v1615 = vsub.s32 0, %v1614
      %v1616 = vrot.slane %v1116, %v1615
      %v1617 = vlaneseq
      %v1618 = vshrl.u32 %v1617, 7
      %v1619 = vsub.s32 0, %v1618
      %v1620 = vrot.slane %v1117, %v1619
      %v1621 = vlaneseq
      %v1622 = vshrl.u32 %v1621, 7
      %v1623 = vsub.s32 0, %v1622
      %v1624 = vrot.slane %v1118, %v1623
      %v1625 = vlaneseq
      %v1626 = vshrl.u32 %v1625, 7
      %v1627 = vsub.s32 0, %v1626
      %v1628 = vrot.slane %v1119, %v1627
      %v1629 = vlaneseq
      %v1630 = vshrl.u32 %v1629, 7
      %v1631 = vsub.s32 0, %v1630
      %v1632 = vrot.slane %v1120, %v1631
      %v1633 = vlaneseq
      %v1634 = vshrl.u32 %v1633, 7
      %v1635 = vsub.s32 0, %v1634
      %v1636 = vrot.slane %v1121, %v1635
      %v1637 = vlaneseq
      %v1638 = vshrl.u32 %v1637, 7
      %v1639 = vsub.s32 0, %v1638
      %v1640 = vrot.slane %v1122, %v1639
      %v1641 = vlaneseq
      %v1642 = vshrl.u32 %v1641, 7
      %v1643 = vsub.s32 0, %v1642
      %v1644 = vrot.slane %v1123, %v1643
      %v1645 = vlaneseq
      %v1646 = vshrl.u32 %v1645, 7
      %v1647 = vsub.s32 0, %v1646
      %v1648 = vrot.slane %v1124, %v1647
      %v1649 = vlaneseq
      %v1650 = vshrl.u32 %v1649, 7
      %v1651 = vsub.s32 0, %v1650
      %v1652 = vrot.slane %v1125, %v1651
      %v1653 = vlaneseq
      %v1654 = vshrl.u32 %v1653, 7
      %v1655 = vsub.s32 0, %v1654
      %v1656 = vrot.slane %v1126, %v1655
      %v1657 = vlaneseq
      %v1658 = vshrl.u32 %v1657, 7
      %v1659 = vsub.s32 0, %v1658
      %v1660 = vrot.slane %v1127, %v1659
      %v1661 = vlaneseq
      %v1662 = vshrl.u32 %v1661, 7
      %v1663 = vsub.s32 0, %v1662
      %v1664 = vrot.slane %v1128, %v1663
      %v1665 = vlaneseq
      %v1666 = vshrl.u32 %v1665, 7
      %v1667 = vsub.s32 0, %v1666
      %v1668 = vrot.slane %v1129, %v1667
      %v1669 = vlaneseq
      %v1670 = vshrl.u32 %v1669, 7
      %v1671 = vsub.s32 0, %v1670
      %v1672 = vrot.slane %v1130, %v1671
      %v1673 = vlaneseq
      %v1674 = vshrl.u32 %v1673, 7
      %v1675 = vsub.s32 0, %v1674
      %v1676 = vrot.slane %v1131, %v1675
      %v1677 = vlaneseq
      %v1678 = vshrl.u32 %v1677, 7
      %v1679 = vsub.s32 0, %v1678
      %v1680 = vrot.slane %v1132, %v1679
      %v1681 = vlaneseq
      %v1682 = vshrl.u32 %v1681, 7
      %v1683 = vsub.s32 0, %v1682
      %v1684 = vrot.slane %v1305, %v1683
      %v1685 = vlaneseq
      %v1686 = vshrl.u32 %v1685, 7
      %v1687 = vsub.s32 0, %v1686
      %v1688 = vrot.slane %v1306, %v1687
      %v1689 = vlaneseq
      %v1690 = vshrl.u32 %v1689, 7
      %v1691 = vsub.s32 0, %v1690
      %v1692 = vrot.slane %v1307, %v1691
      %v1693 = vlaneseq
      %v1694 = vshrl.u32 %v1693, 7
      %v1695 = vsub.s32 0, %v1694
      %v1696 = vrot.slane %v1308, %v1695
      %v1697 = vlaneseq
      %v1698 = vshrl.u32 %v1697, 7
      %v1699 = vsub.s32 0, %v1698
      %v1700 = vrot.slane %v1309, %v1699
      %v1701 = vlaneseq
      %v1702 = vshrl.u32 %v1701, 7
      %v1703 = vsub.s32 0, %v1702
      %v1704 = vrot.slane %v1310, %v1703
      %v1705 = vlaneseq
      %v1706 = vshrl.u32 %v1705, 7
      %v1707 = vsub.s32 0, %v1706
      %v1708 = vrot.slane %v1311, %v1707
      %v1709 = vlaneseq
      %v1710 = vshrl.u32 %v1709, 7
      %v1711 = vsub.s32 0, %v1710
      %v1712 = vrot.slane %v1312, %v1711
      %vm1713 = vcmask 1042434
      %v1714 = vsel %vm1713, %v1400, %v1396
      %vm1715 = vcmask 1043459
      %v1716 = vsel %vm1715, %v1404, %v1714
      %vm1717 = vcmask 1044484
      %v1718 = vsel %vm1717, %v1408, %v1716
      %vm1719 = vcmask 1045509
      %v1720 = vsel %vm1719, %v1412, %v1718
      %vm1721 = vcmask 1046534
      %v1722 = vsel %vm1721, %v1416, %v1720
      %vm1723 = vcmask 1047559
      %v1724 = vsel %vm1723, %v1420, %v1722
      %v1725 = vsel %vm1713, %v1432, %v1428
      %v1726 = vsel %vm1715, %v1436, %v1725
      %v1727 = vsel %vm1717, %v1440, %v1726
      %v1728 = vsel %vm1719, %v1444, %v1727
      %v1729 = vsel %vm1721, %v1448, %v1728
      %v1730 = vsel %vm1723, %v1452, %v1729
      %v1731 = vsel %vm1713, %v1464, %v1460
      %v1732 = vsel %vm1715, %v1468, %v1731
      %v1733 = vsel %vm1717, %v1472, %v1732
      %v1734 = vsel %vm1719, %v1476, %v1733
      %v1735 = vsel %vm1721, %v1480, %v1734
      %v1736 = vsel %vm1723, %v1484, %v1735
      %v1737 = vsel %vm1713, %v1496, %v1492
      %v1738 = vsel %vm1715, %v1500, %v1737
      %v1739 = vsel %vm1717, %v1504, %v1738
      %v1740 = vsel %vm1719, %v1508, %v1739
      %v1741 = vsel %vm1721, %v1512, %v1740
      %v1742 = vsel %vm1723, %v1516, %v1741
      %v1743 = vsel %vm1713, %v1528, %v1524
      %v1744 = vsel %vm1715, %v1532, %v1743
      %v1745 = vsel %vm1717, %v1536, %v1744
      %v1746 = vsel %vm1719, %v1540, %v1745
      %v1747 = vsel %vm1721, %v1544, %v1746
      %v1748 = vsel %vm1723, %v1548, %v1747
      %v1749 = vsel %vm1713, %v1560, %v1556
      %v1750 = vsel %vm1715, %v1564, %v1749
      %v1751 = vsel %vm1717, %v1568, %v1750
      %v1752 = vsel %vm1719, %v1572, %v1751
      %v1753 = vsel %vm1721, %v1576, %v1752
      %v1754 = vsel %vm1723, %v1580, %v1753
      %v1755 = vsel %vm1713, %v1592, %v1588
      %v1756 = vsel %vm1715, %v1596, %v1755
      %v1757 = vsel %vm1717, %v1600, %v1756
      %v1758 = vsel %vm1719, %v1604, %v1757
      %v1759 = vsel %vm1721, %v1608, %v1758
      %v1760 = vsel %vm1723, %v1612, %v1759
      %v1761 = vsel %vm1713, %v1624, %v1620
      %v1762 = vsel %vm1715, %v1628, %v1761
      %v1763 = vsel %vm1717, %v1632, %v1762
      %v1764 = vsel %vm1719, %v1636, %v1763
      %v1765 = vsel %vm1721, %v1640, %v1764
      %v1766 = vsel %vm1723, %v1644, %v1765
      %v1767 = vsel %vm1713, %v1656, %v1652
      %v1768 = vsel %vm1715, %v1660, %v1767
      %v1769 = vsel %vm1717, %v1664, %v1768
      %v1770 = vsel %vm1719, %v1668, %v1769
      %v1771 = vsel %vm1721, %v1672, %v1770
      %v1772 = vsel %vm1723, %v1676, %v1771
      %v1773 = vsel %vm1713, %v1688, %v1684
      %v1774 = vsel %vm1715, %v1692, %v1773
      %v1775 = vsel %vm1717, %v1696, %v1774
      %v1776 = vsel %vm1719, %v1700, %v1775
      %v1777 = vsel %vm1721, %v1704, %v1776
      %v1778 = vsel %vm1723, %v1708, %v1777
      %vm1799 = vcmask 1040384
      %v1800 = vsel %vm1799, 0.0, %v1724
      %v1801 = vsel %vm1799, 0.0, %v1730
      %v1802 = vsel %vm1799, 0.0, %v1736
      %v1803 = vsel %vm1799, 0.0, %v1742
      %v1804 = vsel %vm1799, 0.0, %v1748
      %v1805 = vsel %vm1799, 0.0, %v1754
      %v1806 = vsel %vm1799, 0.0, %v1760
      %v1807 = vsel %vm1799, 0.0, %v1766
      %v1808 = vsel %vm1799, 0.0, %v1772
      %v1809 = vsel %vm1799, 0.0, %v1778
      %v1810 = vsel %vm1799, %v1424, 0.0
      %v1811 = vsel %vm1799, %v1456, 0.0
      %v1812 = vsel %vm1799, %v1488, 0.0
      %v1813 = vsel %vm1799, %v1520, 0.0
      %v1814 = vsel %vm1799, %v1552, 0.0
      %v1815 = vsel %vm1799, %v1584, 0.0
      %v1816 = vsel %vm1799, %v1616, 0.0
      %v1817 = vsel %vm1799, %v1648, 0.0
      %v1818 = vsel %vm1799, %v1680, 0.0
      %v1819 = vsel %vm1799, %v1712, 0.0
      %vm1840 = vcmask 1046528
      %v1841 = vrot.slane %v1800, 1
      %v1842 = vrot.slane %v1810, 1
      %v1843 = vsel %vm1840, %v1841, %v1842
      %v1844 = vrot.slane %v1801, 1
      %v1845 = vrot.slane %v1811, 1
      %v1846 = vsel %vm1840, %v1844, %v1845
      %v1847 = vrot.slane %v1802, 1
      %v1848 = vrot.slane %v1812, 1
      %v1849 = vsel %vm1840, %v1847, %v1848
      %v1850 = vrot.slane %v1803, 1
      %v1851 = vrot.slane %v1813, 1
      %v1852 = vsel %vm1840, %v1850, %v1851
      %v1853 = vrot.slane %v1804, 1
      %v1854 = vrot.slane %v1814, 1
      %v1855 = vsel %vm1840, %v1853, %v1854
      %v1856 = vrot.slane %v1805, 1
      %v1857 = vrot.slane %v1815, 1
      %v1858 = vsel %vm1840, %v1856, %v1857
      %v1859 = vrot.slane %v1806, 1
      %v1860 = vrot.slane %v1816, 1
      %v1861 = vsel %vm1840, %v1859, %v1860
      %v1862 = vrot.slane %v1807, 1
      %v1863 = vrot.slane %v1817, 1
      %v1864 = vsel %vm1840, %v1862, %v1863
      %v1865 = vrot.slane %v1808, 1
      %v1866 = vrot.slane %v1818, 1
      %v1867 = vsel %vm1840, %v1865, %v1866
      %v1868 = vrot.slane %v1809, 1
      %v1869 = vrot.slane %v1819, 1
      %v1870 = vsel %vm1840, %v1868, %v1869
      %1871 = vrot.lane.b32.xlu0 %v1843, 4
      %v1872 = vpop.permute.xlu0 %1871
      %1873 = vrot.lane.b32.xlu0 %v1846, 4
      %v1874 = vpop.permute.xlu0 %1873
      %1875 = vrot.lane.b32.xlu0 %v1849, 4
      %v1876 = vpop.permute.xlu0 %1875
      %1877 = vrot.lane.b32.xlu0 %v1852, 4
      %v1878 = vpop.permute.xlu0 %1877
      %1879 = vrot.lane.b32.xlu0 %v1855, 4
      %v1880 = vpop.permute.xlu0 %1879
      %1881 = vrot.lane.b32.xlu0 %v1858, 4
      %v1882 = vpop.permute.xlu0 %1881
      %1883 = vrot.lane.b32.xlu0 %v1861, 4
      %v1884 = vpop.permute.xlu0 %1883
      %1885 = vrot.lane.b32.xlu0 %v1864, 4
      %v1886 = vpop.permute.xlu0 %1885
      %1887 = vrot.lane.b32.xlu0 %v1867, 4
      %v1888 = vpop.permute.xlu0 %1887
      %1889 = vrot.lane.b32.xlu0 %v1870, 4
      %v1890 = vpop.permute.xlu0 %1889
      %vm1901 = vcmask 1045504
      %v1902 = vrot.slane %v1800, 2
      %v1903 = vrot.slane %v1810, 2
      %v1904 = vsel %vm1901, %v1902, %v1903
      %v1905 = vrot.slane %v1801, 2
      %v1906 = vrot.slane %v1811, 2
      %v1907 = vsel %vm1901, %v1905, %v1906
      %v1908 = vrot.slane %v1802, 2
      %v1909 = vrot.slane %v1812, 2
      %v1910 = vsel %vm1901, %v1908, %v1909
      %v1911 = vrot.slane %v1803, 2
      %v1912 = vrot.slane %v1813, 2
      %v1913 = vsel %vm1901, %v1911, %v1912
      %v1914 = vrot.slane %v1804, 2
      %v1915 = vrot.slane %v1814, 2
      %v1916 = vsel %vm1901, %v1914, %v1915
      %v1917 = vrot.slane %v1805, 2
      %v1918 = vrot.slane %v1815, 2
      %v1919 = vsel %vm1901, %v1917, %v1918
      %v1920 = vrot.slane %v1806, 2
      %v1921 = vrot.slane %v1816, 2
      %v1922 = vsel %vm1901, %v1920, %v1921
      %v1923 = vrot.slane %v1807, 2
      %v1924 = vrot.slane %v1817, 2
      %v1925 = vsel %vm1901, %v1923, %v1924
      %v1926 = vrot.slane %v1808, 2
      %v1927 = vrot.slane %v1818, 2
      %v1928 = vsel %vm1901, %v1926, %v1927
      %v1929 = vrot.slane %v1809, 2
      %v1930 = vrot.slane %v1819, 2
      %v1931 = vsel %vm1901, %v1929, %v1930
      %1932 = vrot.lane.b32.xlu0 %v1904, 8
      %v1933 = vpop.permute.xlu0 %1932
      %1934 = vrot.lane.b32.xlu0 %v1907, 8
      %v1935 = vpop.permute.xlu0 %1934
      %1936 = vrot.lane.b32.xlu0 %v1910, 8
      %v1937 = vpop.permute.xlu0 %1936
      %1938 = vrot.lane.b32.xlu0 %v1913, 8
      %v1939 = vpop.permute.xlu0 %1938
      %1940 = vrot.lane.b32.xlu0 %v1916, 8
      %v1941 = vpop.permute.xlu0 %1940
      %1942 = vrot.lane.b32.xlu0 %v1919, 8
      %v1943 = vpop.permute.xlu0 %1942
      %1944 = vrot.lane.b32.xlu0 %v1922, 8
      %v1945 = vpop.permute.xlu0 %1944
      %1946 = vrot.lane.b32.xlu0 %v1925, 8
      %v1947 = vpop.permute.xlu0 %1946
      %1948 = vrot.lane.b32.xlu0 %v1928, 8
      %v1949 = vpop.permute.xlu0 %1948
      %1950 = vrot.lane.b32.xlu0 %v1931, 8
      %v1951 = vpop.permute.xlu0 %1950
      %vm1962 = vcmask 31744
      %v1963 = vsel %vm1962, %v1800, %v1872
      %v1964 = vsel %vm1962, %v1801, %v1874
      %v1965 = vsel %vm1962, %v1802, %v1876
      %v1966 = vsel %vm1962, %v1803, %v1878
      %v1967 = vsel %vm1962, %v1804, %v1880
      %v1968 = vsel %vm1962, %v1805, %v1882
      %v1969 = vsel %vm1962, %v1806, %v1884
      %v1970 = vsel %vm1962, %v1807, %v1886
      %v1971 = vsel %vm1962, %v1808, %v1888
      %v1972 = vsel %vm1962, %v1809, %v1890
      %vm1973 = vcmask 64512
      %v1974 = vsel %vm1973, %v1963, %v1933
      %v1975 = vsel %vm1973, %v1964, %v1935
      %v1976 = vsel %vm1973, %v1965, %v1937
      %v1977 = vsel %vm1973, %v1966, %v1939
      %v1978 = vsel %vm1973, %v1967, %v1941
      %v1979 = vsel %vm1973, %v1968, %v1943
      %v1980 = vsel %vm1973, %v1969, %v1945
      %v1981 = vsel %vm1973, %v1970, %v1947
      %v1982 = vsel %vm1973, %v1971, %v1949
      %v1983 = vsel %vm1973, %v1972, %v1951
      %1992 = vrot.lane.b32.xlu0 %v1975, 12
      %v1993 = vpop.permute.xlu0 %1992
      %1994 = vrot.lane.b32.xlu0 %v1976, 12
      %v1995 = vpop.permute.xlu0 %1994
      %1996 = vrot.lane.b32.xlu0 %v1977, 12
      %v1997 = vpop.permute.xlu0 %1996
      %1998 = vrot.lane.b32.xlu0 %v1978, 12
      %v1999 = vpop.permute.xlu0 %1998
      %2000 = vrot.lane.b32.xlu0 %v1979, 12
      %v2001 = vpop.permute.xlu0 %2000
      %2002 = vrot.lane.b32.xlu0 %v1980, 12
      %v2003 = vpop.permute.xlu0 %2002
      %2004 = vrot.lane.b32.xlu0 %v1981, 12
      %v2005 = vpop.permute.xlu0 %2004
      %2006 = vrot.lane.b32.xlu0 %v1982, 12
      %v2007 = vpop.permute.xlu0 %2006
      %2017 = vrot.lane.b32.xlu0 %v1976, 24
      %v2018 = vpop.permute.xlu0 %2017
      %2019 = vrot.lane.b32.xlu0 %v1977, 24
      %v2020 = vpop.permute.xlu0 %2019
      %2021 = vrot.lane.b32.xlu0 %v1978, 24
      %v2022 = vpop.permute.xlu0 %2021
      %2023 = vrot.lane.b32.xlu0 %v1979, 24
      %v2024 = vpop.permute.xlu0 %2023
      %2025 = vrot.lane.b32.xlu0 %v1980, 24
      %v2026 = vpop.permute.xlu0 %2025
      %2027 = vrot.lane.b32.xlu0 %v1981, 24
      %v2028 = vpop.permute.xlu0 %2027
      %2029 = vrot.lane.b32.xlu0 %v1982, 24
      %v2030 = vpop.permute.xlu0 %2029
      %2031 = vrot.lane.b32.xlu0 %v1983, 24
      %v2032 = vpop.permute.xlu0 %2031
      %vm2041 = vcmask 97280
      %v2042 = vsel %vm2041, %v1974, %v1993
      %v2043 = vsel %vm2041, %v1975, %v1995
      %v2044 = vsel %vm2041, %v1976, %v1997
      %v2045 = vsel %vm2041, %v1977, %v1999
      %v2046 = vsel %vm2041, %v1978, %v2001
      %v2047 = vsel %vm2041, %v1979, %v2003
      %v2048 = vsel %vm2041, %v1980, %v2005
      %v2049 = vsel %vm2041, %v1981, %v2007
      %vm2050 = vcmask 195584
      %v2051 = vsel %vm2050, %v2042, %v2018
      %v2052 = vsel %vm2050, %v2043, %v2020
      %v2053 = vsel %vm2050, %v2044, %v2022
      %v2054 = vsel %vm2050, %v2045, %v2024
      %v2055 = vsel %vm2050, %v2046, %v2026
      %v2056 = vsel %vm2050, %v2047, %v2028
      %v2057 = vsel %vm2050, %v2048, %v2030
      %v2058 = vsel %vm2050, %v2049, %v2032
      %v2059 = vld [vmem:[%s5] sm:$0xff]
      %v2060 = vld [vmem:[%s5 + $0x8] sm:$0xff]
      %v2061 = vld [vmem:[%s5 + $0x10] sm:$0xff]
      %v2062 = vld [vmem:[%s5 + $0x18] sm:$0xff]
      %v2063 = vld [vmem:[%s5 + $0x20] sm:$0xf]
      %vm2064 = vcmask 293888
      %v2066 = vsel %vm2064, %v2051, 0
      %v2069 = vsel %vm2064, %v2052, 0
      %v2072 = vsel %vm2064, %v2053, 0
      %v2075 = vsel %vm2064, %v2054, 0
      %v2078 = vsel %vm2064, %v2055, 0
      %v2081 = vsel %vm2064, %v2056, 0
      %v2084 = vsel %vm2064, %v2057, 0
      %v2087 = vsel %vm2064, %v2058, 0
      %vm2089 = vcmask 1043456
      %v2091 = vsel %vm2089, %v2063, 0
      %2093 = vmatprep.subr.mxu0 0.0
      %2094 = vmatpush1.msra.mxu0 0.0
      %2095 = vmatprep.subr.mxu0 0.0
      %2096 = vmatpush1.msra.mxu0 0.0
      %2097 = vmatprep.subr.mxu0 0.0
      %2098 = vmatpush1.msra.mxu0 0.0
      %2099 = vmatprep.subr.mxu0 0.0
      %2100 = vmatpush1.msra.mxu0 0.0
      %2101 = vmatprep.subr.mxu0 0.0
      %2102 = vmatpush1.msra.mxu0 0.0
      %2103 = vmatprep.subr.mxu0 0.0
      %2104 = vmatpush1.msra.mxu0 0.0
      %2105 = vmatprep.subr.mxu0 0.0
      %2106 = vmatpush1.msra.mxu0 0.0
      %2107 = vmatprep.subr.mxu0 0.0
      %2108 = vmatpush1.msra.mxu0 0.0
      %2109 = vmatprep.subr.mxu0 0.0
      %2110 = vmatpush1.msra.mxu0 0.0
      %2111 = vmatprep.subr.mxu0 0.0
      %2112 = vmatpush1.msra.mxu0 0.0
      %2113 = vmatprep.subr.mxu0 0.0
      %2114 = vmatpush1.msra.mxu0 0.0
      %2115 = vmatprep.subr.mxu0 0.0
      %2116 = vmatpush1.msra.mxu0 %v2091
      %2117 = vmatprep.subr.mxu0 0.0
      %2118 = vmatpush1.msra.mxu0 %v2062
      %2119 = vmatprep.subr.mxu0 0.0
      %2120 = vmatpush1.msra.mxu0 %v2061
      %2121 = vmatprep.subr.mxu0 0.0
      %2122 = vmatpush1.msra.mxu0 %v2060
      %2123 = vmatprep.subr.mxu0 0.0
      %2124 = vmatpush1.msra.mxu0 %v2059
      %2125 = vmatprep.subr.mxu0 0.0
      %2126 = vmatpush2.msra.mxu0 0.0
      %2127 = vmatprep.subr.mxu0 0.0
      %2128 = vmatpush2.msra.mxu0 0.0
      %2129 = vmatprep.subr.mxu0 0.0
      %2130 = vmatpush2.msra.mxu0 0.0
      %2131 = vmatprep.subr.mxu0 0.0
      %2132 = vmatpush2.msra.mxu0 0.0
      %2133 = vmatprep.subr.mxu0 0.0
      %2134 = vmatpush2.msra.mxu0 0.0
      %2135 = vmatprep.subr.mxu0 0.0
      %2136 = vmatpush2.msra.mxu0 0.0
      %2137 = vmatprep.subr.mxu0 0.0
      %2138 = vmatpush2.msra.mxu0 0.0
      %2139 = vmatprep.subr.mxu0 0.0
      %2140 = vmatpush2.msra.mxu0 0.0
      %2141 = vmatprep.subr.mxu0 0.0
      %2142 = vmatpush2.msra.mxu0 0.0
      %2143 = vmatprep.subr.mxu0 0.0
      %2144 = vmatpush2.msra.mxu0 0.0
      %2145 = vmatprep.subr.mxu0 0.0
      %2146 = vmatpush2.msra.mxu0 0.0
      %2147 = vmatprep.subr.mxu0 0.0
      %2148 = vmatpush2.msra.mxu0 0.0
      %2149 = vmatprep.subr.mxu0 0.0
      %2150 = vmatpush2.msra.mxu0 0.0
      %2151 = vmatprep.subr.mxu0 0.0
      %2152 = vmatpush2.msra.mxu0 0.0
      %2153 = vmatprep.subr.mxu0 0.0
      %2154 = vmatpush2.msra.mxu0 0.0
      %2155 = vmatprep.subr.mxu0 0.0
      %2156 = vmatpush2.msra.mxu0 0.0
      %2157 = vmatprep.mubr.f32.mxu0 0.0
      %2158 = vmatmul.mubr.f32.gmra.mxu0 %v2066
      %v2159 = vpop.f32.mrf.mxu0
      %v2160 = vadd.f32 0.0, %v2159
      %v2161 = vpop.f32.mrf.mxu0
      %2162 = vmatprep.mubr.f32.mxu0 0.0
      %2163 = vmatmul.mubr.f32.gmra.mxu0 %v2069
      %v2164 = vpop.f32.mrf.mxu0
      %v2165 = vadd.f32 0.0, %v2164
      %v2166 = vpop.f32.mrf.mxu0
      %2167 = vmatprep.mubr.f32.mxu0 0.0
      %2168 = vmatmul.mubr.f32.gmra.mxu0 %v2072
      %v2169 = vpop.f32.mrf.mxu0
      %v2170 = vadd.f32 0.0, %v2169
      %v2171 = vpop.f32.mrf.mxu0
      %2172 = vmatprep.mubr.f32.mxu0 0.0
      %2173 = vmatmul.mubr.f32.gmra.mxu0 %v2075
      %v2174 = vpop.f32.mrf.mxu0
      %v2175 = vadd.f32 0.0, %v2174
      %v2176 = vpop.f32.mrf.mxu0
      %2177 = vmatprep.mubr.f32.mxu0 0.0
      %2178 = vmatmul.mubr.f32.gmra.mxu0 %v2078
      %v2179 = vpop.f32.mrf.mxu0
      %v2180 = vadd.f32 0.0, %v2179
      %v2181 = vpop.f32.mrf.mxu0
      %2182 = vmatprep.mubr.f32.mxu0 0.0
      %2183 = vmatmul.mubr.f32.gmra.mxu0 %v2081
      %v2184 = vpop.f32.mrf.mxu0
      %v2185 = vadd.f32 0.0, %v2184
      %v2186 = vpop.f32.mrf.mxu0
      %2187 = vmatprep.mubr.f32.mxu0 0.0
      %2188 = vmatmul.mubr.f32.gmra.mxu0 %v2084
      %v2189 = vpop.f32.mrf.mxu0
      %v2190 = vadd.f32 0.0, %v2189
      %v2191 = vpop.f32.mrf.mxu0
      %2192 = vmatprep.mubr.f32.mxu0 0.0
      %2193 = vmatmul.mubr.f32.gmra.mxu0 %v2087
      %v2194 = vpop.f32.mrf.mxu0
      %v2195 = vadd.f32 0.0, %v2194
      %v2196 = vpop.f32.mrf.mxu0
      %2197 = vdwg.mxu0
      %v2206 = vrot.slane %v2165, 7
      %vm2207 = vcmask 1041409
      %v2208 = vsel %vm2207, %v2206, %v2160
      %v2209 = vrot.slane %v2170, 6
      %v2210 = vsel %vm1713, %v2209, %v2208
      %v2211 = vrot.slane %v2175, 5
      %v2212 = vsel %vm1715, %v2211, %v2210
      %v2213 = vrot.slane %v2180, 4
      %v2214 = vsel %vm1717, %v2213, %v2212
      %v2215 = vrot.slane %v2185, 3
      %v2216 = vsel %vm1719, %v2215, %v2214
      %v2217 = vrot.slane %v2190, 2
      %v2218 = vsel %vm1721, %v2217, %v2216
      %v2219 = vrot.slane %v2195, 1
      %v2220 = vsel %vm1723, %v2219, %v2218
      %v2222 = vrot.slane %v2160, 1
      %v2223 = vsel %vm2207, %v2165, %v2222
      %v2224 = vrot.slane %v2170, 7
      %v2225 = vsel %vm1713, %v2224, %v2223
      %v2226 = vrot.slane %v2175, 6
      %v2227 = vsel %vm1715, %v2226, %v2225
      %v2228 = vrot.slane %v2180, 5
      %v2229 = vsel %vm1717, %v2228, %v2227
      %v2230 = vrot.slane %v2185, 4
      %v2231 = vsel %vm1719, %v2230, %v2229
      %v2232 = vrot.slane %v2190, 3
      %v2233 = vsel %vm1721, %v2232, %v2231
      %v2234 = vrot.slane %v2195, 2
      %v2235 = vsel %vm1723, %v2234, %v2233
      %2236 = vrot.lane.b32.xlu0 %v2235, 8
      %v2237 = vpop.permute.xlu0 %2236
      %v2239 = vrot.slane %v2160, 2
      %v2240 = vrot.slane %v2165, 1
      %v2241 = vsel %vm2207, %v2240, %v2239
      %v2242 = vsel %vm1713, %v2170, %v2241
      %v2243 = vrot.slane %v2175, 7
      %v2244 = vsel %vm1715, %v2243, %v2242
      %v2245 = vrot.slane %v2180, 6
      %v2246 = vsel %vm1717, %v2245, %v2244
      %v2247 = vrot.slane %v2185, 5
      %v2248 = vsel %vm1719, %v2247, %v2246
      %v2249 = vrot.slane %v2190, 4
      %v2250 = vsel %vm1721, %v2249, %v2248
      %v2251 = vrot.slane %v2195, 3
      %v2252 = vsel %vm1723, %v2251, %v2250
      %2253 = vrot.lane.b32.xlu0 %v2252, 16
      %v2254 = vpop.permute.xlu0 %2253
      %v2256 = vrot.slane %v2160, 3
      %v2257 = vrot.slane %v2165, 2
      %v2258 = vsel %vm2207, %v2257, %v2256
      %v2259 = vrot.slane %v2170, 1
      %v2260 = vsel %vm1713, %v2259, %v2258
      %v2261 = vsel %vm1715, %v2175, %v2260
      %v2262 = vrot.slane %v2180, 7
      %v2263 = vsel %vm1717, %v2262, %v2261
      %v2264 = vrot.slane %v2185, 6
      %v2265 = vsel %vm1719, %v2264, %v2263
      %v2266 = vrot.slane %v2190, 5
      %v2267 = vsel %vm1721, %v2266, %v2265
      %v2268 = vrot.slane %v2195, 4
      %v2269 = vsel %vm1723, %v2268, %v2267
      %2270 = vrot.lane.b32.xlu0 %v2269, 24
      %v2271 = vpop.permute.xlu0 %2270
      %v2273 = vrot.slane %v2160, 4
      %v2274 = vrot.slane %v2165, 3
      %v2275 = vsel %vm2207, %v2274, %v2273
      %v2276 = vrot.slane %v2170, 2
      %v2277 = vsel %vm1713, %v2276, %v2275
      %v2278 = vrot.slane %v2175, 1
      %v2279 = vsel %vm1715, %v2278, %v2277
      %v2280 = vsel %vm1717, %v2180, %v2279
      %v2281 = vrot.slane %v2185, 7
      %v2282 = vsel %vm1719, %v2281, %v2280
      %v2283 = vrot.slane %v2190, 6
      %v2284 = vsel %vm1721, %v2283, %v2282
      %v2285 = vrot.slane %v2195, 5
      %v2286 = vsel %vm1723, %v2285, %v2284
      %2287 = vrot.lane.b32.xlu0 %v2286, 32
      %v2288 = vpop.permute.xlu0 %2287
      %v2290 = vrot.slane %v2160, 5
      %v2291 = vrot.slane %v2165, 4
      %v2292 = vsel %vm2207, %v2291, %v2290
      %v2293 = vrot.slane %v2170, 3
      %v2294 = vsel %vm1713, %v2293, %v2292
      %v2295 = vrot.slane %v2175, 2
      %v2296 = vsel %vm1715, %v2295, %v2294
      %v2297 = vrot.slane %v2180, 1
      %v2298 = vsel %vm1717, %v2297, %v2296
      %v2299 = vsel %vm1719, %v2185, %v2298
      %v2300 = vrot.slane %v2190, 7
      %v2301 = vsel %vm1721, %v2300, %v2299
      %v2302 = vrot.slane %v2195, 6
      %v2303 = vsel %vm1723, %v2302, %v2301
      %2304 = vrot.lane.b32.xlu0 %v2303, 40
      %v2305 = vpop.permute.xlu0 %2304
      %v2307 = vrot.slane %v2160, 6
      %v2308 = vrot.slane %v2165, 5
      %v2309 = vsel %vm2207, %v2308, %v2307
      %v2310 = vrot.slane %v2170, 4
      %v2311 = vsel %vm1713, %v2310, %v2309
      %v2312 = vrot.slane %v2175, 3
      %v2313 = vsel %vm1715, %v2312, %v2311
      %v2314 = vrot.slane %v2180, 2
      %v2315 = vsel %vm1717, %v2314, %v2313
      %v2316 = vrot.slane %v2185, 1
      %v2317 = vsel %vm1719, %v2316, %v2315
      %v2318 = vsel %vm1721, %v2190, %v2317
      %v2319 = vrot.slane %v2195, 7
      %v2320 = vsel %vm1723, %v2319, %v2318
      %2321 = vrot.lane.b32.xlu0 %v2320, 48
      %v2322 = vpop.permute.xlu0 %2321
      %v2324 = vrot.slane %v2160, 7
      %v2325 = vrot.slane %v2165, 6
      %v2326 = vsel %vm2207, %v2325, %v2324
      %v2327 = vrot.slane %v2170, 5
      %v2328 = vsel %vm1713, %v2327, %v2326
      %v2329 = vrot.slane %v2175, 4
      %v2330 = vsel %vm1715, %v2329, %v2328
      %v2331 = vrot.slane %v2180, 3
      %v2332 = vsel %vm1717, %v2331, %v2330
      %v2333 = vrot.slane %v2185, 2
      %v2334 = vsel %vm1719, %v2333, %v2332
      %v2335 = vrot.slane %v2190, 1
      %v2336 = vsel %vm1721, %v2335, %v2334
      %v2337 = vsel %vm1723, %v2195, %v2336
      %2338 = vrot.lane.b32.xlu0 %v2337, 56
      %v2339 = vpop.permute.xlu0 %2338
      %v2341 = vsel %vm1973, %v2220, %v2237
      %vm2342 = vcmask 130048
      %v2343 = vsel %vm2342, %v2341, %v2254
      %v2344 = vsel %vm2050, %v2343, %v2271
      %vm2345 = vcmask 261120
      %v2346 = vsel %vm2345, %v2344, %v2288
      %vm2347 = vcmask 326656
      %v2348 = vsel %vm2347, %v2346, %v2305
      %vm2349 = vcmask 392192
      %v2350 = vsel %vm2349, %v2348, %v2322
      %vm2351 = vcmask 457728
      %v2352 = vsel %vm2351, %v2350, %v2339
      %vm2353 = vcmask 523264
      %2354 = vst.msk [vmem:[%s461] sm:$0xff] %vm2353, %v2352
      %v2355 = vsel %vm1973, %v2160, 0.0
      %v2356 = vsel %vm1973, %v2165, 0.0
      %v2357 = vadd.f32 %v2355, %v2356
      %v2358 = vsel %vm1973, %v2170, 0.0
      %v2359 = vadd.f32 %v2357, %v2358
      %v2360 = vsel %vm1973, %v2175, 0.0
      %v2361 = vadd.f32 %v2359, %v2360
      %v2362 = vsel %vm1973, %v2180, 0.0
      %v2363 = vadd.f32 %v2361, %v2362
      %v2364 = vsel %vm1973, %v2185, 0.0
      %v2365 = vadd.f32 %v2363, %v2364
      %v2366 = vsel %vm1973, %v2190, 0.0
      %v2367 = vadd.f32 %v2365, %v2366
      %v2368 = vsel %vm1973, %v2195, 0.0
      %v2369 = vadd.f32 %v2367, %v2368
      %v2370 = vrot.slane %v2369, 4
      %v2371 = vadd.f32 %v2369, %v2370
      %v2372 = vrot.slane %v2371, 2
      %v2373 = vadd.f32 %v2371, %v2372
      %v2374 = vrot.slane %v2373, 1
      %v2375 = vadd.f32 %v2373, %v2374
      %v2376 = vmul.f32 %v2375, 0.015625
      %v2377 = vsub.f32 %v2160, %v2376
      %v2378 = vsub.f32 %v2165, %v2376
      %v2379 = vsub.f32 %v2170, %v2376
      %v2380 = vsub.f32 %v2175, %v2376
      %v2381 = vsub.f32 %v2180, %v2376
      %v2382 = vsub.f32 %v2185, %v2376
      %v2383 = vsub.f32 %v2190, %v2376
      %v2384 = vsub.f32 %v2195, %v2376
      %v2385 = vmul.f32 %v2377, %v2377
      %v2386 = vmul.f32 %v2378, %v2378
      %v2387 = vmul.f32 %v2379, %v2379
      %v2388 = vmul.f32 %v2380, %v2380
      %v2389 = vmul.f32 %v2381, %v2381
      %v2390 = vmul.f32 %v2382, %v2382
      %v2391 = vmul.f32 %v2383, %v2383
      %v2392 = vmul.f32 %v2384, %v2384
      %v2393 = vsel %vm1973, %v2385, 0.0
      %v2394 = vsel %vm1973, %v2386, 0.0
      %v2395 = vadd.f32 %v2393, %v2394
      %v2396 = vsel %vm1973, %v2387, 0.0
      %v2397 = vadd.f32 %v2395, %v2396
      %v2398 = vsel %vm1973, %v2388, 0.0
      %v2399 = vadd.f32 %v2397, %v2398
      %v2400 = vsel %vm1973, %v2389, 0.0
      %v2401 = vadd.f32 %v2399, %v2400
      %v2402 = vsel %vm1973, %v2390, 0.0
      %v2403 = vadd.f32 %v2401, %v2402
      %v2404 = vsel %vm1973, %v2391, 0.0
      %v2405 = vadd.f32 %v2403, %v2404
      %v2406 = vsel %vm1973, %v2392, 0.0
      %v2407 = vadd.f32 %v2405, %v2406
      %v2408 = vrot.slane %v2407, 4
      %v2409 = vadd.f32 %v2407, %v2408
      %v2410 = vrot.slane %v2409, 2
      %v2411 = vadd.f32 %v2409, %v2410
      %v2412 = vrot.slane %v2411, 1
      %v2413 = vadd.f32 %v2411, %v2412
      %v2414 = vsel %vm1799, %v2376, %v2413
      %vm2415 = vcmask 58368
      %2416 = vst.msk [vmem:[%s468] sm:$0x3] %vm2415, %v2414
      %p2417 = scmp.lt.s32.totalorder %s23, 1
      %s2418 = scalar_select %p2417, %s23, 1
      %p2419 = scmp.lt.s32.totalorder %s24, 0
      %s2420 = scalar_select %p2419, %s24, 0
      %s2421 = sadd.s32 %s2420, %s2418
      %s2422 = smul.addr %s2421, 8
      %s2423 = scalar_lea.vmem %s6, %s2422
      %p2424 = scmp.lt.s32.totalorder %s23, 1
      %s2425 = scalar_select %p2424, %s23, 1
      %p2426 = scmp.lt.s32.totalorder %s24, 0
      %s2427 = scalar_select %p2426, %s24, 0
      %s2428 = sadd.s32 %s2427, %s2425
      %s2429 = smul.addr %s2428, 2
      %s2430 = scalar_lea.vmem %s7, %s2429
      // Predicated region
      $region45: #{down_block.3} parent=43 // pred_check
        %p2431 = pneg %p214
      $region46: #{down_block.3} parent=43 // pred_check_branch
        %2433 = sbr.rel (%p2431) target = $region48
      $region47: #{down_block.3} parent=43 // pred_region
        _
      $region48: #{down_block.3} parent=43 // pred_fallthru
        _
      // Predicated region
      $region49: #{down_block.3} parent=43 // pred_check
        %p2434 = pneg %p242
      $region50: #{down_block.3} parent=43 // pred_check_branch
        %2436 = sbr.rel (%p2434) target = $region52
      $region51: #{down_block.3} parent=43 // pred_region
        _
      $region52: #{down_block.3} parent=43 // pred_fallthru
        _
    $region44: #{down_block.3} parent=5 // pred_fallthru
      _
    %p2437 = scmp.le.s32.totalorder 2, %s14
    // Predicated region
    $region53: #{down_block.3} parent=5 // pred_check
      %p2438 = pneg %p2437
    $region54: #{down_block.3} parent=5 // pred_check_branch
      %2440 = sbr.rel (%p2438) target = $region56
    $region55: #{down_block.3} parent=5 // pred_region
      %s2441 = ssub.s32 %s14, 2
      // Predicated region
      $region57: #{down_block.3} parent=55 // pred_check
        %p2442 = pneg %p220
      $region58: #{down_block.3} parent=55 // pred_check_branch
        %2444 = sbr.rel (%p2442) target = $region60
      $region59: #{down_block.3} parent=55 // pred_region
        %p2445 = scmp.lt.s32.totalorder %s25, 1
        %s2446 = scalar_select %p2445, %s25, 1
        %p2447 = scmp.lt.s32.totalorder %s26, 0
        %s2448 = scalar_select %p2447, %s26, 0
        %s2449 = sadd.s32 %s2448, %s2446
        %s2450 = smul.addr %s2449, 8
        %s2451 = scalar_lea.vmem %s6, %s2450
      $region60: #{down_block.3} parent=55 // pred_fallthru
        _
      // Predicated region
      $region61: #{down_block.3} parent=55 // pred_check
        %p2452 = pneg %p248
      $region62: #{down_block.3} parent=55 // pred_check_branch
        %2454 = sbr.rel (%p2452) target = $region64
      $region63: #{down_block.3} parent=55 // pred_region
        %p2455 = scmp.lt.s32.totalorder %s25, 1
        %s2456 = scalar_select %p2455, %s25, 1
        %p2457 = scmp.lt.s32.totalorder %s26, 0
        %s2458 = scalar_select %p2457, %s26, 0
        %s2459 = sadd.s32 %s2458, %s2456
        %s2460 = smul.addr %s2459, 2
        %s2461 = scalar_lea.vmem %s7, %s2460
      $region64: #{down_block.3} parent=55 // pred_fallthru
        _
    $region56: #{down_block.3} parent=5 // pred_fallthru
      _
  $region6: #{down_block.3} parent=0 // loop_footer
    %s18 = sadd.s32 1, %s14
  $region7: #{down_block.3} parent=0 // loop_footer_branch
    %13 = sbr.rel target = $region3
  $region8: #{down_block.3} parent=0 // loop_exit
    _

</llo_original>
